<compile_context>
chip_gen: v7x
topology: tpu7x:2x2x1
jax: 0.10.0
libtpu: 0.0.40
codegen_flags: <defaults>
</compile_context>

<pallas_src>
import jax
import jax.numpy as jnp
from jax import lax
from jax.experimental import pallas as pl
from jax.experimental.pallas import tpu as pltpu

LN_EPS = 1e-5          # torch.nn.LayerNorm default eps
LRELU_SLOPE = 0.2      # nn.LeakyReLU(0.2)


# ---------------------------------------------------------------------------
# In-kernel helpers
# ---------------------------------------------------------------------------
def _layernorm(x, gamma, beta):
    # two-pass variance (x - mean): one extra VPU subtract, better stability
    mu = jnp.mean(x, axis=-1, keepdims=True)
    d = x - mu
    var = jnp.mean(d * d, axis=-1, keepdims=True)
    return d * lax.rsqrt(var + LN_EPS) * gamma + beta


def _leaky_relu(x):
    return jnp.maximum(x, LRELU_SLOPE * x)


# ---------------------------------------------------------------------------
# Fused kernel: shared prior_stack + all 2K heads for one batch tile.
#   sv_ref rows: [b1, g1, be1, b2, g2, be2]
#   hv_ref rows: [hb1, hg, hbe]  (head segment order: mu_0..mu_{K-1}, lv_0..lv_{K-1})
# ---------------------------------------------------------------------------
def prior_fused_kernel(w_ref, w1_ref, w2_ref, sv_ref,
                       hw1_ref, hv_ref, hw2_ref, hb2_ref, out_ref):
    twoK = out_ref.shape[0]
    H2 = hw2_ref.shape[1]

    def mm(x, wmat):
        # bf16 x bf16 -> f32 accumulation on the MXU
        return jnp.dot(x, wmat, preferred_element_type=jnp.float32)

    b1, g1, be1 = sv_ref[0:1, :], sv_ref[1:2, :], sv_ref[2:3, :]
    b2, g2, be2 = sv_ref[3:4, :], sv_ref[4:5, :], sv_ref[5:6, :]

    # ---- shared prior_stack (nn.Dropout(0.1) is identity in eval mode) ----
    h = mm(w_ref[...].astype(w1_ref.dtype), w1_ref[...]) + b1
    h = _leaky_relu(_layernorm(h, g1, be1))
    h = mm(h.astype(w2_ref.dtype), w2_ref[...]) + b2
    h = _leaky_relu(_layernorm(h, g2, be2))

    h_bf = h.astype(hw1_ref.dtype)     # cast once, reused by all 2K heads

    # ---- per-head fused: matmul -> LayerNorm -> LeakyReLU -> matmul ----
    # TODO(synk): LayerNorm here spans the full (padded) feature width; if the
    # real unaligned shapes (150/500/200) are zero-padded, the caller must
    # account for the true feature count (demo shapes are 128-aligned).
    for s in range(twoK):              # static, unrolled
        lo = s * H2
        t = mm(h_bf, hw1_ref[:, lo:lo + H2]) + hv_ref[0:1, lo:lo + H2]
        t = _leaky_relu(_layernorm(t, hv_ref[1:2, lo:lo + H2],
                                   hv_ref[2:3, lo:lo + H2]))
        out_ref[s] = mm(t.astype(hw2_ref.dtype), hw2_ref[s]) + hb2_ref[s:s + 1, :]


# ---------------------------------------------------------------------------
# Wrapper
# ---------------------------------------------------------------------------
def _round_up(x, m):
    return (x + m - 1) // m * m


def prior_network_forward(w_sample, params, *, b_tile=128, torch_layout=True):
    """Returns (mu_px, logvar_px).

    torch_layout=True  -> each [batch, x_size, K]   (PyTorch module layout)
    torch_layout=False -> each [K, batch, x_size]   (lane-dense, preferred
                          for further TPU consumption)
    """
    sp, hp = params["stack"], params["heads"]
    B, W = w_sample.shape
    H = sp["w1"].shape[1]
    twoK, H2, X = hp["hw2"].shape       # static shapes, fine under jit
    K = twoK // 2
    KH2T = twoK * H2

    # batch tiling: tile is a multiple of 8 (sublane), capped at b_tile
    BT = min(b_tile, _round_up(B, 8))
    Bp = _round_up(B, BT)
    if Bp != B:
        w_sample = jnp.pad(w_sample, ((0, Bp - B), (0, 0)))
    nb = Bp // BT

    out = pl.pallas_call(
        prior_fused_kernel,
        out_shape=jax.ShapeDtypeStruct((twoK, Bp, X), jnp.float32),
        grid=(nb,),                              # batch tiles only
        in_specs=[
            pl.BlockSpec((BT, W), lambda i: (i, 0)),          # w_sample tile
            pl.BlockSpec((W, H), lambda i: (0, 0)),           # w1 (bf16)
            pl.BlockSpec((H, H), lambda i: (0, 0)),           # w2 (bf16)
            pl.BlockSpec((6, H), lambda i: (0, 0)),           # packed stack vecs
            pl.BlockSpec((H, KH2T), lambda i: (0, 0)),        # hw1 (bf16)
            pl.BlockSpec((3, KH2T), lambda i: (0, 0)),        # packed head vecs
            pl.BlockSpec((twoK, H2, X), lambda i: (0, 0, 0)),  # hw2 (bf16)
            pl.BlockSpec((twoK, X), lambda i: (0, 0)),        # hb2
        ],
        out_specs=pl.BlockSpec((twoK, BT, X), lambda i: (0, i, 0)),
        compiler_params=pltpu.CompilerParams(
            dimension_semantics=("parallel",),
            vmem_limit_bytes=32 * 1024 * 1024),
    )(w_sample, sp["w1"], sp["w2"], sp["vecs"],
      hp["hw1"], hp["vecs"], hp["hw2"], hp["hb2"])

    out = out[:, :B, :]                           # drop batch padding
    if not torch_layout:
        return out[:K], out[K:]
    # transpose to PyTorch [B, X, K] only at the final export boundary
    mu_px = jnp.transpose(out[:K], (1, 2, 0))
    logvar_px = jnp.transpose(out[K:], (1, 2, 0))
    return mu_px, logvar_px


# ---------------------------------------------------------------------------
# Deterministic parameter init (PyTorch-Linear-style uniform fan-in bounds).
# Small bias / LayerNorm vectors are packed into 3 arrays (fewer DMAs).
# ---------------------------------------------------------------------------
def init_params(key, w_size, hidden, x_size, K, weight_dtype=jnp.bfloat16):
    H2 = hidden // 2
    twoK = 2 * K
    ks = jax.random.split(key, 8)

    def unif(k, shape, fan_in):
        bound = 1.0 / float(fan_in) ** 0.5
        return jax.random.uniform(k, shape, jnp.float32, -bound, bound)

    # rows: [b1, g1, be1, b2, g2, be2]
    stack_vecs = jnp.concatenate([
        unif(ks[1], (1, hidden), w_size),
        jnp.ones((1, hidden), jnp.float32),
        jnp.zeros((1, hidden), jnp.float32),
        unif(ks[3], (1, hidden), hidden),
        jnp.ones((1, hidden), jnp.float32),
        jnp.zeros((1, hidden), jnp.float32),
    ], axis=0)

    stack = dict(
        w1=unif(ks[0], (w_size, hidden), w_size).astype(weight_dtype),
        w2=unif(ks[2], (hidden, hidden), hidden).astype(weight_dtype),
        vecs=stack_vecs,
    )

    # rows: [hb1, hg, hbe]; head segments ordered [mu_0..mu_{K-1}, lv_0..lv_{K-1}]
    head_vecs = jnp.concatenate([
        unif(ks[5], (1, twoK * H2), hidden),
        jnp.ones((1, twoK * H2), jnp.float32),
        jnp.zeros((1, twoK * H2), jnp.float32),
    ], axis=0)

    heads = dict(
        hw1=unif(ks[4], (hidden, twoK * H2), hidden).astype(weight_dtype),
        vecs=head_vecs,
        hw2=unif(ks[6], (twoK, H2, x_size), H2).astype(weight_dtype),
        hb2=unif(ks[7], (twoK, x_size), H2),
    )
    return dict(stack=stack, heads=heads)


# ---------------------------------------------------------------------------
# Plain-JAX reference (mirrors the same bf16 weight casts; f32 accumulation)
# ---------------------------------------------------------------------------
def _reference(w, params):
    sp, hp = params["stack"], params["heads"]
    twoK, H2, X = hp["hw2"].shape
    K = twoK // 2
    sv, hv = sp["vecs"], hp["vecs"]

    def ln(x, g, b):
        m = jnp.mean(x, axis=-1, keepdims=True)
        v = jnp.mean((x - m) ** 2, axis=-1, keepdims=True)
        return (x - m) / jnp.sqrt(v + LN_EPS) * g + b

    def lrelu(x):
        return jnp.where(x >= 0, x, LRELU_SLOPE * x)

    def mm(a, wmat):
        return jnp.dot(a.astype(wmat.dtype), wmat,
                       preferred_element_type=jnp.float32)

    h = lrelu(ln(mm(w, sp["w1"]) + sv[0:1], sv[1:2], sv[2:3]))
    h = lrelu(ln(mm(h, sp["w2"]) + sv[3:4], sv[4:5], sv[5:6]))

    outs = []
    for s in range(twoK):
        lo = s * H2
        t = lrelu(ln(mm(h, hp["hw1"][:, lo:lo + H2]) + hv[0:1, lo:lo + H2],
                     hv[1:2, lo:lo + H2], hv[2:3, lo:lo + H2]))
        outs.append(mm(t, hp["hw2"][s]) + hp["hb2"][s:s + 1, :])
    mu = jnp.stack(outs[:K], axis=-1)
    lv = jnp.stack(outs[K:], axis=-1)
    return mu, lv


if __name__ == "__main__":
    # Small, 128-aligned shapes consistent with the module
    # (original defaults 150/500/200/10 would be zero-padded to 256/512/256).
    # B=64 with b_tile=32 exercises the batch-tiled ("parallel") grid.
    B, W_SIZE, HIDDEN, X_SIZE, K = 64, 128, 256, 128, 4

    key = jax.random.PRNGKey(0)
    kp, kx = jax.random.split(key)
    params = init_params(kp, W_SIZE, HIDDEN, X_SIZE, K)
    w_sample = jax.random.normal(kx, (B, W_SIZE), jnp.float32)

    fwd = jax.jit(lambda w, p: prior_network_forward(w, p, b_tile=32))
    mu_px, logvar_px = jax.block_until_ready(fwd(w_sample, params))

    assert mu_px.shape == (B, X_SIZE, K) and logvar_px.shape == (B, X_SIZE, K)

    mu_ref, lv_ref = _reference(w_sample, params)
    assert jnp.allclose(mu_px, mu_ref, rtol=1e-3, atol=1e-3), \
        float(jnp.max(jnp.abs(mu_px - mu_ref)))
    assert jnp.allclose(logvar_px, lv_ref, rtol=1e-3, atol=1e-3), \
        float(jnp.max(jnp.abs(logvar_px - lv_ref)))

    # TODO(synk): training-mode Dropout(0.1) is not implemented (eval-mode identity only).
    print("KERNEL_OK")
</pallas_src>

<mosaic_0001>
module attributes {stable_mosaic.version = 11 : i64} {
  func.func @prior_fused_kernel(%arg0: i32, %arg1: memref<32x128xf32, #tpu.memory_space<vmem>>, %arg2: memref<128x256xbf16, #tpu.memory_space<vmem>>, %arg3: memref<256x256xbf16, #tpu.memory_space<vmem>>, %arg4: memref<6x256xf32, #tpu.memory_space<vmem>>, %arg5: memref<256x1024xbf16, #tpu.memory_space<vmem>>, %arg6: memref<3x1024xf32, #tpu.memory_space<vmem>>, %arg7: memref<8x128x128xbf16, #tpu.memory_space<vmem>>, %arg8: memref<8x128xf32, #tpu.memory_space<vmem>>, %arg9: memref<8x32x128xf32, #tpu.memory_space<vmem>>) attributes {dimension_semantics = [#tpu.dimension_semantics<parallel>], iteration_bounds = array<i64: 2>, scalar_prefetch = 0 : i64, scratch_operands = 0 : i64, tpu.core_type = #tpu.core_type<tc>, window_params = [{transform_indices = @transform_0, window_bounds = array<i64: 32, 128>}, {pipeline_mode = #tpu.pipeline_mode<synchronous>, transform_indices = @transform_1, window_bounds = array<i64: 128, 256>}, {pipeline_mode = #tpu.pipeline_mode<synchronous>, transform_indices = @transform_2, window_bounds = array<i64: 256, 256>}, {pipeline_mode = #tpu.pipeline_mode<synchronous>, transform_indices = @transform_3, window_bounds = array<i64: 6, 256>}, {pipeline_mode = #tpu.pipeline_mode<synchronous>, transform_indices = @transform_4, window_bounds = array<i64: 256, 1024>}, {pipeline_mode = #tpu.pipeline_mode<synchronous>, transform_indices = @transform_5, window_bounds = array<i64: 3, 1024>}, {pipeline_mode = #tpu.pipeline_mode<synchronous>, transform_indices = @transform_6, window_bounds = array<i64: 8, 128, 128>}, {pipeline_mode = #tpu.pipeline_mode<synchronous>, transform_indices = @transform_7, window_bounds = array<i64: 8, 128>}, {transform_indices = @transform_8, window_bounds = array<i64: 8, 32, 128>}]} {
    %c0 = arith.constant 0 : index
    %c0_0 = arith.constant 0 : index
    %0 = vector.load %arg4[%c0, %c0_0] : memref<6x256xf32, #tpu.memory_space<vmem>>, vector<1x256xf32>
    %c1 = arith.constant 1 : index
    %c0_1 = arith.constant 0 : index
    %1 = vector.load %arg4[%c1, %c0_1] : memref<6x256xf32, #tpu.memory_space<vmem>>, vector<1x256xf32>
    %c2 = arith.constant 2 : index
    %c0_2 = arith.constant 0 : index
    %2 = vector.load %arg4[%c2, %c0_2] : memref<6x256xf32, #tpu.memory_space<vmem>>, vector<1x256xf32>
    %c3 = arith.constant 3 : index
    %c0_3 = arith.constant 0 : index
    %3 = vector.load %arg4[%c3, %c0_3] : memref<6x256xf32, #tpu.memory_space<vmem>>, vector<1x256xf32>
    %c4 = arith.constant 4 : index
    %c0_4 = arith.constant 0 : index
    %4 = vector.load %arg4[%c4, %c0_4] : memref<6x256xf32, #tpu.memory_space<vmem>>, vector<1x256xf32>
    %c5 = arith.constant 5 : index
    %c0_5 = arith.constant 0 : index
    %5 = vector.load %arg4[%c5, %c0_5] : memref<6x256xf32, #tpu.memory_space<vmem>>, vector<1x256xf32>
    %c0_6 = arith.constant 0 : index
    %c0_7 = arith.constant 0 : index
    %6 = vector.load %arg1[%c0_6, %c0_7] : memref<32x128xf32, #tpu.memory_space<vmem>>, vector<32x128xf32>
    %7 = arith.truncf %6 : vector<32x128xf32> to vector<32x128xbf16>
    %c0_8 = arith.constant 0 : index
    %c0_9 = arith.constant 0 : index
    %8 = vector.load %arg2[%c0_8, %c0_9] : memref<128x256xbf16, #tpu.memory_space<vmem>>, vector<128x256xbf16>
    %cst = arith.constant dense<0.000000e+00> : vector<32x256xf32>
    %9 = tpu.matmul %7, %8, %cst {dimension_numbers = #tpu.dot_dimension_numbers<[1], [0], [0], [1], [0, 0, 1, 1], [], []>} : vector<32x128xbf16>, vector<128x256xbf16>, vector<32x256xf32> -> vector<32x256xf32>
    %10 = vector.broadcast %0 : vector<1x256xf32> to vector<32x256xf32>
    %11 = arith.addf %9, %10 : vector<32x256xf32>
    %cst_10 = arith.constant dense<0.000000e+00> : vector<32xf32>
    %12 = vector.multi_reduction <add>, %11, %cst_10 [1] : vector<32x256xf32> to vector<32xf32>
    %13 = vector.shape_cast %12 : vector<32xf32> to vector<32x1xf32>
    %cst_11 = arith.constant 2.560000e+02 : f32
    %14 = vector.broadcast %cst_11 : f32 to vector<32x1xf32>
    %15 = arith.divf %13, %14 : vector<32x1xf32>
    %16 = vector.broadcast %15 : vector<32x1xf32> to vector<32x256xf32>
    %17 = arith.subf %11, %16 : vector<32x256xf32>
    %18 = arith.mulf %17, %17 : vector<32x256xf32>
    %cst_12 = arith.constant dense<0.000000e+00> : vector<32xf32>
    %19 = vector.multi_reduction <add>, %18, %cst_12 [1] : vector<32x256xf32> to vector<32xf32>
    %20 = vector.shape_cast %19 : vector<32xf32> to vector<32x1xf32>
    %cst_13 = arith.constant 2.560000e+02 : f32
    %21 = vector.broadcast %cst_13 : f32 to vector<32x1xf32>
    %22 = arith.divf %20, %21 : vector<32x1xf32>
    %cst_14 = arith.constant 9.99999974E-6 : f32
    %23 = vector.broadcast %cst_14 : f32 to vector<32x1xf32>
    %24 = arith.addf %22, %23 : vector<32x1xf32>
    %25 = math.rsqrt %24 : vector<32x1xf32>
    %26 = vector.broadcast %25 : vector<32x1xf32> to vector<32x256xf32>
    %27 = arith.mulf %17, %26 : vector<32x256xf32>
    %28 = vector.broadcast %1 : vector<1x256xf32> to vector<32x256xf32>
    %29 = arith.mulf %27, %28 : vector<32x256xf32>
    %30 = vector.broadcast %2 : vector<1x256xf32> to vector<32x256xf32>
    %31 = arith.addf %29, %30 : vector<32x256xf32>
    %cst_15 = arith.constant 2.000000e-01 : f32
    %32 = vector.broadcast %cst_15 : f32 to vector<32x256xf32>
    %33 = arith.mulf %32, %31 : vector<32x256xf32>
    %34 = arith.maximumf %31, %33 : vector<32x256xf32>
    %35 = arith.truncf %34 : vector<32x256xf32> to vector<32x256xbf16>
    %c0_16 = arith.constant 0 : index
    %c0_17 = arith.constant 0 : index
    %36 = vector.load %arg3[%c0_16, %c0_17] : memref<256x256xbf16, #tpu.memory_space<vmem>>, vector<256x256xbf16>
    %cst_18 = arith.constant dense<0.000000e+00> : vector<32x256xf32>
    %37 = tpu.matmul %35, %36, %cst_18 {dimension_numbers = #tpu.dot_dimension_numbers<[1], [0], [0], [1], [0, 0, 1, 1], [], []>} : vector<32x256xbf16>, vector<256x256xbf16>, vector<32x256xf32> -> vector<32x256xf32>
    %38 = vector.broadcast %3 : vector<1x256xf32> to vector<32x256xf32>
    %39 = arith.addf %37, %38 : vector<32x256xf32>
    %cst_19 = arith.constant dense<0.000000e+00> : vector<32xf32>
    %40 = vector.multi_reduction <add>, %39, %cst_19 [1] : vector<32x256xf32> to vector<32xf32>
    %41 = vector.shape_cast %40 : vector<32xf32> to vector<32x1xf32>
    %cst_20 = arith.constant 2.560000e+02 : f32
    %42 = vector.broadcast %cst_20 : f32 to vector<32x1xf32>
    %43 = arith.divf %41, %42 : vector<32x1xf32>
    %44 = vector.broadcast %43 : vector<32x1xf32> to vector<32x256xf32>
    %45 = arith.subf %39, %44 : vector<32x256xf32>
    %46 = arith.mulf %45, %45 : vector<32x256xf32>
    %cst_21 = arith.constant dense<0.000000e+00> : vector<32xf32>
    %47 = vector.multi_reduction <add>, %46, %cst_21 [1] : vector<32x256xf32> to vector<32xf32>
    %48 = vector.shape_cast %47 : vector<32xf32> to vector<32x1xf32>
    %cst_22 = arith.constant 2.560000e+02 : f32
    %49 = vector.broadcast %cst_22 : f32 to vector<32x1xf32>
    %50 = arith.divf %48, %49 : vector<32x1xf32>
    %cst_23 = arith.constant 9.99999974E-6 : f32
    %51 = vector.broadcast %cst_23 : f32 to vector<32x1xf32>
    %52 = arith.addf %50, %51 : vector<32x1xf32>
    %53 = math.rsqrt %52 : vector<32x1xf32>
    %54 = vector.broadcast %53 : vector<32x1xf32> to vector<32x256xf32>
    %55 = arith.mulf %45, %54 : vector<32x256xf32>
    %56 = vector.broadcast %4 : vector<1x256xf32> to vector<32x256xf32>
    %57 = arith.mulf %55, %56 : vector<32x256xf32>
    %58 = vector.broadcast %5 : vector<1x256xf32> to vector<32x256xf32>
    %59 = arith.addf %57, %58 : vector<32x256xf32>
    %cst_24 = arith.constant 2.000000e-01 : f32
    %60 = vector.broadcast %cst_24 : f32 to vector<32x256xf32>
    %61 = arith.mulf %60, %59 : vector<32x256xf32>
    %62 = arith.maximumf %59, %61 : vector<32x256xf32>
    %63 = arith.truncf %62 : vector<32x256xf32> to vector<32x256xbf16>
    %c0_25 = arith.constant 0 : index
    %c0_26 = arith.constant 0 : index
    %64 = vector.load %arg5[%c0_25, %c0_26] : memref<256x1024xbf16, #tpu.memory_space<vmem>>, vector<256x128xbf16>
    %cst_27 = arith.constant dense<0.000000e+00> : vector<32x128xf32>
    %65 = tpu.matmul %63, %64, %cst_27 {dimension_numbers = #tpu.dot_dimension_numbers<[1], [0], [0], [1], [0, 0, 1, 1], [], []>} : vector<32x256xbf16>, vector<256x128xbf16>, vector<32x128xf32> -> vector<32x128xf32>
    %c0_28 = arith.constant 0 : index
    %c0_29 = arith.constant 0 : index
    %66 = vector.load %arg6[%c0_28, %c0_29] : memref<3x1024xf32, #tpu.memory_space<vmem>>, vector<1x128xf32>
    %67 = vector.broadcast %66 : vector<1x128xf32> to vector<32x128xf32>
    %68 = arith.addf %65, %67 : vector<32x128xf32>
    %c1_30 = arith.constant 1 : index
    %c0_31 = arith.constant 0 : index
    %69 = vector.load %arg6[%c1_30, %c0_31] : memref<3x1024xf32, #tpu.memory_space<vmem>>, vector<1x128xf32>
    %c2_32 = arith.constant 2 : index
    %c0_33 = arith.constant 0 : index
    %70 = vector.load %arg6[%c2_32, %c0_33] : memref<3x1024xf32, #tpu.memory_space<vmem>>, vector<1x128xf32>
    %cst_34 = arith.constant dense<0.000000e+00> : vector<32xf32>
    %71 = vector.multi_reduction <add>, %68, %cst_34 [1] : vector<32x128xf32> to vector<32xf32>
    %72 = vector.shape_cast %71 : vector<32xf32> to vector<32x1xf32>
    %cst_35 = arith.constant 1.280000e+02 : f32
    %73 = vector.broadcast %cst_35 : f32 to vector<32x1xf32>
    %74 = arith.divf %72, %73 : vector<32x1xf32>
    %75 = vector.broadcast %74 : vector<32x1xf32> to vector<32x128xf32>
    %76 = arith.subf %68, %75 : vector<32x128xf32>
    %77 = arith.mulf %76, %76 : vector<32x128xf32>
    %cst_36 = arith.constant dense<0.000000e+00> : vector<32xf32>
    %78 = vector.multi_reduction <add>, %77, %cst_36 [1] : vector<32x128xf32> to vector<32xf32>
    %79 = vector.shape_cast %78 : vector<32xf32> to vector<32x1xf32>
    %cst_37 = arith.constant 1.280000e+02 : f32
    %80 = vector.broadcast %cst_37 : f32 to vector<32x1xf32>
    %81 = arith.divf %79, %80 : vector<32x1xf32>
    %cst_38 = arith.constant 9.99999974E-6 : f32
    %82 = vector.broadcast %cst_38 : f32 to vector<32x1xf32>
    %83 = arith.addf %81, %82 : vector<32x1xf32>
    %84 = math.rsqrt %83 : vector<32x1xf32>
    %85 = vector.broadcast %84 : vector<32x1xf32> to vector<32x128xf32>
    %86 = arith.mulf %76, %85 : vector<32x128xf32>
    %87 = vector.broadcast %69 : vector<1x128xf32> to vector<32x128xf32>
    %88 = arith.mulf %86, %87 : vector<32x128xf32>
    %89 = vector.broadcast %70 : vector<1x128xf32> to vector<32x128xf32>
    %90 = arith.addf %88, %89 : vector<32x128xf32>
    %cst_39 = arith.constant 2.000000e-01 : f32
    %91 = vector.broadcast %cst_39 : f32 to vector<32x128xf32>
    %92 = arith.mulf %91, %90 : vector<32x128xf32>
    %93 = arith.maximumf %90, %92 : vector<32x128xf32>
    %94 = arith.truncf %93 : vector<32x128xf32> to vector<32x128xbf16>
    %c0_40 = arith.constant 0 : index
    %c0_41 = arith.constant 0 : index
    %c0_42 = arith.constant 0 : index
    %95 = vector.load %arg7[%c0_40, %c0_41, %c0_42] : memref<8x128x128xbf16, #tpu.memory_space<vmem>>, vector<1x128x128xbf16>
    %96 = vector.shape_cast %95 : vector<1x128x128xbf16> to vector<128x128xbf16>
    %cst_43 = arith.constant dense<0.000000e+00> : vector<32x128xf32>
    %97 = tpu.matmul %94, %96, %cst_43 {dimension_numbers = #tpu.dot_dimension_numbers<[1], [0], [0], [1], [0, 0, 1, 1], [], []>} : vector<32x128xbf16>, vector<128x128xbf16>, vector<32x128xf32> -> vector<32x128xf32>
    %c0_44 = arith.constant 0 : index
    %c0_45 = arith.constant 0 : index
    %98 = vector.load %arg8[%c0_44, %c0_45] : memref<8x128xf32, #tpu.memory_space<vmem>>, vector<1x128xf32>
    %99 = vector.broadcast %98 : vector<1x128xf32> to vector<32x128xf32>
    %100 = arith.addf %97, %99 : vector<32x128xf32>
    %c0_46 = arith.constant 0 : index
    %c0_47 = arith.constant 0 : index
    %c0_48 = arith.constant 0 : index
    %101 = vector.load %arg9[%c0_46, %c0_47, %c0_48] : memref<8x32x128xf32, #tpu.memory_space<vmem>>, vector<1x32x128xf32>
    %102 = vector.shape_cast %101 : vector<1x32x128xf32> to vector<32x128xf32>
    %103 = vector.shape_cast %100 : vector<32x128xf32> to vector<1x32x128xf32>
    tpu.vector_store %arg9[%c0_46, %c0_47, %c0_48], %103 {strides = array<i32>} : memref<8x32x128xf32, #tpu.memory_space<vmem>>, vector<1x32x128xf32>,
    %c0_49 = arith.constant 0 : index
    %c128 = arith.constant 128 : index
    %104 = vector.load %arg5[%c0_49, %c128] : memref<256x1024xbf16, #tpu.memory_space<vmem>>, vector<256x128xbf16>
    %cst_50 = arith.constant dense<0.000000e+00> : vector<32x128xf32>
    %105 = tpu.matmul %63, %104, %cst_50 {dimension_numbers = #tpu.dot_dimension_numbers<[1], [0], [0], [1], [0, 0, 1, 1], [], []>} : vector<32x256xbf16>, vector<256x128xbf16>, vector<32x128xf32> -> vector<32x128xf32>
    %c0_51 = arith.constant 0 : index
    %c128_52 = arith.constant 128 : index
    %106 = vector.load %arg6[%c0_51, %c128_52] : memref<3x1024xf32, #tpu.memory_space<vmem>>, vector<1x128xf32>
    %107 = vector.broadcast %106 : vector<1x128xf32> to vector<32x128xf32>
    %108 = arith.addf %105, %107 : vector<32x128xf32>
    %c1_53 = arith.constant 1 : index
    %c128_54 = arith.constant 128 : index
    %109 = vector.load %arg6[%c1_53, %c128_54] : memref<3x1024xf32, #tpu.memory_space<vmem>>, vector<1x128xf32>
    %c2_55 = arith.constant 2 : index
    %c128_56 = arith.constant 128 : index
    %110 = vector.load %arg6[%c2_55, %c128_56] : memref<3x1024xf32, #tpu.memory_space<vmem>>, vector<1x128xf32>
    %cst_57 = arith.constant dense<0.000000e+00> : vector<32xf32>
    %111 = vector.multi_reduction <add>, %108, %cst_57 [1] : vector<32x128xf32> to vector<32xf32>
    %112 = vector.shape_cast %111 : vector<32xf32> to vector<32x1xf32>
    %cst_58 = arith.constant 1.280000e+02 : f32
    %113 = vector.broadcast %cst_58 : f32 to vector<32x1xf32>
    %114 = arith.divf %112, %113 : vector<32x1xf32>
    %115 = vector.broadcast %114 : vector<32x1xf32> to vector<32x128xf32>
    %116 = arith.subf %108, %115 : vector<32x128xf32>
    %117 = arith.mulf %116, %116 : vector<32x128xf32>
    %cst_59 = arith.constant dense<0.000000e+00> : vector<32xf32>
    %118 = vector.multi_reduction <add>, %117, %cst_59 [1] : vector<32x128xf32> to vector<32xf32>
    %119 = vector.shape_cast %118 : vector<32xf32> to vector<32x1xf32>
    %cst_60 = arith.constant 1.280000e+02 : f32
    %120 = vector.broadcast %cst_60 : f32 to vector<32x1xf32>
    %121 = arith.divf %119, %120 : vector<32x1xf32>
    %cst_61 = arith.constant 9.99999974E-6 : f32
    %122 = vector.broadcast %cst_61 : f32 to vector<32x1xf32>
    %123 = arith.addf %121, %122 : vector<32x1xf32>
    %124 = math.rsqrt %123 : vector<32x1xf32>
    %125 = vector.broadcast %124 : vector<32x1xf32> to vector<32x128xf32>
    %126 = arith.mulf %116, %125 : vector<32x128xf32>
    %127 = vector.broadcast %109 : vector<1x128xf32> to vector<32x128xf32>
    %128 = arith.mulf %126, %127 : vector<32x128xf32>
    %129 = vector.broadcast %110 : vector<1x128xf32> to vector<32x128xf32>
    %130 = arith.addf %128, %129 : vector<32x128xf32>
    %cst_62 = arith.constant 2.000000e-01 : f32
    %131 = vector.broadcast %cst_62 : f32 to vector<32x128xf32>
    %132 = arith.mulf %131, %130 : vector<32x128xf32>
    %133 = arith.maximumf %130, %132 : vector<32x128xf32>
    %134 = arith.truncf %133 : vector<32x128xf32> to vector<32x128xbf16>
    %c1_63 = arith.constant 1 : index
    %c0_64 = arith.constant 0 : index
    %c0_65 = arith.constant 0 : index
    %135 = vector.load %arg7[%c1_63, %c0_64, %c0_65] : memref<8x128x128xbf16, #tpu.memory_space<vmem>>, vector<1x128x128xbf16>
    %136 = vector.shape_cast %135 : vector<1x128x128xbf16> to vector<128x128xbf16>
    %cst_66 = arith.constant dense<0.000000e+00> : vector<32x128xf32>
    %137 = tpu.matmul %134, %136, %cst_66 {dimension_numbers = #tpu.dot_dimension_numbers<[1], [0], [0], [1], [0, 0, 1, 1], [], []>} : vector<32x128xbf16>, vector<128x128xbf16>, vector<32x128xf32> -> vector<32x128xf32>
    %c1_67 = arith.constant 1 : index
    %c0_68 = arith.constant 0 : index
    %138 = vector.load %arg8[%c1_67, %c0_68] : memref<8x128xf32, #tpu.memory_space<vmem>>, vector<1x128xf32>
    %139 = vector.broadcast %138 : vector<1x128xf32> to vector<32x128xf32>
    %140 = arith.addf %137, %139 : vector<32x128xf32>
    %c1_69 = arith.constant 1 : index
    %c0_70 = arith.constant 0 : index
    %c0_71 = arith.constant 0 : index
    %141 = vector.load %arg9[%c1_69, %c0_70, %c0_71] : memref<8x32x128xf32, #tpu.memory_space<vmem>>, vector<1x32x128xf32>
    %142 = vector.shape_cast %141 : vector<1x32x128xf32> to vector<32x128xf32>
    %143 = vector.shape_cast %140 : vector<32x128xf32> to vector<1x32x128xf32>
    tpu.vector_store %arg9[%c1_69, %c0_70, %c0_71], %143 {strides = array<i32>} : memref<8x32x128xf32, #tpu.memory_space<vmem>>, vector<1x32x128xf32>,
    %c0_72 = arith.constant 0 : index
    %c256 = arith.constant 256 : index
    %144 = vector.load %arg5[%c0_72, %c256] : memref<256x1024xbf16, #tpu.memory_space<vmem>>, vector<256x128xbf16>
    %cst_73 = arith.constant dense<0.000000e+00> : vector<32x128xf32>
    %145 = tpu.matmul %63, %144, %cst_73 {dimension_numbers = #tpu.dot_dimension_numbers<[1], [0], [0], [1], [0, 0, 1, 1], [], []>} : vector<32x256xbf16>, vector<256x128xbf16>, vector<32x128xf32> -> vector<32x128xf32>
    %c0_74 = arith.constant 0 : index
    %c256_75 = arith.constant 256 : index
    %146 = vector.load %arg6[%c0_74, %c256_75] : memref<3x1024xf32, #tpu.memory_space<vmem>>, vector<1x128xf32>
    %147 = vector.broadcast %146 : vector<1x128xf32> to vector<32x128xf32>
    %148 = arith.addf %145, %147 : vector<32x128xf32>
    %c1_76 = arith.constant 1 : index
    %c256_77 = arith.constant 256 : index
    %149 = vector.load %arg6[%c1_76, %c256_77] : memref<3x1024xf32, #tpu.memory_space<vmem>>, vector<1x128xf32>
    %c2_78 = arith.constant 2 : index
    %c256_79 = arith.constant 256 : index
    %150 = vector.load %arg6[%c2_78, %c256_79] : memref<3x1024xf32, #tpu.memory_space<vmem>>, vector<1x128xf32>
    %cst_80 = arith.constant dense<0.000000e+00> : vector<32xf32>
    %151 = vector.multi_reduction <add>, %148, %cst_80 [1] : vector<32x128xf32> to vector<32xf32>
    %152 = vector.shape_cast %151 : vector<32xf32> to vector<32x1xf32>
    %cst_81 = arith.constant 1.280000e+02 : f32
    %153 = vector.broadcast %cst_81 : f32 to vector<32x1xf32>
    %154 = arith.divf %152, %153 : vector<32x1xf32>
    %155 = vector.broadcast %154 : vector<32x1xf32> to vector<32x128xf32>
    %156 = arith.subf %148, %155 : vector<32x128xf32>
    %157 = arith.mulf %156, %156 : vector<32x128xf32>
    %cst_82 = arith.constant dense<0.000000e+00> : vector<32xf32>
    %158 = vector.multi_reduction <add>, %157, %cst_82 [1] : vector<32x128xf32> to vector<32xf32>
    %159 = vector.shape_cast %158 : vector<32xf32> to vector<32x1xf32>
    %cst_83 = arith.constant 1.280000e+02 : f32
    %160 = vector.broadcast %cst_83 : f32 to vector<32x1xf32>
    %161 = arith.divf %159, %160 : vector<32x1xf32>
    %cst_84 = arith.constant 9.99999974E-6 : f32
    %162 = vector.broadcast %cst_84 : f32 to vector<32x1xf32>
    %163 = arith.addf %161, %162 : vector<32x1xf32>
    %164 = math.rsqrt %163 : vector<32x1xf32>
    %165 = vector.broadcast %164 : vector<32x1xf32> to vector<32x128xf32>
    %166 = arith.mulf %156, %165 : vector<32x128xf32>
    %167 = vector.broadcast %149 : vector<1x128xf32> to vector<32x128xf32>
    %168 = arith.mulf %166, %167 : vector<32x128xf32>
    %169 = vector.broadcast %150 : vector<1x128xf32> to vector<32x128xf32>
    %170 = arith.addf %168, %169 : vector<32x128xf32>
    %cst_85 = arith.constant 2.000000e-01 : f32
    %171 = vector.broadcast %cst_85 : f32 to vector<32x128xf32>
    %172 = arith.mulf %171, %170 : vector<32x128xf32>
    %173 = arith.maximumf %170, %172 : vector<32x128xf32>
    %174 = arith.truncf %173 : vector<32x128xf32> to vector<32x128xbf16>
    %c2_86 = arith.constant 2 : index
    %c0_87 = arith.constant 0 : index
    %c0_88 = arith.constant 0 : index
    %175 = vector.load %arg7[%c2_86, %c0_87, %c0_88] : memref<8x128x128xbf16, #tpu.memory_space<vmem>>, vector<1x128x128xbf16>
    %176 = vector.shape_cast %175 : vector<1x128x128xbf16> to vector<128x128xbf16>
    %cst_89 = arith.constant dense<0.000000e+00> : vector<32x128xf32>
    %177 = tpu.matmul %174, %176, %cst_89 {dimension_numbers = #tpu.dot_dimension_numbers<[1], [0], [0], [1], [0, 0, 1, 1], [], []>} : vector<32x128xbf16>, vector<128x128xbf16>, vector<32x128xf32> -> vector<32x128xf32>
    %c2_90 = arith.constant 2 : index
    %c0_91 = arith.constant 0 : index
    %178 = vector.load %arg8[%c2_90, %c0_91] : memref<8x128xf32, #tpu.memory_space<vmem>>, vector<1x128xf32>
    %179 = vector.broadcast %178 : vector<1x128xf32> to vector<32x128xf32>
    %180 = arith.addf %177, %179 : vector<32x128xf32>
    %c2_92 = arith.constant 2 : index
    %c0_93 = arith.constant 0 : index
    %c0_94 = arith.constant 0 : index
    %181 = vector.load %arg9[%c2_92, %c0_93, %c0_94] : memref<8x32x128xf32, #tpu.memory_space<vmem>>, vector<1x32x128xf32>
    %182 = vector.shape_cast %181 : vector<1x32x128xf32> to vector<32x128xf32>
    %183 = vector.shape_cast %180 : vector<32x128xf32> to vector<1x32x128xf32>
    tpu.vector_store %arg9[%c2_92, %c0_93, %c0_94], %183 {strides = array<i32>} : memref<8x32x128xf32, #tpu.memory_space<vmem>>, vector<1x32x128xf32>,
    %c0_95 = arith.constant 0 : index
    %c384 = arith.constant 384 : index
    %184 = vector.load %arg5[%c0_95, %c384] : memref<256x1024xbf16, #tpu.memory_space<vmem>>, vector<256x128xbf16>
    %cst_96 = arith.constant dense<0.000000e+00> : vector<32x128xf32>
    %185 = tpu.matmul %63, %184, %cst_96 {dimension_numbers = #tpu.dot_dimension_numbers<[1], [0], [0], [1], [0, 0, 1, 1], [], []>} : vector<32x256xbf16>, vector<256x128xbf16>, vector<32x128xf32> -> vector<32x128xf32>
    %c0_97 = arith.constant 0 : index
    %c384_98 = arith.constant 384 : index
    %186 = vector.load %arg6[%c0_97, %c384_98] : memref<3x1024xf32, #tpu.memory_space<vmem>>, vector<1x128xf32>
    %187 = vector.broadcast %186 : vector<1x128xf32> to vector<32x128xf32>
    %188 = arith.addf %185, %187 : vector<32x128xf32>
    %c1_99 = arith.constant 1 : index
    %c384_100 = arith.constant 384 : index
    %189 = vector.load %arg6[%c1_99, %c384_100] : memref<3x1024xf32, #tpu.memory_space<vmem>>, vector<1x128xf32>
    %c2_101 = arith.constant 2 : index
    %c384_102 = arith.constant 384 : index
    %190 = vector.load %arg6[%c2_101, %c384_102] : memref<3x1024xf32, #tpu.memory_space<vmem>>, vector<1x128xf32>
    %cst_103 = arith.constant dense<0.000000e+00> : vector<32xf32>
    %191 = vector.multi_reduction <add>, %188, %cst_103 [1] : vector<32x128xf32> to vector<32xf32>
    %192 = vector.shape_cast %191 : vector<32xf32> to vector<32x1xf32>
    %cst_104 = arith.constant 1.280000e+02 : f32
    %193 = vector.broadcast %cst_104 : f32 to vector<32x1xf32>
    %194 = arith.divf %192, %193 : vector<32x1xf32>
    %195 = vector.broadcast %194 : vector<32x1xf32> to vector<32x128xf32>
    %196 = arith.subf %188, %195 : vector<32x128xf32>
    %197 = arith.mulf %196, %196 : vector<32x128xf32>
    %cst_105 = arith.constant dense<0.000000e+00> : vector<32xf32>
    %198 = vector.multi_reduction <add>, %197, %cst_105 [1] : vector<32x128xf32> to vector<32xf32>
    %199 = vector.shape_cast %198 : vector<32xf32> to vector<32x1xf32>
    %cst_106 = arith.constant 1.280000e+02 : f32
    %200 = vector.broadcast %cst_106 : f32 to vector<32x1xf32>
    %201 = arith.divf %199, %200 : vector<32x1xf32>
    %cst_107 = arith.constant 9.99999974E-6 : f32
    %202 = vector.broadcast %cst_107 : f32 to vector<32x1xf32>
    %203 = arith.addf %201, %202 : vector<32x1xf32>
    %204 = math.rsqrt %203 : vector<32x1xf32>
    %205 = vector.broadcast %204 : vector<32x1xf32> to vector<32x128xf32>
    %206 = arith.mulf %196, %205 : vector<32x128xf32>
    %207 = vector.broadcast %189 : vector<1x128xf32> to vector<32x128xf32>
    %208 = arith.mulf %206, %207 : vector<32x128xf32>
    %209 = vector.broadcast %190 : vector<1x128xf32> to vector<32x128xf32>
    %210 = arith.addf %208, %209 : vector<32x128xf32>
    %cst_108 = arith.constant 2.000000e-01 : f32
    %211 = vector.broadcast %cst_108 : f32 to vector<32x128xf32>
    %212 = arith.mulf %211, %210 : vector<32x128xf32>
    %213 = arith.maximumf %210, %212 : vector<32x128xf32>
    %214 = arith.truncf %213 : vector<32x128xf32> to vector<32x128xbf16>
    %c3_109 = arith.constant 3 : index
    %c0_110 = arith.constant 0 : index
    %c0_111 = arith.constant 0 : index
    %215 = vector.load %arg7[%c3_109, %c0_110, %c0_111] : memref<8x128x128xbf16, #tpu.memory_space<vmem>>, vector<1x128x128xbf16>
    %216 = vector.shape_cast %215 : vector<1x128x128xbf16> to vector<128x128xbf16>
    %cst_112 = arith.constant dense<0.000000e+00> : vector<32x128xf32>
    %217 = tpu.matmul %214, %216, %cst_112 {dimension_numbers = #tpu.dot_dimension_numbers<[1], [0], [0], [1], [0, 0, 1, 1], [], []>} : vector<32x128xbf16>, vector<128x128xbf16>, vector<32x128xf32> -> vector<32x128xf32>
    %c3_113 = arith.constant 3 : index
    %c0_114 = arith.constant 0 : index
    %218 = vector.load %arg8[%c3_113, %c0_114] : memref<8x128xf32, #tpu.memory_space<vmem>>, vector<1x128xf32>
    %219 = vector.broadcast %218 : vector<1x128xf32> to vector<32x128xf32>
    %220 = arith.addf %217, %219 : vector<32x128xf32>
    %c3_115 = arith.constant 3 : index
    %c0_116 = arith.constant 0 : index
    %c0_117 = arith.constant 0 : index
    %221 = vector.load %arg9[%c3_115, %c0_116, %c0_117] : memref<8x32x128xf32, #tpu.memory_space<vmem>>, vector<1x32x128xf32>
    %222 = vector.shape_cast %221 : vector<1x32x128xf32> to vector<32x128xf32>
    %223 = vector.shape_cast %220 : vector<32x128xf32> to vector<1x32x128xf32>
    tpu.vector_store %arg9[%c3_115, %c0_116, %c0_117], %223 {strides = array<i32>} : memref<8x32x128xf32, #tpu.memory_space<vmem>>, vector<1x32x128xf32>,
    %c0_118 = arith.constant 0 : index
    %c512 = arith.constant 512 : index
    %224 = vector.load %arg5[%c0_118, %c512] : memref<256x1024xbf16, #tpu.memory_space<vmem>>, vector<256x128xbf16>
    %cst_119 = arith.constant dense<0.000000e+00> : vector<32x128xf32>
    %225 = tpu.matmul %63, %224, %cst_119 {dimension_numbers = #tpu.dot_dimension_numbers<[1], [0], [0], [1], [0, 0, 1, 1], [], []>} : vector<32x256xbf16>, vector<256x128xbf16>, vector<32x128xf32> -> vector<32x128xf32>
    %c0_120 = arith.constant 0 : index
    %c512_121 = arith.constant 512 : index
    %226 = vector.load %arg6[%c0_120, %c512_121] : memref<3x1024xf32, #tpu.memory_space<vmem>>, vector<1x128xf32>
    %227 = vector.broadcast %226 : vector<1x128xf32> to vector<32x128xf32>
    %228 = arith.addf %225, %227 : vector<32x128xf32>
    %c1_122 = arith.constant 1 : index
    %c512_123 = arith.constant 512 : index
    %229 = vector.load %arg6[%c1_122, %c512_123] : memref<3x1024xf32, #tpu.memory_space<vmem>>, vector<1x128xf32>
    %c2_124 = arith.constant 2 : index
    %c512_125 = arith.constant 512 : index
    %230 = vector.load %arg6[%c2_124, %c512_125] : memref<3x1024xf32, #tpu.memory_space<vmem>>, vector<1x128xf32>
    %cst_126 = arith.constant dense<0.000000e+00> : vector<32xf32>
    %231 = vector.multi_reduction <add>, %228, %cst_126 [1] : vector<32x128xf32> to vector<32xf32>
    %232 = vector.shape_cast %231 : vector<32xf32> to vector<32x1xf32>
    %cst_127 = arith.constant 1.280000e+02 : f32
    %233 = vector.broadcast %cst_127 : f32 to vector<32x1xf32>
    %234 = arith.divf %232, %233 : vector<32x1xf32>
    %235 = vector.broadcast %234 : vector<32x1xf32> to vector<32x128xf32>
    %236 = arith.subf %228, %235 : vector<32x128xf32>
    %237 = arith.mulf %236, %236 : vector<32x128xf32>
    %cst_128 = arith.constant dense<0.000000e+00> : vector<32xf32>
    %238 = vector.multi_reduction <add>, %237, %cst_128 [1] : vector<32x128xf32> to vector<32xf32>
    %239 = vector.shape_cast %238 : vector<32xf32> to vector<32x1xf32>
    %cst_129 = arith.constant 1.280000e+02 : f32
    %240 = vector.broadcast %cst_129 : f32 to vector<32x1xf32>
    %241 = arith.divf %239, %240 : vector<32x1xf32>
    %cst_130 = arith.constant 9.99999974E-6 : f32
    %242 = vector.broadcast %cst_130 : f32 to vector<32x1xf32>
    %243 = arith.addf %241, %242 : vector<32x1xf32>
    %244 = math.rsqrt %243 : vector<32x1xf32>
    %245 = vector.broadcast %244 : vector<32x1xf32> to vector<32x128xf32>
    %246 = arith.mulf %236, %245 : vector<32x128xf32>
    %247 = vector.broadcast %229 : vector<1x128xf32> to vector<32x128xf32>
    %248 = arith.mulf %246, %247 : vector<32x128xf32>
    %249 = vector.broadcast %230 : vector<1x128xf32> to vector<32x128xf32>
    %250 = arith.addf %248, %249 : vector<32x128xf32>
    %cst_131 = arith.constant 2.000000e-01 : f32
    %251 = vector.broadcast %cst_131 : f32 to vector<32x128xf32>
    %252 = arith.mulf %251, %250 : vector<32x128xf32>
    %253 = arith.maximumf %250, %252 : vector<32x128xf32>
    %254 = arith.truncf %253 : vector<32x128xf32> to vector<32x128xbf16>
    %c4_132 = arith.constant 4 : index
    %c0_133 = arith.constant 0 : index
    %c0_134 = arith.constant 0 : index
    %255 = vector.load %arg7[%c4_132, %c0_133, %c0_134] : memref<8x128x128xbf16, #tpu.memory_space<vmem>>, vector<1x128x128xbf16>
    %256 = vector.shape_cast %255 : vector<1x128x128xbf16> to vector<128x128xbf16>
    %cst_135 = arith.constant dense<0.000000e+00> : vector<32x128xf32>
    %257 = tpu.matmul %254, %256, %cst_135 {dimension_numbers = #tpu.dot_dimension_numbers<[1], [0], [0], [1], [0, 0, 1, 1], [], []>} : vector<32x128xbf16>, vector<128x128xbf16>, vector<32x128xf32> -> vector<32x128xf32>
    %c4_136 = arith.constant 4 : index
    %c0_137 = arith.constant 0 : index
    %258 = vector.load %arg8[%c4_136, %c0_137] : memref<8x128xf32, #tpu.memory_space<vmem>>, vector<1x128xf32>
    %259 = vector.broadcast %258 : vector<1x128xf32> to vector<32x128xf32>
    %260 = arith.addf %257, %259 : vector<32x128xf32>
    %c4_138 = arith.constant 4 : index
    %c0_139 = arith.constant 0 : index
    %c0_140 = arith.constant 0 : index
    %261 = vector.load %arg9[%c4_138, %c0_139, %c0_140] : memref<8x32x128xf32, #tpu.memory_space<vmem>>, vector<1x32x128xf32>
    %262 = vector.shape_cast %261 : vector<1x32x128xf32> to vector<32x128xf32>
    %263 = vector.shape_cast %260 : vector<32x128xf32> to vector<1x32x128xf32>
    tpu.vector_store %arg9[%c4_138, %c0_139, %c0_140], %263 {strides = array<i32>} : memref<8x32x128xf32, #tpu.memory_space<vmem>>, vector<1x32x128xf32>,
    %c0_141 = arith.constant 0 : index
    %c640 = arith.constant 640 : index
    %264 = vector.load %arg5[%c0_141, %c640] : memref<256x1024xbf16, #tpu.memory_space<vmem>>, vector<256x128xbf16>
    %cst_142 = arith.constant dense<0.000000e+00> : vector<32x128xf32>
    %265 = tpu.matmul %63, %264, %cst_142 {dimension_numbers = #tpu.dot_dimension_numbers<[1], [0], [0], [1], [0, 0, 1, 1], [], []>} : vector<32x256xbf16>, vector<256x128xbf16>, vector<32x128xf32> -> vector<32x128xf32>
    %c0_143 = arith.constant 0 : index
    %c640_144 = arith.constant 640 : index
    %266 = vector.load %arg6[%c0_143, %c640_144] : memref<3x1024xf32, #tpu.memory_space<vmem>>, vector<1x128xf32>
    %267 = vector.broadcast %266 : vector<1x128xf32> to vector<32x128xf32>
    %268 = arith.addf %265, %267 : vector<32x128xf32>
    %c1_145 = arith.constant 1 : index
    %c640_146 = arith.constant 640 : index
    %269 = vector.load %arg6[%c1_145, %c640_146] : memref<3x1024xf32, #tpu.memory_space<vmem>>, vector<1x128xf32>
    %c2_147 = arith.constant 2 : index
    %c640_148 = arith.constant 640 : index
    %270 = vector.load %arg6[%c2_147, %c640_148] : memref<3x1024xf32, #tpu.memory_space<vmem>>, vector<1x128xf32>
    %cst_149 = arith.constant dense<0.000000e+00> : vector<32xf32>
    %271 = vector.multi_reduction <add>, %268, %cst_149 [1] : vector<32x128xf32> to vector<32xf32>
    %272 = vector.shape_cast %271 : vector<32xf32> to vector<32x1xf32>
    %cst_150 = arith.constant 1.280000e+02 : f32
    %273 = vector.broadcast %cst_150 : f32 to vector<32x1xf32>
    %274 = arith.divf %272, %273 : vector<32x1xf32>
    %275 = vector.broadcast %274 : vector<32x1xf32> to vector<32x128xf32>
    %276 = arith.subf %268, %275 : vector<32x128xf32>
    %277 = arith.mulf %276, %276 : vector<32x128xf32>
    %cst_151 = arith.constant dense<0.000000e+00> : vector<32xf32>
    %278 = vector.multi_reduction <add>, %277, %cst_151 [1] : vector<32x128xf32> to vector<32xf32>
    %279 = vector.shape_cast %278 : vector<32xf32> to vector<32x1xf32>
    %cst_152 = arith.constant 1.280000e+02 : f32
    %280 = vector.broadcast %cst_152 : f32 to vector<32x1xf32>
    %281 = arith.divf %279, %280 : vector<32x1xf32>
    %cst_153 = arith.constant 9.99999974E-6 : f32
    %282 = vector.broadcast %cst_153 : f32 to vector<32x1xf32>
    %283 = arith.addf %281, %282 : vector<32x1xf32>
    %284 = math.rsqrt %283 : vector<32x1xf32>
    %285 = vector.broadcast %284 : vector<32x1xf32> to vector<32x128xf32>
    %286 = arith.mulf %276, %285 : vector<32x128xf32>
    %287 = vector.broadcast %269 : vector<1x128xf32> to vector<32x128xf32>
    %288 = arith.mulf %286, %287 : vector<32x128xf32>
    %289 = vector.broadcast %270 : vector<1x128xf32> to vector<32x128xf32>
    %290 = arith.addf %288, %289 : vector<32x128xf32>
    %cst_154 = arith.constant 2.000000e-01 : f32
    %291 = vector.broadcast %cst_154 : f32 to vector<32x128xf32>
    %292 = arith.mulf %291, %290 : vector<32x128xf32>
    %293 = arith.maximumf %290, %292 : vector<32x128xf32>
    %294 = arith.truncf %293 : vector<32x128xf32> to vector<32x128xbf16>
    %c5_155 = arith.constant 5 : index
    %c0_156 = arith.constant 0 : index
    %c0_157 = arith.constant 0 : index
    %295 = vector.load %arg7[%c5_155, %c0_156, %c0_157] : memref<8x128x128xbf16, #tpu.memory_space<vmem>>, vector<1x128x128xbf16>
    %296 = vector.shape_cast %295 : vector<1x128x128xbf16> to vector<128x128xbf16>
    %cst_158 = arith.constant dense<0.000000e+00> : vector<32x128xf32>
    %297 = tpu.matmul %294, %296, %cst_158 {dimension_numbers = #tpu.dot_dimension_numbers<[1], [0], [0], [1], [0, 0, 1, 1], [], []>} : vector<32x128xbf16>, vector<128x128xbf16>, vector<32x128xf32> -> vector<32x128xf32>
    %c5_159 = arith.constant 5 : index
    %c0_160 = arith.constant 0 : index
    %298 = vector.load %arg8[%c5_159, %c0_160] : memref<8x128xf32, #tpu.memory_space<vmem>>, vector<1x128xf32>
    %299 = vector.broadcast %298 : vector<1x128xf32> to vector<32x128xf32>
    %300 = arith.addf %297, %299 : vector<32x128xf32>
    %c5_161 = arith.constant 5 : index
    %c0_162 = arith.constant 0 : index
    %c0_163 = arith.constant 0 : index
    %301 = vector.load %arg9[%c5_161, %c0_162, %c0_163] : memref<8x32x128xf32, #tpu.memory_space<vmem>>, vector<1x32x128xf32>
    %302 = vector.shape_cast %301 : vector<1x32x128xf32> to vector<32x128xf32>
    %303 = vector.shape_cast %300 : vector<32x128xf32> to vector<1x32x128xf32>
    tpu.vector_store %arg9[%c5_161, %c0_162, %c0_163], %303 {strides = array<i32>} : memref<8x32x128xf32, #tpu.memory_space<vmem>>, vector<1x32x128xf32>,
    %c0_164 = arith.constant 0 : index
    %c768 = arith.constant 768 : index
    %304 = vector.load %arg5[%c0_164, %c768] : memref<256x1024xbf16, #tpu.memory_space<vmem>>, vector<256x128xbf16>
    %cst_165 = arith.constant dense<0.000000e+00> : vector<32x128xf32>
    %305 = tpu.matmul %63, %304, %cst_165 {dimension_numbers = #tpu.dot_dimension_numbers<[1], [0], [0], [1], [0, 0, 1, 1], [], []>} : vector<32x256xbf16>, vector<256x128xbf16>, vector<32x128xf32> -> vector<32x128xf32>
    %c0_166 = arith.constant 0 : index
    %c768_167 = arith.constant 768 : index
    %306 = vector.load %arg6[%c0_166, %c768_167] : memref<3x1024xf32, #tpu.memory_space<vmem>>, vector<1x128xf32>
    %307 = vector.broadcast %306 : vector<1x128xf32> to vector<32x128xf32>
    %308 = arith.addf %305, %307 : vector<32x128xf32>
    %c1_168 = arith.constant 1 : index
    %c768_169 = arith.constant 768 : index
    %309 = vector.load %arg6[%c1_168, %c768_169] : memref<3x1024xf32, #tpu.memory_space<vmem>>, vector<1x128xf32>
    %c2_170 = arith.constant 2 : index
    %c768_171 = arith.constant 768 : index
    %310 = vector.load %arg6[%c2_170, %c768_171] : memref<3x1024xf32, #tpu.memory_space<vmem>>, vector<1x128xf32>
    %cst_172 = arith.constant dense<0.000000e+00> : vector<32xf32>
    %311 = vector.multi_reduction <add>, %308, %cst_172 [1] : vector<32x128xf32> to vector<32xf32>
    %312 = vector.shape_cast %311 : vector<32xf32> to vector<32x1xf32>
    %cst_173 = arith.constant 1.280000e+02 : f32
    %313 = vector.broadcast %cst_173 : f32 to vector<32x1xf32>
    %314 = arith.divf %312, %313 : vector<32x1xf32>
    %315 = vector.broadcast %314 : vector<32x1xf32> to vector<32x128xf32>
    %316 = arith.subf %308, %315 : vector<32x128xf32>
    %317 = arith.mulf %316, %316 : vector<32x128xf32>
    %cst_174 = arith.constant dense<0.000000e+00> : vector<32xf32>
    %318 = vector.multi_reduction <add>, %317, %cst_174 [1] : vector<32x128xf32> to vector<32xf32>
    %319 = vector.shape_cast %318 : vector<32xf32> to vector<32x1xf32>
    %cst_175 = arith.constant 1.280000e+02 : f32
    %320 = vector.broadcast %cst_175 : f32 to vector<32x1xf32>
    %321 = arith.divf %319, %320 : vector<32x1xf32>
    %cst_176 = arith.constant 9.99999974E-6 : f32
    %322 = vector.broadcast %cst_176 : f32 to vector<32x1xf32>
    %323 = arith.addf %321, %322 : vector<32x1xf32>
    %324 = math.rsqrt %323 : vector<32x1xf32>
    %325 = vector.broadcast %324 : vector<32x1xf32> to vector<32x128xf32>
    %326 = arith.mulf %316, %325 : vector<32x128xf32>
    %327 = vector.broadcast %309 : vector<1x128xf32> to vector<32x128xf32>
    %328 = arith.mulf %326, %327 : vector<32x128xf32>
    %329 = vector.broadcast %310 : vector<1x128xf32> to vector<32x128xf32>
    %330 = arith.addf %328, %329 : vector<32x128xf32>
    %cst_177 = arith.constant 2.000000e-01 : f32
    %331 = vector.broadcast %cst_177 : f32 to vector<32x128xf32>
    %332 = arith.mulf %331, %330 : vector<32x128xf32>
    %333 = arith.maximumf %330, %332 : vector<32x128xf32>
    %334 = arith.truncf %333 : vector<32x128xf32> to vector<32x128xbf16>
    %c6 = arith.constant 6 : index
    %c0_178 = arith.constant 0 : index
    %c0_179 = arith.constant 0 : index
    %335 = vector.load %arg7[%c6, %c0_178, %c0_179] : memref<8x128x128xbf16, #tpu.memory_space<vmem>>, vector<1x128x128xbf16>
    %336 = vector.shape_cast %335 : vector<1x128x128xbf16> to vector<128x128xbf16>
    %cst_180 = arith.constant dense<0.000000e+00> : vector<32x128xf32>
    %337 = tpu.matmul %334, %336, %cst_180 {dimension_numbers = #tpu.dot_dimension_numbers<[1], [0], [0], [1], [0, 0, 1, 1], [], []>} : vector<32x128xbf16>, vector<128x128xbf16>, vector<32x128xf32> -> vector<32x128xf32>
    %c6_181 = arith.constant 6 : index
    %c0_182 = arith.constant 0 : index
    %338 = vector.load %arg8[%c6_181, %c0_182] : memref<8x128xf32, #tpu.memory_space<vmem>>, vector<1x128xf32>
    %339 = vector.broadcast %338 : vector<1x128xf32> to vector<32x128xf32>
    %340 = arith.addf %337, %339 : vector<32x128xf32>
    %c6_183 = arith.constant 6 : index
    %c0_184 = arith.constant 0 : index
    %c0_185 = arith.constant 0 : index
    %341 = vector.load %arg9[%c6_183, %c0_184, %c0_185] : memref<8x32x128xf32, #tpu.memory_space<vmem>>, vector<1x32x128xf32>
    %342 = vector.shape_cast %341 : vector<1x32x128xf32> to vector<32x128xf32>
    %343 = vector.shape_cast %340 : vector<32x128xf32> to vector<1x32x128xf32>
    tpu.vector_store %arg9[%c6_183, %c0_184, %c0_185], %343 {strides = array<i32>} : memref<8x32x128xf32, #tpu.memory_space<vmem>>, vector<1x32x128xf32>,
    %c0_186 = arith.constant 0 : index
    %c896 = arith.constant 896 : index
    %344 = vector.load %arg5[%c0_186, %c896] : memref<256x1024xbf16, #tpu.memory_space<vmem>>, vector<256x128xbf16>
    %cst_187 = arith.constant dense<0.000000e+00> : vector<32x128xf32>
    %345 = tpu.matmul %63, %344, %cst_187 {dimension_numbers = #tpu.dot_dimension_numbers<[1], [0], [0], [1], [0, 0, 1, 1], [], []>} : vector<32x256xbf16>, vector<256x128xbf16>, vector<32x128xf32> -> vector<32x128xf32>
    %c0_188 = arith.constant 0 : index
    %c896_189 = arith.constant 896 : index
    %346 = vector.load %arg6[%c0_188, %c896_189] : memref<3x1024xf32, #tpu.memory_space<vmem>>, vector<1x128xf32>
    %347 = vector.broadcast %346 : vector<1x128xf32> to vector<32x128xf32>
    %348 = arith.addf %345, %347 : vector<32x128xf32>
    %c1_190 = arith.constant 1 : index
    %c896_191 = arith.constant 896 : index
    %349 = vector.load %arg6[%c1_190, %c896_191] : memref<3x1024xf32, #tpu.memory_space<vmem>>, vector<1x128xf32>
    %c2_192 = arith.constant 2 : index
    %c896_193 = arith.constant 896 : index
    %350 = vector.load %arg6[%c2_192, %c896_193] : memref<3x1024xf32, #tpu.memory_space<vmem>>, vector<1x128xf32>
    %cst_194 = arith.constant dense<0.000000e+00> : vector<32xf32>
    %351 = vector.multi_reduction <add>, %348, %cst_194 [1] : vector<32x128xf32> to vector<32xf32>
    %352 = vector.shape_cast %351 : vector<32xf32> to vector<32x1xf32>
    %cst_195 = arith.constant 1.280000e+02 : f32
    %353 = vector.broadcast %cst_195 : f32 to vector<32x1xf32>
    %354 = arith.divf %352, %353 : vector<32x1xf32>
    %355 = vector.broadcast %354 : vector<32x1xf32> to vector<32x128xf32>
    %356 = arith.subf %348, %355 : vector<32x128xf32>
    %357 = arith.mulf %356, %356 : vector<32x128xf32>
    %cst_196 = arith.constant dense<0.000000e+00> : vector<32xf32>
    %358 = vector.multi_reduction <add>, %357, %cst_196 [1] : vector<32x128xf32> to vector<32xf32>
    %359 = vector.shape_cast %358 : vector<32xf32> to vector<32x1xf32>
    %cst_197 = arith.constant 1.280000e+02 : f32
    %360 = vector.broadcast %cst_197 : f32 to vector<32x1xf32>
    %361 = arith.divf %359, %360 : vector<32x1xf32>
    %cst_198 = arith.constant 9.99999974E-6 : f32
    %362 = vector.broadcast %cst_198 : f32 to vector<32x1xf32>
    %363 = arith.addf %361, %362 : vector<32x1xf32>
    %364 = math.rsqrt %363 : vector<32x1xf32>
    %365 = vector.broadcast %364 : vector<32x1xf32> to vector<32x128xf32>
    %366 = arith.mulf %356, %365 : vector<32x128xf32>
    %367 = vector.broadcast %349 : vector<1x128xf32> to vector<32x128xf32>
    %368 = arith.mulf %366, %367 : vector<32x128xf32>
    %369 = vector.broadcast %350 : vector<1x128xf32> to vector<32x128xf32>
    %370 = arith.addf %368, %369 : vector<32x128xf32>
    %cst_199 = arith.constant 2.000000e-01 : f32
    %371 = vector.broadcast %cst_199 : f32 to vector<32x128xf32>
    %372 = arith.mulf %371, %370 : vector<32x128xf32>
    %373 = arith.maximumf %370, %372 : vector<32x128xf32>
    %374 = arith.truncf %373 : vector<32x128xf32> to vector<32x128xbf16>
    %c7 = arith.constant 7 : index
    %c0_200 = arith.constant 0 : index
    %c0_201 = arith.constant 0 : index
    %375 = vector.load %arg7[%c7, %c0_200, %c0_201] : memref<8x128x128xbf16, #tpu.memory_space<vmem>>, vector<1x128x128xbf16>
    %376 = vector.shape_cast %375 : vector<1x128x128xbf16> to vector<128x128xbf16>
    %cst_202 = arith.constant dense<0.000000e+00> : vector<32x128xf32>
    %377 = tpu.matmul %374, %376, %cst_202 {dimension_numbers = #tpu.dot_dimension_numbers<[1], [0], [0], [1], [0, 0, 1, 1], [], []>} : vector<32x128xbf16>, vector<128x128xbf16>, vector<32x128xf32> -> vector<32x128xf32>
    %c7_203 = arith.constant 7 : index
    %c0_204 = arith.constant 0 : index
    %378 = vector.load %arg8[%c7_203, %c0_204] : memref<8x128xf32, #tpu.memory_space<vmem>>, vector<1x128xf32>
    %379 = vector.broadcast %378 : vector<1x128xf32> to vector<32x128xf32>
    %380 = arith.addf %377, %379 : vector<32x128xf32>
    %c7_205 = arith.constant 7 : index
    %c0_206 = arith.constant 0 : index
    %c0_207 = arith.constant 0 : index
    %381 = vector.load %arg9[%c7_205, %c0_206, %c0_207] : memref<8x32x128xf32, #tpu.memory_space<vmem>>, vector<1x32x128xf32>
    %382 = vector.shape_cast %381 : vector<1x32x128xf32> to vector<32x128xf32>
    %383 = vector.shape_cast %380 : vector<32x128xf32> to vector<1x32x128xf32>
    tpu.vector_store %arg9[%c7_205, %c0_206, %c0_207], %383 {strides = array<i32>} : memref<8x32x128xf32, #tpu.memory_space<vmem>>, vector<1x32x128xf32>,
    return
  }
  func.func @transform_0(%arg0: i32) -> (i32, i32) {
    %c0_i32 = arith.constant 0 : i32
    %c0_i32_0 = arith.constant 0 : i32
    return %arg0, %c0_i32 : i32, i32
  }
  func.func @transform_1(%arg0: i32) -> (i32, i32) {
    %c0_i32 = arith.constant 0 : i32
    %c0_i32_0 = arith.constant 0 : i32
    %c0_i32_1 = arith.constant 0 : i32
    return %c0_i32, %c0_i32_0 : i32, i32
  }
  func.func @transform_2(%arg0: i32) -> (i32, i32) {
    %c0_i32 = arith.constant 0 : i32
    %c0_i32_0 = arith.constant 0 : i32
    %c0_i32_1 = arith.constant 0 : i32
    return %c0_i32, %c0_i32_0 : i32, i32
  }
  func.func @transform_3(%arg0: i32) -> (i32, i32) {
    %c0_i32 = arith.constant 0 : i32
    %c0_i32_0 = arith.constant 0 : i32
    %c0_i32_1 = arith.constant 0 : i32
    return %c0_i32, %c0_i32_0 : i32, i32
  }
  func.func @transform_4(%arg0: i32) -> (i32, i32) {
    %c0_i32 = arith.constant 0 : i32
    %c0_i32_0 = arith.constant 0 : i32
    %c0_i32_1 = arith.constant 0 : i32
    return %c0_i32, %c0_i32_0 : i32, i32
  }
  func.func @transform_5(%arg0: i32) -> (i32, i32) {
    %c0_i32 = arith.constant 0 : i32
    %c0_i32_0 = arith.constant 0 : i32
    %c0_i32_1 = arith.constant 0 : i32
    return %c0_i32, %c0_i32_0 : i32, i32
  }
  func.func @transform_6(%arg0: i32) -> (i32, i32, i32) {
    %c0_i32 = arith.constant 0 : i32
    %c0_i32_0 = arith.constant 0 : i32
    %c0_i32_1 = arith.constant 0 : i32
    %c0_i32_2 = arith.constant 0 : i32
    return %c0_i32, %c0_i32_0, %c0_i32_1 : i32, i32, i32
  }
  func.func @transform_7(%arg0: i32) -> (i32, i32) {
    %c0_i32 = arith.constant 0 : i32
    %c0_i32_0 = arith.constant 0 : i32
    %c0_i32_1 = arith.constant 0 : i32
    return %c0_i32, %c0_i32_0 : i32, i32
  }
  func.func @transform_8(%arg0: i32) -> (i32, i32, i32) {
    %c0_i32 = arith.constant 0 : i32
    %c0_i32_0 = arith.constant 0 : i32
    %c0_i32_1 = arith.constant 0 : i32
    return %c0_i32, %arg0, %c0_i32_0 : i32, i32, i32
  }
}

</mosaic_0001>

<llo_original>
// kernel: _lambda_.1
$region0: #{_lambda_.1}
  #allocation0 [shape = 'u32[]', space=smem, size = 0x4, offset = 0x4, fixed_abs, tag = 'smem constant byte address 0x4 - core index']
  #allocation1 [shape = 'u32[144,128]{1,0:T(1,128)}', space=vmem, size = 0x12000, scoped, tag = 'internal scratch']
  %s0 = inlined_call_operand.hbm [shape: f32[64,128], index: 0, kind: input, shape index: {}]
  %s1 = inlined_call_operand.hbm [shape: bf16[128,256], index: 1, kind: input, shape index: {}]
  %s2 = inlined_call_operand.hbm [shape: bf16[256,256], index: 2, kind: input, shape index: {}]
  %s3 = inlined_call_operand.vmem [shape: f32[6,256], index: 3, kind: input, shape index: {}]
  %s4 = inlined_call_operand.hbm [shape: bf16[256,1024], index: 4, kind: input, shape index: {}]
  %s5 = inlined_call_operand.hbm [shape: f32[3,1024], index: 5, kind: input, shape index: {}]
  %s6 = inlined_call_operand.hbm [shape: bf16[8,128,128], index: 6, kind: input, shape index: {}]
  %s7 = inlined_call_operand.hbm [shape: f32[8,128], index: 7, kind: input, shape index: {}]
  %s8 = inlined_call_operand.vmem [shape: f32[8,64,128], index: 8, kind: output, shape index: {}]
  %s9 = sld [smem:[#allocation0]]
  $region127: #{_lambda_.1} parent=0
    _
  %s11 = ssub.s32 1, %s9
  %s12 = scalar_select 0, %s11, %s9
  $region1: #{_lambda_.1} parent=0
    #allocation2 [shape = 'u8[32768]{0}', space=vmem, size = 0x8000, scoped, tag = 'input window, operand 0']
    #allocation3 [shape = 's32[2]{0}', space=sflag, size = 0x8, scoped, tag = 'scoped memory for _lambda_.1']
    #allocation4 [shape = 'u8[65536]{0}', space=vmem, size = 0x10000, scoped, tag = 'input window, operand 1, single buffered']
    #allocation5 [shape = 's32[1]{0}', space=sflag, size = 0x4, scoped, tag = 'scoped memory for _lambda_.1']
    #allocation6 [shape = 'u8[131072]{0}', space=vmem, size = 0x20000, scoped, tag = 'input window, operand 2, single buffered']
    #allocation7 [shape = 'u8[524288]{0}', space=vmem, size = 0x80000, scoped, tag = 'input window, operand 4, single buffered']
    #allocation8 [shape = 's32[1]{0}', space=sflag, size = 0x4, scoped, tag = 'scoped memory for _lambda_.1']
    #allocation9 [shape = 'u8[16384]{0}', space=vmem, size = 0x4000, scoped, tag = 'input window, operand 5, single buffered']
    #allocation10 [shape = 'u8[262144]{0}', space=vmem, size = 0x40000, scoped, tag = 'input window, operand 6, single buffered']
    #allocation11 [shape = 's32[1]{0}', space=sflag, size = 0x4, scoped, tag = 'scoped memory for _lambda_.1']
    #allocation12 [shape = 'u8[4096]{0}', space=vmem, size = 0x1000, scoped, tag = 'input window, operand 7, single buffered']
    #allocation13 [shape = 'u8[262144]{0}', space=vmem, size = 0x40000, scoped, tag = 'output window, operand 0']
    %13 = vsyncpa [#allocation3], 0
    %s14 = scalar_lea.sflag [#allocation3], 1
    %15 = vsyncpa %s14, 0
    %16 = vsyncpa [#allocation5], 0
    %17 = vsyncpa [#allocation8], 0
    %18 = vsyncpa [#allocation11], 0
    loop: start=0, step=1, limit=4
    $region2: #{_lambda_.1} parent=1 // loop_pre_header
      _
    $region3: #{_lambda_.1} parent=1 // loop_header
      %s20 = sphi 0, %s24
      %p21 = scmp.ge.s32.totalorder %s20, 4
      %s30 = sphi 0, %s32
      %s33 = sphi 0, %s30
      %s34 = sphi 0, %s33
      %s50 = sphi 0, %s34
      %s54 = sphi 0, %s54
      %s56 = sphi 0, %s54
      %s57 = sphi 0, %s56
      %s71 = sphi 0, %s57
      %s75 = sphi 0, %s75
      %s77 = sphi 0, %s75
      %s78 = sphi 0, %s77
      %s92 = sphi 0, %s78
      %s96 = sphi 0, %s96
      %s98 = sphi 0, %s96
      %s99 = sphi 0, %s98
      %s113 = sphi 0, %s99
      %s117 = sphi 0, %s117
      %s119 = sphi 0, %s117
      %s120 = sphi 0, %s119
      %s134 = sphi 0, %s120
      %s138 = sphi 0, %s138
      %s140 = sphi 0, %s138
      %s141 = sphi 0, %s140
      %s155 = sphi 0, %s141
      %s159 = sphi 0, %s159
      %s161 = sphi 0, %s159
      %s162 = sphi 0, %s161
      %s176 = sphi 0, %s162
      %s180 = sphi 0, %s180
      %s182 = sphi 0, %s180
      %s183 = sphi 0, %s182
      %s197 = sphi 0, %s183
      %s203 = sphi 0, %s205
      %s206 = sphi 0, %s203
      %s207 = sphi 0, %s206
      %s223 = sphi 0, %s207
    $region4: #{_lambda_.1} parent=1 // loop_header_branch
      %23 = sbr.rel (%p21) target = $region8
    $region5: #{_lambda_.1} parent=1 // loop_body
      %s25 = ssub.s32 %s20, 1
      %s26 = ssub.s32 %s20, 2
      %s27 = sadd.s32 %s20, 1
      %s28 = ssub.s32 %s20, %s27
      %p29 = scmp.eq.s32.totalorder %s28, 0
      %s31 = sadd.s32 %s30, 1
      %s32 = scalar_select %p29, %s30, %s31
      %p35 = pneg %p29
      %p36 = scmp.eq.s32.totalorder %s20, 1
      %p37 = por %p35, %p36
      %p38 = scmp.ne.s32.totalorder %s30, %s33
      %p39 = scmp.eq.s32.totalorder %s20, 0
      %p40 = por %p38, %p39
      %p41 = scmp.ne.s32.totalorder %s30, %s33
      %p42 = scmp.eq.s32.totalorder %s25, 1
      %p43 = por %p41, %p42
      %p44 = scmp.ne.s32.totalorder %s33, %s34
      %p45 = scmp.eq.s32.totalorder %s25, 0
      %p46 = por %p44, %p45
      %p47 = scmp.ne.s32.totalorder %s33, %s34
      %p48 = scmp.eq.s32.totalorder %s26, 1
      %p49 = por %p47, %p48
      %p51 = scmp.ne.s32.totalorder %s34, %s50
      %p52 = scmp.eq.s32.totalorder %s26, 0
      %p53 = por %p51, %p52
      %s55 = sadd.s32 %s54, 1
      %p58 = scmp.eq.s32.totalorder %s20, 1
      %p59 = scmp.ne.s32.totalorder %s54, %s56
      %p60 = scmp.eq.s32.totalorder %s20, 0
      %p61 = por %p59, %p60
      %p62 = scmp.ne.s32.totalorder %s54, %s56
      %p63 = scmp.eq.s32.totalorder %s25, 1
      %p64 = por %p62, %p63
      %p65 = scmp.ne.s32.totalorder %s56, %s57
      %p66 = scmp.eq.s32.totalorder %s25, 0
      %p67 = por %p65, %p66
      %p68 = scmp.ne.s32.totalorder %s56, %s57
      %p69 = scmp.eq.s32.totalorder %s26, 1
      %p70 = por %p68, %p69
      %p72 = scmp.ne.s32.totalorder %s57, %s71
      %p73 = scmp.eq.s32.totalorder %s26, 0
      %p74 = por %p72, %p73
      %s76 = sadd.s32 %s75, 1
      %p79 = scmp.eq.s32.totalorder %s20, 1
      %p80 = scmp.ne.s32.totalorder %s75, %s77
      %p81 = scmp.eq.s32.totalorder %s20, 0
      %p82 = por %p80, %p81
      %p83 = scmp.ne.s32.totalorder %s75, %s77
      %p84 = scmp.eq.s32.totalorder %s25, 1
      %p85 = por %p83, %p84
      %p86 = scmp.ne.s32.totalorder %s77, %s78
      %p87 = scmp.eq.s32.totalorder %s25, 0
      %p88 = por %p86, %p87
      %p89 = scmp.ne.s32.totalorder %s77, %s78
      %p90 = scmp.eq.s32.totalorder %s26, 1
      %p91 = por %p89, %p90
      %p93 = scmp.ne.s32.totalorder %s78, %s92
      %p94 = scmp.eq.s32.totalorder %s26, 0
      %p95 = por %p93, %p94
      %s97 = sadd.s32 %s96, 1
      %p100 = scmp.eq.s32.totalorder %s20, 1
      %p101 = scmp.ne.s32.totalorder %s96, %s98
      %p102 = scmp.eq.s32.totalorder %s20, 0
      %p103 = por %p101, %p102
      %p104 = scmp.ne.s32.totalorder %s96, %s98
      %p105 = scmp.eq.s32.totalorder %s25, 1
      %p106 = por %p104, %p105
      %p107 = scmp.ne.s32.totalorder %s98, %s99
      %p108 = scmp.eq.s32.totalorder %s25, 0
      %p109 = por %p107, %p108
      %p110 = scmp.ne.s32.totalorder %s98, %s99
      %p111 = scmp.eq.s32.totalorder %s26, 1
      %p112 = por %p110, %p111
      %p114 = scmp.ne.s32.totalorder %s99, %s113
      %p115 = scmp.eq.s32.totalorder %s26, 0
      %p116 = por %p114, %p115
      %s118 = sadd.s32 %s117, 1
      %p121 = scmp.eq.s32.totalorder %s20, 1
      %p122 = scmp.ne.s32.totalorder %s117, %s119
      %p123 = scmp.eq.s32.totalorder %s20, 0
      %p124 = por %p122, %p123
      %p125 = scmp.ne.s32.totalorder %s117, %s119
      %p126 = scmp.eq.s32.totalorder %s25, 1
      %p127 = por %p125, %p126
      %p128 = scmp.ne.s32.totalorder %s119, %s120
      %p129 = scmp.eq.s32.totalorder %s25, 0
      %p130 = por %p128, %p129
      %p131 = scmp.ne.s32.totalorder %s119, %s120
      %p132 = scmp.eq.s32.totalorder %s26, 1
      %p133 = por %p131, %p132
      %p135 = scmp.ne.s32.totalorder %s120, %s134
      %p136 = scmp.eq.s32.totalorder %s26, 0
      %p137 = por %p135, %p136
      %s139 = sadd.s32 %s138, 1
      %p142 = scmp.eq.s32.totalorder %s20, 1
      %p143 = scmp.ne.s32.totalorder %s138, %s140
      %p144 = scmp.eq.s32.totalorder %s20, 0
      %p145 = por %p143, %p144
      %p146 = scmp.ne.s32.totalorder %s138, %s140
      %p147 = scmp.eq.s32.totalorder %s25, 1
      %p148 = por %p146, %p147
      %p149 = scmp.ne.s32.totalorder %s140, %s141
      %p150 = scmp.eq.s32.totalorder %s25, 0
      %p151 = por %p149, %p150
      %p152 = scmp.ne.s32.totalorder %s140, %s141
      %p153 = scmp.eq.s32.totalorder %s26, 1
      %p154 = por %p152, %p153
      %p156 = scmp.ne.s32.totalorder %s141, %s155
      %p157 = scmp.eq.s32.totalorder %s26, 0
      %p158 = por %p156, %p157
      %s160 = sadd.s32 %s159, 1
      %p163 = scmp.eq.s32.totalorder %s20, 1
      %p164 = scmp.ne.s32.totalorder %s159, %s161
      %p165 = scmp.eq.s32.totalorder %s20, 0
      %p166 = por %p164, %p165
      %p167 = scmp.ne.s32.totalorder %s159, %s161
      %p168 = scmp.eq.s32.totalorder %s25, 1
      %p169 = por %p167, %p168
      %p170 = scmp.ne.s32.totalorder %s161, %s162
      %p171 = scmp.eq.s32.totalorder %s25, 0
      %p172 = por %p170, %p171
      %p173 = scmp.ne.s32.totalorder %s161, %s162
      %p174 = scmp.eq.s32.totalorder %s26, 1
      %p175 = por %p173, %p174
      %p177 = scmp.ne.s32.totalorder %s162, %s176
      %p178 = scmp.eq.s32.totalorder %s26, 0
      %p179 = por %p177, %p178
      %s181 = sadd.s32 %s180, 1
      %p184 = scmp.eq.s32.totalorder %s20, 1
      %p185 = scmp.ne.s32.totalorder %s180, %s182
      %p186 = scmp.eq.s32.totalorder %s20, 0
      %p187 = por %p185, %p186
      %p188 = scmp.ne.s32.totalorder %s180, %s182
      %p189 = scmp.eq.s32.totalorder %s25, 1
      %p190 = por %p188, %p189
      %p191 = scmp.ne.s32.totalorder %s182, %s183
      %p192 = scmp.eq.s32.totalorder %s25, 0
      %p193 = por %p191, %p192
      %p194 = scmp.ne.s32.totalorder %s182, %s183
      %p195 = scmp.eq.s32.totalorder %s26, 1
      %p196 = por %p194, %p195
      %p198 = scmp.ne.s32.totalorder %s183, %s197
      %p199 = scmp.eq.s32.totalorder %s26, 0
      %p200 = por %p198, %p199
      %s201 = ssub.s32 %s20, %s27
      %p202 = scmp.eq.s32.totalorder %s201, 0
      %s204 = sadd.s32 %s203, 1
      %s205 = scalar_select %p202, %s203, %s204
      %p208 = pneg %p202
      %p209 = scmp.eq.s32.totalorder %s20, 1
      %p210 = por %p208, %p209
      %p211 = scmp.ne.s32.totalorder %s203, %s206
      %p212 = scmp.eq.s32.totalorder %s20, 0
      %p213 = por %p211, %p212
      %p214 = scmp.ne.s32.totalorder %s203, %s206
      %p215 = scmp.eq.s32.totalorder %s25, 1
      %p216 = por %p214, %p215
      %p217 = scmp.ne.s32.totalorder %s206, %s207
      %p218 = scmp.eq.s32.totalorder %s25, 0
      %p219 = por %p217, %p218
      %p220 = scmp.ne.s32.totalorder %s206, %s207
      %p221 = scmp.eq.s32.totalorder %s26, 1
      %p222 = por %p220, %p221
      %p224 = scmp.ne.s32.totalorder %s207, %s223
      %p225 = scmp.eq.s32.totalorder %s26, 0
      %p226 = por %p224, %p225
      %p227 = scmp.le.s32.totalorder 1, %s20
      %p228 = scmp.lt.s32.totalorder %s20, 3
      %p229 = pnand %p227, %p228
      %p230 = pneg %p229
      // Predicated region
      $region9: #{_lambda_.1} parent=5 // pred_check
        _
      $region10: #{_lambda_.1} parent=5 // pred_check_branch
        %232 = sbr.rel (%p229) target = $region12
      $region11: #{_lambda_.1} parent=5 // pred_region
        %s233 = ssub.s32 %s20, 1
        // Predicated region
        $region13: #{_lambda_.1} parent=11 // pred_check
          %p234 = pneg %p67
        $region14: #{_lambda_.1} parent=11 // pred_check_branch
          %236 = sbr.rel (%p234) target = $region16
        $region15: #{_lambda_.1} parent=11 // pred_region
          %s238 = ssub.s32 2048, 2048
          %239 = vsyncadd [#allocation5], %s238
          %s240 = sshll.u32 [#allocation4], 4
          %s241 = int_to_ptr.vmem [resolvable:$true] %s240
          %246 = dma.hbm_to_vmem [thread:$0]  %s1, 2048, %s241, [#allocation5], 128, 128, 8
        $region16: #{_lambda_.1} parent=11 // pred_fallthru
          _
        // Predicated region
        $region17: #{_lambda_.1} parent=11 // pred_check
          %p247 = pneg %p88
        $region18: #{_lambda_.1} parent=11 // pred_check_branch
          %249 = sbr.rel (%p247) target = $region20
        $region19: #{_lambda_.1} parent=11 // pred_region
          %s251 = ssub.s32 4096, 4096
          %252 = vsyncadd [#allocation5], %s251
          %s253 = sshll.u32 [#allocation6], 4
          %s254 = int_to_ptr.vmem [resolvable:$true] %s253
          %259 = dma.hbm_to_vmem [thread:$0]  %s2, 4096, %s254, [#allocation5], 128, 128, 8
        $region20: #{_lambda_.1} parent=11 // pred_fallthru
          _
        // Predicated region
        $region21: #{_lambda_.1} parent=11 // pred_check
          %p260 = pneg %p109
        $region22: #{_lambda_.1} parent=11 // pred_check_branch
          %262 = sbr.rel (%p260) target = $region24
        $region23: #{_lambda_.1} parent=11 // pred_region
          _
        $region24: #{_lambda_.1} parent=11 // pred_fallthru
          _
        // Predicated region
        $region25: #{_lambda_.1} parent=11 // pred_check
          %p263 = pneg %p130
        $region26: #{_lambda_.1} parent=11 // pred_check_branch
          %265 = sbr.rel (%p263) target = $region28
        $region27: #{_lambda_.1} parent=11 // pred_region
          %s267 = ssub.s32 16384, 16384
          %268 = vsyncadd [#allocation8], %s267
          %s269 = sshll.u32 [#allocation7], 4
          %s270 = int_to_ptr.vmem [resolvable:$true] %s269
          %275 = dma.hbm_to_vmem [thread:$0]  %s4, 16384, %s270, [#allocation8], 512, 512, 32
        $region28: #{_lambda_.1} parent=11 // pred_fallthru
          _
        // Predicated region
        $region29: #{_lambda_.1} parent=11 // pred_check
          %p276 = pneg %p151
        $region30: #{_lambda_.1} parent=11 // pred_check_branch
          %278 = sbr.rel (%p276) target = $region32
        $region31: #{_lambda_.1} parent=11 // pred_region
          %s280 = ssub.s32 512, 512
          %281 = vsyncadd [#allocation8], %s280
          %s283 = sshll.u32 [#allocation9], 4
          %s284 = int_to_ptr.vmem [resolvable:$true] %s283
          %286 = dma.hbm_to_vmem [thread:$0]  %s5, 512, %s284, [#allocation8]
        $region32: #{_lambda_.1} parent=11 // pred_fallthru
          _
        // Predicated region
        $region33: #{_lambda_.1} parent=11 // pred_check
          %p287 = pneg %p172
        $region34: #{_lambda_.1} parent=11 // pred_check_branch
          %289 = sbr.rel (%p287) target = $region36
        $region35: #{_lambda_.1} parent=11 // pred_region
          %s291 = ssub.s32 8192, 8192
          %292 = vsyncadd [#allocation11], %s291
          %s293 = sshll.u32 [#allocation10], 4
          %s294 = int_to_ptr.vmem [resolvable:$true] %s293
          %299 = dma.hbm_to_vmem [thread:$0]  %s6, 8192, %s294, [#allocation11], 64, 64, 4
        $region36: #{_lambda_.1} parent=11 // pred_fallthru
          _
        // Predicated region
        $region37: #{_lambda_.1} parent=11 // pred_check
          %p300 = pneg %p193
        $region38: #{_lambda_.1} parent=11 // pred_check_branch
          %302 = sbr.rel (%p300) target = $region40
        $region39: #{_lambda_.1} parent=11 // pred_region
          %s304 = ssub.s32 128, 128
          %305 = vsyncadd [#allocation11], %s304
          %s307 = sshll.u32 [#allocation12], 4
          %s308 = int_to_ptr.vmem [resolvable:$true] %s307
          %310 = dma.hbm_to_vmem [thread:$0]  %s7, 128, %s308, [#allocation11]
        $region40: #{_lambda_.1} parent=11 // pred_fallthru
          _
      $region12: #{_lambda_.1} parent=5 // pred_fallthru
        _
      %p311 = scmp.lt.s32.totalorder %s20, 2
      // Predicated region
      $region41: #{_lambda_.1} parent=5 // pred_check
        %p312 = pneg %p311
      $region42: #{_lambda_.1} parent=5 // pred_check_branch
        %314 = sbr.rel (%p312) target = $region44
      $region43: #{_lambda_.1} parent=5 // pred_region
        // Predicated region
        $region45: #{_lambda_.1} parent=43 // pred_check
          %p315 = pneg %p40
        $region46: #{_lambda_.1} parent=43 // pred_check_branch
          %317 = sbr.rel (%p315) target = $region48
        $region47: #{_lambda_.1} parent=43 // pred_region
          %s318 = sand.u32 %s30, 1
          %s319 = scalar_lea.sflag [#allocation3], %s318
          %s320 = sand.u32 %s30, 1
          %s321 = smul.addr %s320, 32
          %s322 = scalar_lea.vmem [#allocation2], %s321
          %s323 = smul.u32 4, %s20
          %s325 = ssub.s32 512, 512
          %326 = vsyncadd %s319, %s325
          %s327 = smul.addr %s323, 128
          %s328 = scalar_lea.hbm %s0, %s327
          %s329 = sshll.u32 %s322, 4
          %s330 = int_to_ptr.vmem [resolvable:$true] %s329
          %335 = dma.hbm_to_vmem [thread:$0]  %s328, 512, %s330, %s319, 128, 128, 8
        $region48: #{_lambda_.1} parent=43 // pred_fallthru
          _
      $region44: #{_lambda_.1} parent=5 // pred_fallthru
        _
      %p336 = scmp.le.s32.totalorder 1, %s20
      %p337 = scmp.lt.s32.totalorder %s20, 3
      %p338 = pnand %p336, %p337
      %p339 = pneg %p338
      // Predicated region
      $region49: #{_lambda_.1} parent=5 // pred_check
        _
      $region50: #{_lambda_.1} parent=5 // pred_check_branch
        %341 = sbr.rel (%p338) target = $region52
      $region51: #{_lambda_.1} parent=5 // pred_region
        %s342 = ssub.s32 %s20, 1
        %s343 = sand.u32 %s33, 1
        %s344 = scalar_lea.sflag [#allocation3], %s343
        %s345 = sand.u32 %s33, 1
        %s346 = smul.addr %s345, 32
        %s347 = scalar_lea.vmem [#allocation2], %s346
        // Predicated region
        $region53: #{_lambda_.1} parent=51 // pred_check
          %p348 = pneg %p46
        $region54: #{_lambda_.1} parent=51 // pred_check_branch
          %350 = sbr.rel (%p348) target = $region56
        $region55: #{_lambda_.1} parent=51 // pred_region
          %351 = dma.done %s344, 512
        $region56: #{_lambda_.1} parent=51 // pred_fallthru
          _
        // Predicated region
        $region57: #{_lambda_.1} parent=51 // pred_check
          %p352 = pneg %p67
        $region58: #{_lambda_.1} parent=51 // pred_check_branch
          %354 = sbr.rel (%p352) target = $region60
        $region59: #{_lambda_.1} parent=51 // pred_region
          %355 = dma.done [#allocation5], 2048
        $region60: #{_lambda_.1} parent=51 // pred_fallthru
          _
        // Predicated region
        $region61: #{_lambda_.1} parent=51 // pred_check
          %p356 = pneg %p88
        $region62: #{_lambda_.1} parent=51 // pred_check_branch
          %358 = sbr.rel (%p356) target = $region64
        $region63: #{_lambda_.1} parent=51 // pred_region
          %359 = dma.done [#allocation5], 4096
        $region64: #{_lambda_.1} parent=51 // pred_fallthru
          _
        // Predicated region
        $region65: #{_lambda_.1} parent=51 // pred_check
          %p360 = pneg %p130
        $region66: #{_lambda_.1} parent=51 // pred_check_branch
          %362 = sbr.rel (%p360) target = $region68
        $region67: #{_lambda_.1} parent=51 // pred_region
          %363 = dma.done [#allocation8], 16384
        $region68: #{_lambda_.1} parent=51 // pred_fallthru
          _
        // Predicated region
        $region69: #{_lambda_.1} parent=51 // pred_check
          %p364 = pneg %p151
        $region70: #{_lambda_.1} parent=51 // pred_check_branch
          %366 = sbr.rel (%p364) target = $region72
        $region71: #{_lambda_.1} parent=51 // pred_region
          %367 = dma.done [#allocation8], 512
        $region72: #{_lambda_.1} parent=51 // pred_fallthru
          _
        // Predicated region
        $region73: #{_lambda_.1} parent=51 // pred_check
          %p368 = pneg %p172
        $region74: #{_lambda_.1} parent=51 // pred_check_branch
          %370 = sbr.rel (%p368) target = $region76
        $region75: #{_lambda_.1} parent=51 // pred_region
          %371 = dma.done [#allocation11], 8192
        $region76: #{_lambda_.1} parent=51 // pred_fallthru
          _
        // Predicated region
        $region77: #{_lambda_.1} parent=51 // pred_check
          %p372 = pneg %p193
        $region78: #{_lambda_.1} parent=51 // pred_check_branch
          %374 = sbr.rel (%p372) target = $region80
        $region79: #{_lambda_.1} parent=51 // pred_region
          %375 = dma.done [#allocation11], 128
        $region80: #{_lambda_.1} parent=51 // pred_fallthru
          _
        %s376 = sand.u32 %s33, 1
        %s377 = scalar_lea.sflag [#allocation3], %s376
        %s378 = sand.u32 %s33, 1
        %s379 = smul.addr %s378, 32
        %s380 = scalar_lea.vmem [#allocation2], %s379
        %p381 = pneg %p46
        %p382 = pneg %p43
        %p383 = pneg %p67
        %p384 = pneg %p64
        %p385 = pneg %p88
        %p386 = pneg %p85
        %p387 = pneg %p109
        %p388 = pneg %p106
        %p389 = pneg %p130
        %p390 = pneg %p127
        %p391 = pneg %p151
        %p392 = pneg %p148
        %p393 = pneg %p172
        %p394 = pneg %p169
        %p395 = pneg %p193
        %p396 = pneg %p190
        %p397 = pneg %p219
        %p398 = pneg %p216
        %s399 = sand.u32 %s206, 1
        %s400 = sand.u32 %s206, 1
        %s401 = smul.addr %s400, 256
        %s402 = scalar_lea.vmem [#allocation13], %s401
        %s403 = smul.u32 4, %s25
        %s404 = smul.u32 4, %s25
        %v406 = vld [vmem:[%s3] ss:$8 sm:$0x3]
        %s407 = scalar_lea.vmem %s3, 1
        %v408 = vld [vmem:[%s407] ss:$8 sm:$0x3]
        %s409 = scalar_lea.vmem %s3, 2
        %v410 = vld [vmem:[%s409] ss:$8 sm:$0x3]
        %s411 = scalar_lea.vmem %s3, 3
        %v412 = vld [vmem:[%s411] ss:$8 sm:$0x3]
        %s413 = scalar_lea.vmem %s3, 4
        %v414 = vld [vmem:[%s413] ss:$8 sm:$0x3]
        %s415 = scalar_lea.vmem %s3, 5
        %v416 = vld [vmem:[%s415] ss:$8 sm:$0x3]
        %v417 = vld [vmem:[%s347] sm:$0xff]
        %v418 = vld [vmem:[%s347 + $0x8] sm:$0xff]
        %v419 = vld [vmem:[%s347 + $0x10] sm:$0xff]
        %v420 = vld [vmem:[%s347 + $0x18] sm:$0xff]
        %v421 = vpack.c.bf16 %v418, %v417
        %v422 = vpack.c.bf16 %v420, %v419
        %v423 = vld [vmem:[#allocation4] sm:$0xff]
        %v424 = vld [vmem:[#allocation4 + $0x8] sm:$0xff]
        %v425 = vld [vmem:[#allocation4 + $0x10] sm:$0xff]
        %v426 = vld [vmem:[#allocation4 + $0x18] sm:$0xff]
        %v427 = vld [vmem:[#allocation4 + $0x20] sm:$0xff]
        %v428 = vld [vmem:[#allocation4 + $0x28] sm:$0xff]
        %v429 = vld [vmem:[#allocation4 + $0x30] sm:$0xff]
        %v430 = vld [vmem:[#allocation4 + $0x38] sm:$0xff]
        %v431 = vld [vmem:[#allocation4 + $0x40] sm:$0xff]
        %v432 = vld [vmem:[#allocation4 + $0x48] sm:$0xff]
        %v433 = vld [vmem:[#allocation4 + $0x50] sm:$0xff]
        %v434 = vld [vmem:[#allocation4 + $0x58] sm:$0xff]
        %v435 = vld [vmem:[#allocation4 + $0x60] sm:$0xff]
        %v436 = vld [vmem:[#allocation4 + $0x68] sm:$0xff]
        %v437 = vld [vmem:[#allocation4 + $0x70] sm:$0xff]
        %v438 = vld [vmem:[#allocation4 + $0x78] sm:$0xff]
        %v440 = vlaneseq
        %v441 = vshrl.u32 %v440, 7
        %v442 = vsub.s32 0, %v441
        %v443 = vrot.slane %v406, %v442
        %v444 = vlaneseq
        %v445 = vshrl.u32 %v444, 7
        %v446 = vsub.s32 1, %v445
        %v447 = vrot.slane %v406, %v446
        %v466 = vunpack.c.l.b16 %v423
        %v467 = vunpack.c.h.b16 %v423
        %v468 = vunpack.c.l.b16 %v424
        %v469 = vunpack.c.h.b16 %v424
        %v470 = vunpack.c.l.b16 %v425
        %v471 = vunpack.c.h.b16 %v425
        %v472 = vunpack.c.l.b16 %v426
        %v473 = vunpack.c.h.b16 %v426
        %v474 = vunpack.c.l.b16 %v427
        %v475 = vunpack.c.h.b16 %v427
        %v476 = vunpack.c.l.b16 %v428
        %v477 = vunpack.c.h.b16 %v428
        %v478 = vunpack.c.l.b16 %v429
        %v479 = vunpack.c.h.b16 %v429
        %v480 = vunpack.c.l.b16 %v430
        %v481 = vunpack.c.h.b16 %v430
        %v482 = vunpack.c.l.b16 %v431
        %v483 = vunpack.c.h.b16 %v431
        %v484 = vunpack.c.l.b16 %v432
        %v485 = vunpack.c.h.b16 %v432
        %v486 = vunpack.c.l.b16 %v433
        %v487 = vunpack.c.h.b16 %v433
        %v488 = vunpack.c.l.b16 %v434
        %v489 = vunpack.c.h.b16 %v434
        %v490 = vunpack.c.l.b16 %v435
        %v491 = vunpack.c.h.b16 %v435
        %v492 = vunpack.c.l.b16 %v436
        %v493 = vunpack.c.h.b16 %v436
        %v494 = vunpack.c.l.b16 %v437
        %v495 = vunpack.c.h.b16 %v437
        %v496 = vunpack.c.l.b16 %v438
        %v497 = vunpack.c.h.b16 %v438
        %v498 = vpack.c.b16 %v468, %v466
        %v499 = vpack.c.b16 %v469, %v467
        %v500 = vpack.c.b16 %v472, %v470
        %v501 = vpack.c.b16 %v473, %v471
        %v502 = vpack.c.b16 %v476, %v474
        %v503 = vpack.c.b16 %v477, %v475
        %v504 = vpack.c.b16 %v480, %v478
        %v505 = vpack.c.b16 %v481, %v479
        %v506 = vpack.c.b16 %v484, %v482
        %v507 = vpack.c.b16 %v485, %v483
        %v508 = vpack.c.b16 %v488, %v486
        %v509 = vpack.c.b16 %v489, %v487
        %v510 = vpack.c.b16 %v492, %v490
        %v511 = vpack.c.b16 %v493, %v491
        %v512 = vpack.c.b16 %v496, %v494
        %v513 = vpack.c.b16 %v497, %v495
        %530 = vmatprep.subr.bf16.mxu0 %v499
        %531 = vmatpush1.bf16.msra.mxu0 %v498
        %532 = vmatprep.subr.bf16.mxu0 %v501
        %533 = vmatpush1.bf16.msra.mxu0 %v500
        %534 = vmatprep.subr.bf16.mxu0 %v503
        %535 = vmatpush1.bf16.msra.mxu0 %v502
        %536 = vmatprep.subr.bf16.mxu0 %v505
        %537 = vmatpush1.bf16.msra.mxu0 %v504
        %538 = vmatprep.subr.bf16.mxu0 %v507
        %539 = vmatpush1.bf16.msra.mxu0 %v506
        %540 = vmatprep.subr.bf16.mxu0 %v509
        %541 = vmatpush1.bf16.msra.mxu0 %v508
        %542 = vmatprep.subr.bf16.mxu0 %v511
        %543 = vmatpush1.bf16.msra.mxu0 %v510
        %544 = vmatprep.subr.bf16.mxu0 %v513
        %545 = vmatpush1.bf16.msra.mxu0 %v512
        %546 = vmatprep.subr.bf16.mxu0 0
        %547 = vmatpush1.bf16.msra.mxu0 0
        %548 = vmatprep.subr.bf16.mxu0 0
        %549 = vmatpush1.bf16.msra.mxu0 0
        %550 = vmatprep.subr.bf16.mxu0 0
        %551 = vmatpush1.bf16.msra.mxu0 0
        %552 = vmatprep.subr.bf16.mxu0 0
        %553 = vmatpush1.bf16.msra.mxu0 0
        %554 = vmatprep.subr.bf16.mxu0 0
        %555 = vmatpush1.bf16.msra.mxu0 0
        %556 = vmatprep.subr.bf16.mxu0 0
        %557 = vmatpush1.bf16.msra.mxu0 0
        %558 = vmatprep.subr.bf16.mxu0 0
        %559 = vmatpush1.bf16.msra.mxu0 0
        %560 = vmatprep.subr.bf16.mxu0 0
        %561 = vmatpush1.bf16.msra.mxu0 0
        %562 = vmatprep.mubr.bf16.mxu0 0
        %563 = vmatmul.mubr.bf16.gmra.mrb[0].mxu0 %v421
        %v564 = vpop.f32.mrb[0].mxu0
        %v565 = vadd.f32 %v443, %v564
        %v566 = vpop.f32.mrb[0].mxu0
        %v567 = vadd.f32 %v447, %v566
        %v568 = vpop.f32.mrb[0].mxu0
        %v569 = vadd.f32 %v443, %v568
        %v570 = vpop.f32.mrb[0].mxu0
        %v571 = vadd.f32 %v447, %v570
        %572 = vmatprep.mubr.bf16.mxu0 0
        %573 = vmatmul.mubr.bf16.gmra.mrb[0].mxu0 %v422
        %v574 = vpop.f32.mrb[0].mxu0
        %v575 = vadd.f32 %v443, %v574
        %v576 = vpop.f32.mrb[0].mxu0
        %v577 = vadd.f32 %v447, %v576
        %v578 = vpop.f32.mrb[0].mxu0
        %v579 = vadd.f32 %v443, %v578
        %v580 = vpop.f32.mrb[0].mxu0
        %v581 = vadd.f32 %v447, %v580
        %582 = vdwg.mxu0
        %v583 = vadd.f32 %v565, %v567
        %584 = vadd.xlane.f32.xlu0 %v583
        %v585 = vpop.xlane.xlu0 %584
        %v586 = vadd.f32 %v569, %v571
        %587 = vadd.xlane.f32.xlu0 %v586
        %v588 = vpop.xlane.xlu0 %587
        %v589 = vadd.f32 %v575, %v577
        %590 = vadd.xlane.f32.xlu0 %v589
        %v591 = vpop.xlane.xlu0 %590
        %v592 = vadd.f32 %v579, %v581
        %593 = vadd.xlane.f32.xlu0 %v592
        %v594 = vpop.xlane.xlu0 %593
        %v595 = vrcp.pop 256.0
        %v596 = vmul.f32 %v585, %v595
        %v597 = vmul.f32 %v588, %v595
        %v598 = vmul.f32 %v591, %v595
        %v599 = vmul.f32 %v594, %v595
        %v600 = vsub.f32 %v565, %v596
        %v601 = vsub.f32 %v567, %v596
        %v602 = vsub.f32 %v569, %v597
        %v603 = vsub.f32 %v571, %v597
        %v604 = vsub.f32 %v575, %v598
        %v605 = vsub.f32 %v577, %v598
        %v606 = vsub.f32 %v579, %v599
        %v607 = vsub.f32 %v581, %v599
        %v608 = vmul.f32 %v600, %v600
        %v609 = vmul.f32 %v601, %v601
        %v610 = vmul.f32 %v602, %v602
        %v611 = vmul.f32 %v603, %v603
        %v612 = vmul.f32 %v604, %v604
        %v613 = vmul.f32 %v605, %v605
        %v614 = vmul.f32 %v606, %v606
        %v615 = vmul.f32 %v607, %v607
        %v616 = vadd.f32 %v608, %v609
        %617 = vadd.xlane.f32.xlu0 %v616
        %v618 = vpop.xlane.xlu0 %617
        %v619 = vadd.f32 %v610, %v611
        %620 = vadd.xlane.f32.xlu0 %v619
        %v621 = vpop.xlane.xlu0 %620
        %v622 = vadd.f32 %v612, %v613
        %623 = vadd.xlane.f32.xlu0 %v622
        %v624 = vpop.xlane.xlu0 %623
        %v625 = vadd.f32 %v614, %v615
        %626 = vadd.xlane.f32.xlu0 %v625
        %v627 = vpop.xlane.xlu0 %626
        %v628 = vmul.f32 %v618, %v595
        %v629 = vmul.f32 %v621, %v595
        %v630 = vmul.f32 %v624, %v595
        %v631 = vmul.f32 %v627, %v595
        %v632 = vadd.f32 %v628, 1e-05
        %v633 = vadd.f32 %v629, 1e-05
        %v634 = vadd.f32 %v630, 1e-05
        %v635 = vadd.f32 %v631, 1e-05
        %v636 = vrsqrt.pop %v632
        %v637 = vrsqrt.pop %v633
        %v638 = vrsqrt.pop %v634
        %v639 = vrsqrt.pop %v635
        %v640 = vmul.f32 %v600, %v636
        %v641 = vmul.f32 %v601, %v636
        %v642 = vmul.f32 %v602, %v637
        %v643 = vmul.f32 %v603, %v637
        %v644 = vmul.f32 %v604, %v638
        %v645 = vmul.f32 %v605, %v638
        %v646 = vmul.f32 %v606, %v639
        %v647 = vmul.f32 %v607, %v639
        %v649 = vlaneseq
        %v650 = vshrl.u32 %v649, 7
        %v651 = vsub.s32 0, %v650
        %v652 = vrot.slane %v408, %v651
        %v653 = vlaneseq
        %v654 = vshrl.u32 %v653, 7
        %v655 = vsub.s32 1, %v654
        %v656 = vrot.slane %v408, %v655
        %v659 = vmul.f32 %v640, %v652
        %v660 = vmul.f32 %v641, %v656
        %v661 = vmul.f32 %v642, %v652
        %v662 = vmul.f32 %v643, %v656
        %v663 = vmul.f32 %v644, %v652
        %v664 = vmul.f32 %v645, %v656
        %v665 = vmul.f32 %v646, %v652
        %v666 = vmul.f32 %v647, %v656
        %v668 = vlaneseq
        %v669 = vshrl.u32 %v668, 7
        %v670 = vsub.s32 0, %v669
        %v671 = vrot.slane %v410, %v670
        %v672 = vlaneseq
        %v673 = vshrl.u32 %v672, 7
        %v674 = vsub.s32 1, %v673
        %v675 = vrot.slane %v410, %v674
        %v678 = vadd.f32 %v659, %v671
        %v679 = vadd.f32 %v660, %v675
        %v680 = vadd.f32 %v661, %v671
        %v681 = vadd.f32 %v662, %v675
        %v682 = vadd.f32 %v663, %v671
        %v683 = vadd.f32 %v664, %v675
        %v684 = vadd.f32 %v665, %v671
        %v685 = vadd.f32 %v666, %v675
        %v686 = vmul.f32 %v678, 0.2
        %v687 = vmul.f32 %v679, 0.2
        %v688 = vmul.f32 %v680, 0.2
        %v689 = vmul.f32 %v681, 0.2
        %v690 = vmul.f32 %v682, 0.2
        %v691 = vmul.f32 %v683, 0.2
        %v692 = vmul.f32 %v684, 0.2
        %v693 = vmul.f32 %v685, 0.2
        %v694 = vmax.f32 %v678, %v686
        %v695 = vmax.f32 %v679, %v687
        %v696 = vmax.f32 %v680, %v688
        %v697 = vmax.f32 %v681, %v689
        %v698 = vmax.f32 %v682, %v690
        %v699 = vmax.f32 %v683, %v691
        %v700 = vmax.f32 %v684, %v692
        %v701 = vmax.f32 %v685, %v693
        %v702 = vpack.c.bf16 %v696, %v694
        %v703 = vpack.c.bf16 %v697, %v695
        %v704 = vpack.c.bf16 %v700, %v698
        %v705 = vpack.c.bf16 %v701, %v699
        %v706 = vld [vmem:[#allocation6] sm:$0xff]
        %v707 = vld [vmem:[#allocation6 + $0x8] sm:$0xff]
        %v708 = vld [vmem:[#allocation6 + $0x10] sm:$0xff]
        %v709 = vld [vmem:[#allocation6 + $0x18] sm:$0xff]
        %v710 = vld [vmem:[#allocation6 + $0x20] sm:$0xff]
        %v711 = vld [vmem:[#allocation6 + $0x28] sm:$0xff]
        %v712 = vld [vmem:[#allocation6 + $0x30] sm:$0xff]
        %v713 = vld [vmem:[#allocation6 + $0x38] sm:$0xff]
        %v714 = vld [vmem:[#allocation6 + $0x40] sm:$0xff]
        %v715 = vld [vmem:[#allocation6 + $0x48] sm:$0xff]
        %v716 = vld [vmem:[#allocation6 + $0x50] sm:$0xff]
        %v717 = vld [vmem:[#allocation6 + $0x58] sm:$0xff]
        %v718 = vld [vmem:[#allocation6 + $0x60] sm:$0xff]
        %v719 = vld [vmem:[#allocation6 + $0x68] sm:$0xff]
        %v720 = vld [vmem:[#allocation6 + $0x70] sm:$0xff]
        %v721 = vld [vmem:[#allocation6 + $0x78] sm:$0xff]
        %v722 = vld [vmem:[#allocation6 + $0x80] sm:$0xff]
        %v723 = vld [vmem:[#allocation6 + $0x88] sm:$0xff]
        %v724 = vld [vmem:[#allocation6 + $0x90] sm:$0xff]
        %v725 = vld [vmem:[#allocation6 + $0x98] sm:$0xff]
        %v726 = vld [vmem:[#allocation6 + $0xa0] sm:$0xff]
        %v727 = vld [vmem:[#allocation6 + $0xa8] sm:$0xff]
        %v728 = vld [vmem:[#allocation6 + $0xb0] sm:$0xff]
        %v729 = vld [vmem:[#allocation6 + $0xb8] sm:$0xff]
        %v730 = vld [vmem:[#allocation6 + $0xc0] sm:$0xff]
        %v731 = vld [vmem:[#allocation6 + $0xc8] sm:$0xff]
        %v732 = vld [vmem:[#allocation6 + $0xd0] sm:$0xff]
        %v733 = vld [vmem:[#allocation6 + $0xd8] sm:$0xff]
        %v734 = vld [vmem:[#allocation6 + $0xe0] sm:$0xff]
        %v735 = vld [vmem:[#allocation6 + $0xe8] sm:$0xff]
        %v736 = vld [vmem:[#allocation6 + $0xf0] sm:$0xff]
        %v737 = vld [vmem:[#allocation6 + $0xf8] sm:$0xff]
        %v739 = vlaneseq
        %v740 = vshrl.u32 %v739, 7
        %v741 = vsub.s32 0, %v740
        %v742 = vrot.slane %v412, %v741
        %v743 = vlaneseq
        %v744 = vshrl.u32 %v743, 7
        %v745 = vsub.s32 1, %v744
        %v746 = vrot.slane %v412, %v745
        %v781 = vunpack.c.l.b16 %v706
        %v782 = vunpack.c.h.b16 %v706
        %v783 = vunpack.c.l.b16 %v707
        %v784 = vunpack.c.h.b16 %v707
        %v785 = vunpack.c.l.b16 %v708
        %v786 = vunpack.c.h.b16 %v708
        %v787 = vunpack.c.l.b16 %v709
        %v788 = vunpack.c.h.b16 %v709
        %v789 = vunpack.c.l.b16 %v710
        %v790 = vunpack.c.h.b16 %v710
        %v791 = vunpack.c.l.b16 %v711
        %v792 = vunpack.c.h.b16 %v711
        %v793 = vunpack.c.l.b16 %v712
        %v794 = vunpack.c.h.b16 %v712
        %v795 = vunpack.c.l.b16 %v713
        %v796 = vunpack.c.h.b16 %v713
        %v797 = vunpack.c.l.b16 %v714
        %v798 = vunpack.c.h.b16 %v714
        %v799 = vunpack.c.l.b16 %v715
        %v800 = vunpack.c.h.b16 %v715
        %v801 = vunpack.c.l.b16 %v716
        %v802 = vunpack.c.h.b16 %v716
        %v803 = vunpack.c.l.b16 %v717
        %v804 = vunpack.c.h.b16 %v717
        %v805 = vunpack.c.l.b16 %v718
        %v806 = vunpack.c.h.b16 %v718
        %v807 = vunpack.c.l.b16 %v719
        %v808 = vunpack.c.h.b16 %v719
        %v809 = vunpack.c.l.b16 %v720
        %v810 = vunpack.c.h.b16 %v720
        %v811 = vunpack.c.l.b16 %v721
        %v812 = vunpack.c.h.b16 %v721
        %v813 = vunpack.c.l.b16 %v722
        %v814 = vunpack.c.h.b16 %v722
        %v815 = vunpack.c.l.b16 %v723
        %v816 = vunpack.c.h.b16 %v723
        %v817 = vunpack.c.l.b16 %v724
        %v818 = vunpack.c.h.b16 %v724
        %v819 = vunpack.c.l.b16 %v725
        %v820 = vunpack.c.h.b16 %v725
        %v821 = vunpack.c.l.b16 %v726
        %v822 = vunpack.c.h.b16 %v726
        %v823 = vunpack.c.l.b16 %v727
        %v824 = vunpack.c.h.b16 %v727
        %v825 = vunpack.c.l.b16 %v728
        %v826 = vunpack.c.h.b16 %v728
        %v827 = vunpack.c.l.b16 %v729
        %v828 = vunpack.c.h.b16 %v729
        %v829 = vunpack.c.l.b16 %v730
        %v830 = vunpack.c.h.b16 %v730
        %v831 = vunpack.c.l.b16 %v731
        %v832 = vunpack.c.h.b16 %v731
        %v833 = vunpack.c.l.b16 %v732
        %v834 = vunpack.c.h.b16 %v732
        %v835 = vunpack.c.l.b16 %v733
        %v836 = vunpack.c.h.b16 %v733
        %v837 = vunpack.c.l.b16 %v734
        %v838 = vunpack.c.h.b16 %v734
        %v839 = vunpack.c.l.b16 %v735
        %v840 = vunpack.c.h.b16 %v735
        %v841 = vunpack.c.l.b16 %v736
        %v842 = vunpack.c.h.b16 %v736
        %v843 = vunpack.c.l.b16 %v737
        %v844 = vunpack.c.h.b16 %v737
        %v845 = vpack.c.b16 %v783, %v781
        %v846 = vpack.c.b16 %v784, %v782
        %v847 = vpack.c.b16 %v787, %v785
        %v848 = vpack.c.b16 %v788, %v786
        %v849 = vpack.c.b16 %v791, %v789
        %v850 = vpack.c.b16 %v792, %v790
        %v851 = vpack.c.b16 %v795, %v793
        %v852 = vpack.c.b16 %v796, %v794
        %v853 = vpack.c.b16 %v799, %v797
        %v854 = vpack.c.b16 %v800, %v798
        %v855 = vpack.c.b16 %v803, %v801
        %v856 = vpack.c.b16 %v804, %v802
        %v857 = vpack.c.b16 %v807, %v805
        %v858 = vpack.c.b16 %v808, %v806
        %v859 = vpack.c.b16 %v811, %v809
        %v860 = vpack.c.b16 %v812, %v810
        %v861 = vpack.c.b16 %v815, %v813
        %v862 = vpack.c.b16 %v816, %v814
        %v863 = vpack.c.b16 %v819, %v817
        %v864 = vpack.c.b16 %v820, %v818
        %v865 = vpack.c.b16 %v823, %v821
        %v866 = vpack.c.b16 %v824, %v822
        %v867 = vpack.c.b16 %v827, %v825
        %v868 = vpack.c.b16 %v828, %v826
        %v869 = vpack.c.b16 %v831, %v829
        %v870 = vpack.c.b16 %v832, %v830
        %v871 = vpack.c.b16 %v835, %v833
        %v872 = vpack.c.b16 %v836, %v834
        %v873 = vpack.c.b16 %v839, %v837
        %v874 = vpack.c.b16 %v840, %v838
        %v875 = vpack.c.b16 %v843, %v841
        %v876 = vpack.c.b16 %v844, %v842
        %909 = vmatprep.subr.bf16.mxu0 %v846
        %910 = vmatpush1.bf16.msra.mxu0 %v845
        %911 = vmatprep.subr.bf16.mxu0 %v848
        %912 = vmatpush1.bf16.msra.mxu0 %v847
        %913 = vmatprep.subr.bf16.mxu0 %v850
        %914 = vmatpush1.bf16.msra.mxu0 %v849
        %915 = vmatprep.subr.bf16.mxu0 %v852
        %916 = vmatpush1.bf16.msra.mxu0 %v851
        %917 = vmatprep.subr.bf16.mxu0 %v854
        %918 = vmatpush1.bf16.msra.mxu0 %v853
        %919 = vmatprep.subr.bf16.mxu0 %v856
        %920 = vmatpush1.bf16.msra.mxu0 %v855
        %921 = vmatprep.subr.bf16.mxu0 %v858
        %922 = vmatpush1.bf16.msra.mxu0 %v857
        %923 = vmatprep.subr.bf16.mxu0 %v860
        %924 = vmatpush1.bf16.msra.mxu0 %v859
        %925 = vmatprep.subr.bf16.mxu0 %v862
        %926 = vmatpush1.bf16.msra.mxu0 %v861
        %927 = vmatprep.subr.bf16.mxu0 %v864
        %928 = vmatpush1.bf16.msra.mxu0 %v863
        %929 = vmatprep.subr.bf16.mxu0 %v866
        %930 = vmatpush1.bf16.msra.mxu0 %v865
        %931 = vmatprep.subr.bf16.mxu0 %v868
        %932 = vmatpush1.bf16.msra.mxu0 %v867
        %933 = vmatprep.subr.bf16.mxu0 %v870
        %934 = vmatpush1.bf16.msra.mxu0 %v869
        %935 = vmatprep.subr.bf16.mxu0 %v872
        %936 = vmatpush1.bf16.msra.mxu0 %v871
        %937 = vmatprep.subr.bf16.mxu0 %v874
        %938 = vmatpush1.bf16.msra.mxu0 %v873
        %939 = vmatprep.subr.bf16.mxu0 %v876
        %940 = vmatpush1.bf16.msra.mxu0 %v875
        %941 = vmatprep.mubr.bf16.mxu0 %v703
        %942 = vmatmul.mubr.bf16.gmra.mrb[0].mxu0 %v702
        %v943 = vpop.f32.mrb[0].mxu0
        %v944 = vadd.f32 %v742, %v943
        %v945 = vpop.f32.mrb[0].mxu0
        %v946 = vadd.f32 %v746, %v945
        %v947 = vpop.f32.mrb[0].mxu0
        %v948 = vadd.f32 %v742, %v947
        %v949 = vpop.f32.mrb[0].mxu0
        %v950 = vadd.f32 %v746, %v949
        %951 = vmatprep.mubr.bf16.mxu0 %v705
        %952 = vmatmul.mubr.bf16.gmra.mrb[0].mxu0 %v704
        %v953 = vpop.f32.mrb[0].mxu0
        %v954 = vadd.f32 %v742, %v953
        %v955 = vpop.f32.mrb[0].mxu0
        %v956 = vadd.f32 %v746, %v955
        %v957 = vpop.f32.mrb[0].mxu0
        %v958 = vadd.f32 %v742, %v957
        %v959 = vpop.f32.mrb[0].mxu0
        %v960 = vadd.f32 %v746, %v959
        %961 = vdwg.mxu0
        %v962 = vadd.f32 %v944, %v946
        %963 = vadd.xlane.f32.xlu0 %v962
        %v964 = vpop.xlane.xlu0 %963
        %v965 = vadd.f32 %v948, %v950
        %966 = vadd.xlane.f32.xlu0 %v965
        %v967 = vpop.xlane.xlu0 %966
        %v968 = vadd.f32 %v954, %v956
        %969 = vadd.xlane.f32.xlu0 %v968
        %v970 = vpop.xlane.xlu0 %969
        %v971 = vadd.f32 %v958, %v960
        %972 = vadd.xlane.f32.xlu0 %v971
        %v973 = vpop.xlane.xlu0 %972
        %v974 = vmul.f32 %v964, %v595
        %v975 = vmul.f32 %v967, %v595
        %v976 = vmul.f32 %v970, %v595
        %v977 = vmul.f32 %v973, %v595
        %v978 = vsub.f32 %v944, %v974
        %v979 = vsub.f32 %v946, %v974
        %v980 = vsub.f32 %v948, %v975
        %v981 = vsub.f32 %v950, %v975
        %v982 = vsub.f32 %v954, %v976
        %v983 = vsub.f32 %v956, %v976
        %v984 = vsub.f32 %v958, %v977
        %v985 = vsub.f32 %v960, %v977
        %v986 = vmul.f32 %v978, %v978
        %v987 = vmul.f32 %v979, %v979
        %v988 = vmul.f32 %v980, %v980
        %v989 = vmul.f32 %v981, %v981
        %v990 = vmul.f32 %v982, %v982
        %v991 = vmul.f32 %v983, %v983
        %v992 = vmul.f32 %v984, %v984
        %v993 = vmul.f32 %v985, %v985
        %v994 = vadd.f32 %v986, %v987
        %995 = vadd.xlane.f32.xlu0 %v994
        %v996 = vpop.xlane.xlu0 %995
        %v997 = vadd.f32 %v988, %v989
        %998 = vadd.xlane.f32.xlu0 %v997
        %v999 = vpop.xlane.xlu0 %998
        %v1000 = vadd.f32 %v990, %v991
        %1001 = vadd.xlane.f32.xlu0 %v1000
        %v1002 = vpop.xlane.xlu0 %1001
        %v1003 = vadd.f32 %v992, %v993
        %1004 = vadd.xlane.f32.xlu0 %v1003
        %v1005 = vpop.xlane.xlu0 %1004
        %v1006 = vmul.f32 %v996, %v595
        %v1007 = vmul.f32 %v999, %v595
        %v1008 = vmul.f32 %v1002, %v595
        %v1009 = vmul.f32 %v1005, %v595
        %v1010 = vadd.f32 %v1006, 1e-05
        %v1011 = vadd.f32 %v1007, 1e-05
        %v1012 = vadd.f32 %v1008, 1e-05
        %v1013 = vadd.f32 %v1009, 1e-05
        %v1014 = vrsqrt.pop %v1010
        %v1015 = vrsqrt.pop %v1011
        %v1016 = vrsqrt.pop %v1012
        %v1017 = vrsqrt.pop %v1013
        %v1018 = vmul.f32 %v978, %v1014
        %v1019 = vmul.f32 %v979, %v1014
        %v1020 = vmul.f32 %v980, %v1015
        %v1021 = vmul.f32 %v981, %v1015
        %v1022 = vmul.f32 %v982, %v1016
        %v1023 = vmul.f32 %v983, %v1016
        %v1024 = vmul.f32 %v984, %v1017
        %v1025 = vmul.f32 %v985, %v1017
        %v1027 = vlaneseq
        %v1028 = vshrl.u32 %v1027, 7
        %v1029 = vsub.s32 0, %v1028
        %v1030 = vrot.slane %v414, %v1029
        %v1031 = vlaneseq
        %v1032 = vshrl.u32 %v1031, 7
        %v1033 = vsub.s32 1, %v1032
        %v1034 = vrot.slane %v414, %v1033
        %v1037 = vmul.f32 %v1018, %v1030
        %v1038 = vmul.f32 %v1019, %v1034
        %v1039 = vmul.f32 %v1020, %v1030
        %v1040 = vmul.f32 %v1021, %v1034
        %v1041 = vmul.f32 %v1022, %v1030
        %v1042 = vmul.f32 %v1023, %v1034
        %v1043 = vmul.f32 %v1024, %v1030
        %v1044 = vmul.f32 %v1025, %v1034
        %v1046 = vlaneseq
        %v1047 = vshrl.u32 %v1046, 7
        %v1048 = vsub.s32 0, %v1047
        %v1049 = vrot.slane %v416, %v1048
        %v1050 = vlaneseq
        %v1051 = vshrl.u32 %v1050, 7
        %v1052 = vsub.s32 1, %v1051
        %v1053 = vrot.slane %v416, %v1052
        %v1056 = vadd.f32 %v1037, %v1049
        %v1057 = vadd.f32 %v1038, %v1053
        %v1058 = vadd.f32 %v1039, %v1049
        %v1059 = vadd.f32 %v1040, %v1053
        %v1060 = vadd.f32 %v1041, %v1049
        %v1061 = vadd.f32 %v1042, %v1053
        %v1062 = vadd.f32 %v1043, %v1049
        %v1063 = vadd.f32 %v1044, %v1053
        %v1064 = vmul.f32 %v1056, 0.2
        %v1065 = vmul.f32 %v1057, 0.2
        %v1066 = vmul.f32 %v1058, 0.2
        %v1067 = vmul.f32 %v1059, 0.2
        %v1068 = vmul.f32 %v1060, 0.2
        %v1069 = vmul.f32 %v1061, 0.2
        %v1070 = vmul.f32 %v1062, 0.2
        %v1071 = vmul.f32 %v1063, 0.2
        %v1072 = vmax.f32 %v1056, %v1064
        %v1073 = vmax.f32 %v1057, %v1065
        %v1074 = vmax.f32 %v1058, %v1066
        %v1075 = vmax.f32 %v1059, %v1067
        %v1076 = vmax.f32 %v1060, %v1068
        %v1077 = vmax.f32 %v1061, %v1069
        %v1078 = vmax.f32 %v1062, %v1070
        %v1079 = vmax.f32 %v1063, %v1071
        %v1080 = vpack.c.bf16 %v1074, %v1072
        %v1081 = vpack.c.bf16 %v1075, %v1073
        %v1082 = vpack.c.bf16 %v1078, %v1076
        %v1083 = vpack.c.bf16 %v1079, %v1077
        %v1084 = vld [vmem:[#allocation7] sm:$0xf]
        %v1085 = vld [vmem:[#allocation7 + $0x20] sm:$0xf]
        %v1086 = vld [vmem:[#allocation7 + $0x40] sm:$0xf]
        %v1087 = vld [vmem:[#allocation7 + $0x60] sm:$0xf]
        %v1088 = vld [vmem:[#allocation7 + $0x80] sm:$0xf]
        %v1089 = vld [vmem:[#allocation7 + $0xa0] sm:$0xf]
        %v1090 = vld [vmem:[#allocation7 + $0xc0] sm:$0xf]
        %v1091 = vld [vmem:[#allocation7 + $0xe0] sm:$0xf]
        %v1092 = vld [vmem:[#allocation7 + $0x100] sm:$0xf]
        %v1093 = vld [vmem:[#allocation7 + $0x120] sm:$0xf]
        %v1094 = vld [vmem:[#allocation7 + $0x140] sm:$0xf]
        %v1095 = vld [vmem:[#allocation7 + $0x160] sm:$0xf]
        %v1096 = vld [vmem:[#allocation7 + $0x180] sm:$0xf]
        %v1097 = vld [vmem:[#allocation7 + $0x1a0] sm:$0xf]
        %v1098 = vld [vmem:[#allocation7 + $0x1c0] sm:$0xf]
        %v1099 = vld [vmem:[#allocation7 + $0x1e0] sm:$0xf]
        %v1100 = vld [vmem:[#allocation7 + $0x200] sm:$0xf]
        %v1101 = vld [vmem:[#allocation7 + $0x220] sm:$0xf]
        %v1102 = vld [vmem:[#allocation7 + $0x240] sm:$0xf]
        %v1103 = vld [vmem:[#allocation7 + $0x260] sm:$0xf]
        %v1104 = vld [vmem:[#allocation7 + $0x280] sm:$0xf]
        %v1105 = vld [vmem:[#allocation7 + $0x2a0] sm:$0xf]
        %v1106 = vld [vmem:[#allocation7 + $0x2c0] sm:$0xf]
        %v1107 = vld [vmem:[#allocation7 + $0x2e0] sm:$0xf]
        %v1108 = vld [vmem:[#allocation7 + $0x300] sm:$0xf]
        %v1109 = vld [vmem:[#allocation7 + $0x320] sm:$0xf]
        %v1110 = vld [vmem:[#allocation7 + $0x340] sm:$0xf]
        %v1111 = vld [vmem:[#allocation7 + $0x360] sm:$0xf]
        %v1112 = vld [vmem:[#allocation7 + $0x380] sm:$0xf]
        %v1113 = vld [vmem:[#allocation7 + $0x3a0] sm:$0xf]
        %v1114 = vld [vmem:[#allocation7 + $0x3c0] sm:$0xf]
        %v1115 = vld [vmem:[#allocation7 + $0x3e0] sm:$0xf]
        %v1116 = vld [vmem:[#allocation9] sm:$0x1]
        %v1117 = vlaneseq
        %v1118 = vshrl.u32 %v1117, 7
        %v1119 = vsub.s32 0, %v1118
        %v1120 = vrot.slane %v1116, %v1119
        %v1153 = vunpack.c.l.b16 %v1084
        %v1154 = vunpack.c.l.b16 %v1085
        %v1155 = vunpack.c.l.b16 %v1086
        %v1156 = vunpack.c.l.b16 %v1087
        %v1157 = vunpack.c.l.b16 %v1088
        %v1158 = vunpack.c.l.b16 %v1089
        %v1159 = vunpack.c.l.b16 %v1090
        %v1160 = vunpack.c.l.b16 %v1091
        %v1161 = vunpack.c.l.b16 %v1092
        %v1162 = vunpack.c.l.b16 %v1093
        %v1163 = vunpack.c.l.b16 %v1094
        %v1164 = vunpack.c.l.b16 %v1095
        %v1165 = vunpack.c.l.b16 %v1096
        %v1166 = vunpack.c.l.b16 %v1097
        %v1167 = vunpack.c.l.b16 %v1098
        %v1168 = vunpack.c.l.b16 %v1099
        %v1169 = vunpack.c.l.b16 %v1100
        %v1170 = vunpack.c.l.b16 %v1101
        %v1171 = vunpack.c.l.b16 %v1102
        %v1172 = vunpack.c.l.b16 %v1103
        %v1173 = vunpack.c.l.b16 %v1104
        %v1174 = vunpack.c.l.b16 %v1105
        %v1175 = vunpack.c.l.b16 %v1106
        %v1176 = vunpack.c.l.b16 %v1107
        %v1177 = vunpack.c.l.b16 %v1108
        %v1178 = vunpack.c.l.b16 %v1109
        %v1179 = vunpack.c.l.b16 %v1110
        %v1180 = vunpack.c.l.b16 %v1111
        %v1181 = vunpack.c.l.b16 %v1112
        %v1182 = vunpack.c.l.b16 %v1113
        %v1183 = vunpack.c.l.b16 %v1114
        %v1184 = vunpack.c.l.b16 %v1115
        %v1185 = vpack.c.b16 %v1154, %v1153
        %v1186 = vpack.c.b16 %v1156, %v1155
        %v1187 = vpack.c.b16 %v1158, %v1157
        %v1188 = vpack.c.b16 %v1160, %v1159
        %v1189 = vpack.c.b16 %v1162, %v1161
        %v1190 = vpack.c.b16 %v1164, %v1163
        %v1191 = vpack.c.b16 %v1166, %v1165
        %v1192 = vpack.c.b16 %v1168, %v1167
        %v1193 = vpack.c.b16 %v1170, %v1169
        %v1194 = vpack.c.b16 %v1172, %v1171
        %v1195 = vpack.c.b16 %v1174, %v1173
        %v1196 = vpack.c.b16 %v1176, %v1175
        %v1197 = vpack.c.b16 %v1178, %v1177
        %v1198 = vpack.c.b16 %v1180, %v1179
        %v1199 = vpack.c.b16 %v1182, %v1181
        %v1200 = vpack.c.b16 %v1184, %v1183
        %1217 = vmatprep.subr.bf16.mxu0 0
        %1218 = vmatpush1.bf16.msra.mxu0 %v1185
        %1219 = vmatprep.subr.bf16.mxu0 0
        %1220 = vmatpush1.bf16.msra.mxu0 %v1186
        %1221 = vmatprep.subr.bf16.mxu0 0
        %1222 = vmatpush1.bf16.msra.mxu0 %v1187
        %1223 = vmatprep.subr.bf16.mxu0 0
        %1224 = vmatpush1.bf16.msra.mxu0 %v1188
        %1225 = vmatprep.subr.bf16.mxu0 0
        %1226 = vmatpush1.bf16.msra.mxu0 %v1189
        %1227 = vmatprep.subr.bf16.mxu0 0
        %1228 = vmatpush1.bf16.msra.mxu0 %v1190
        %1229 = vmatprep.subr.bf16.mxu0 0
        %1230 = vmatpush1.bf16.msra.mxu0 %v1191
        %1231 = vmatprep.subr.bf16.mxu0 0
        %1232 = vmatpush1.bf16.msra.mxu0 %v1192
        %1233 = vmatprep.subr.bf16.mxu0 0
        %1234 = vmatpush1.bf16.msra.mxu0 %v1193
        %1235 = vmatprep.subr.bf16.mxu0 0
        %1236 = vmatpush1.bf16.msra.mxu0 %v1194
        %1237 = vmatprep.subr.bf16.mxu0 0
        %1238 = vmatpush1.bf16.msra.mxu0 %v1195
        %1239 = vmatprep.subr.bf16.mxu0 0
        %1240 = vmatpush1.bf16.msra.mxu0 %v1196
        %1241 = vmatprep.subr.bf16.mxu0 0
        %1242 = vmatpush1.bf16.msra.mxu0 %v1197
        %1243 = vmatprep.subr.bf16.mxu0 0
        %1244 = vmatpush1.bf16.msra.mxu0 %v1198
        %1245 = vmatprep.subr.bf16.mxu0 0
        %1246 = vmatpush1.bf16.msra.mxu0 %v1199
        %1247 = vmatprep.subr.bf16.mxu0 0
        %1248 = vmatpush1.bf16.msra.mxu0 %v1200
        %1249 = vmatprep.mubr.bf16.mxu0 %v1081
        %1250 = vmatmul.mubr.bf16.gmra.mrb[0].mxu0 %v1080
        %v1251 = vpop.f32.mrb[0].mxu0
        %v1252 = vadd.f32 %v1120, %v1251
        %v1253 = vpop.f32.mrb[0].mxu0
        %v1254 = vpop.f32.mrb[0].mxu0
        %v1255 = vadd.f32 %v1120, %v1254
        %v1256 = vpop.f32.mrb[0].mxu0
        %1257 = vmatprep.mubr.bf16.mxu0 %v1083
        %1258 = vmatmul.mubr.bf16.gmra.mrb[0].mxu0 %v1082
        %v1259 = vpop.f32.mrb[0].mxu0
        %v1260 = vadd.f32 %v1120, %v1259
        %v1261 = vpop.f32.mrb[0].mxu0
        %v1262 = vpop.f32.mrb[0].mxu0
        %v1263 = vadd.f32 %v1120, %v1262
        %v1264 = vpop.f32.mrb[0].mxu0
        %1265 = vdwg.mxu0
        %v1266 = vld [vmem:[#allocation9 + $0x1] sm:$0x1]
        %v1267 = vld [vmem:[#allocation9 + $0x2] sm:$0x1]
        %1268 = vadd.xlane.f32.xlu0 %v1252
        %v1269 = vpop.xlane.xlu0 %1268
        %1270 = vadd.xlane.f32.xlu0 %v1255
        %v1271 = vpop.xlane.xlu0 %1270
        %1272 = vadd.xlane.f32.xlu0 %v1260
        %v1273 = vpop.xlane.xlu0 %1272
        %1274 = vadd.xlane.f32.xlu0 %v1263
        %v1275 = vpop.xlane.xlu0 %1274
        %v1276 = vrcp.pop 128.0
        %v1277 = vmul.f32 %v1269, %v1276
        %v1278 = vmul.f32 %v1271, %v1276
        %v1279 = vmul.f32 %v1273, %v1276
        %v1280 = vmul.f32 %v1275, %v1276
        %v1281 = vsub.f32 %v1252, %v1277
        %v1282 = vsub.f32 %v1255, %v1278
        %v1283 = vsub.f32 %v1260, %v1279
        %v1284 = vsub.f32 %v1263, %v1280
        %v1285 = vmul.f32 %v1281, %v1281
        %v1286 = vmul.f32 %v1282, %v1282
        %v1287 = vmul.f32 %v1283, %v1283
        %v1288 = vmul.f32 %v1284, %v1284
        %1289 = vadd.xlane.f32.xlu0 %v1285
        %v1290 = vpop.xlane.xlu0 %1289
        %1291 = vadd.xlane.f32.xlu0 %v1286
        %v1292 = vpop.xlane.xlu0 %1291
        %1293 = vadd.xlane.f32.xlu0 %v1287
        %v1294 = vpop.xlane.xlu0 %1293
        %1295 = vadd.xlane.f32.xlu0 %v1288
        %v1296 = vpop.xlane.xlu0 %1295
        %v1297 = vmul.f32 %v1290, %v1276
        %v1298 = vmul.f32 %v1292, %v1276
        %v1299 = vmul.f32 %v1294, %v1276
        %v1300 = vmul.f32 %v1296, %v1276
        %v1301 = vadd.f32 %v1297, 1e-05
        %v1302 = vadd.f32 %v1298, 1e-05
        %v1303 = vadd.f32 %v1299, 1e-05
        %v1304 = vadd.f32 %v1300, 1e-05
        %v1305 = vrsqrt.pop %v1301
        %v1306 = vrsqrt.pop %v1302
        %v1307 = vrsqrt.pop %v1303
        %v1308 = vrsqrt.pop %v1304
        %v1309 = vmul.f32 %v1281, %v1305
        %v1310 = vmul.f32 %v1282, %v1306
        %v1311 = vmul.f32 %v1283, %v1307
        %v1312 = vmul.f32 %v1284, %v1308
        %v1313 = vlaneseq
        %v1314 = vshrl.u32 %v1313, 7
        %v1315 = vsub.s32 0, %v1314
        %v1316 = vrot.slane %v1266, %v1315
        %v1317 = vmul.f32 %v1309, %v1316
        %v1318 = vmul.f32 %v1310, %v1316
        %v1319 = vmul.f32 %v1311, %v1316
        %v1320 = vmul.f32 %v1312, %v1316
        %v1321 = vlaneseq
        %v1322 = vshrl.u32 %v1321, 7
        %v1323 = vsub.s32 0, %v1322
        %v1324 = vrot.slane %v1267, %v1323
        %v1325 = vadd.f32 %v1317, %v1324
        %v1326 = vadd.f32 %v1318, %v1324
        %v1327 = vadd.f32 %v1319, %v1324
        %v1328 = vadd.f32 %v1320, %v1324
        %v1329 = vmul.f32 %v1325, 0.2
        %v1330 = vmul.f32 %v1326, 0.2
        %v1331 = vmul.f32 %v1327, 0.2
        %v1332 = vmul.f32 %v1328, 0.2
        %v1333 = vmax.f32 %v1325, %v1329
        %v1334 = vmax.f32 %v1326, %v1330
        %v1335 = vmax.f32 %v1327, %v1331
        %v1336 = vmax.f32 %v1328, %v1332
        %v1337 = vpack.c.bf16 %v1334, %v1333
        %v1338 = vpack.c.bf16 %v1336, %v1335
        %v1339 = vld [vmem:[#allocation10] sm:$0xf]
        %v1340 = vld [vmem:[#allocation10 + $0x4] sm:$0xf]
        %v1341 = vld [vmem:[#allocation10 + $0x8] sm:$0xf]
        %v1342 = vld [vmem:[#allocation10 + $0xc] sm:$0xf]
        %v1343 = vld [vmem:[#allocation10 + $0x10] sm:$0xf]
        %v1344 = vld [vmem:[#allocation10 + $0x14] sm:$0xf]
        %v1345 = vld [vmem:[#allocation10 + $0x18] sm:$0xf]
        %v1346 = vld [vmem:[#allocation10 + $0x1c] sm:$0xf]
        %v1347 = vld [vmem:[#allocation10 + $0x20] sm:$0xf]
        %v1348 = vld [vmem:[#allocation10 + $0x24] sm:$0xf]
        %v1349 = vld [vmem:[#allocation10 + $0x28] sm:$0xf]
        %v1350 = vld [vmem:[#allocation10 + $0x2c] sm:$0xf]
        %v1351 = vld [vmem:[#allocation10 + $0x30] sm:$0xf]
        %v1352 = vld [vmem:[#allocation10 + $0x34] sm:$0xf]
        %v1353 = vld [vmem:[#allocation10 + $0x38] sm:$0xf]
        %v1354 = vld [vmem:[#allocation10 + $0x3c] sm:$0xf]
        %v1355 = vld [vmem:[#allocation12] sm:$0x1]
        %v1356 = vlaneseq
        %v1357 = vshrl.u32 %v1356, 7
        %v1358 = vsub.s32 0, %v1357
        %v1359 = vrot.slane %v1355, %v1358
        %v1376 = vunpack.c.l.b16 %v1339
        %v1377 = vunpack.c.l.b16 %v1340
        %v1378 = vunpack.c.l.b16 %v1341
        %v1379 = vunpack.c.l.b16 %v1342
        %v1380 = vunpack.c.l.b16 %v1343
        %v1381 = vunpack.c.l.b16 %v1344
        %v1382 = vunpack.c.l.b16 %v1345
        %v1383 = vunpack.c.l.b16 %v1346
        %v1384 = vunpack.c.l.b16 %v1347
        %v1385 = vunpack.c.l.b16 %v1348
        %v1386 = vunpack.c.l.b16 %v1349
        %v1387 = vunpack.c.l.b16 %v1350
        %v1388 = vunpack.c.l.b16 %v1351
        %v1389 = vunpack.c.l.b16 %v1352
        %v1390 = vunpack.c.l.b16 %v1353
        %v1391 = vunpack.c.l.b16 %v1354
        %v1392 = vpack.c.b16 %v1377, %v1376
        %v1393 = vpack.c.b16 %v1379, %v1378
        %v1394 = vpack.c.b16 %v1381, %v1380
        %v1395 = vpack.c.b16 %v1383, %v1382
        %v1396 = vpack.c.b16 %v1385, %v1384
        %v1397 = vpack.c.b16 %v1387, %v1386
        %v1398 = vpack.c.b16 %v1389, %v1388
        %v1399 = vpack.c.b16 %v1391, %v1390
        %1408 = vmatprep.subr.bf16.mxu0 0
        %1409 = vmatpush1.bf16.msra.mxu0 %v1392
        %1410 = vmatprep.subr.bf16.mxu0 0
        %1411 = vmatpush1.bf16.msra.mxu0 %v1393
        %1412 = vmatprep.subr.bf16.mxu0 0
        %1413 = vmatpush1.bf16.msra.mxu0 %v1394
        %1414 = vmatprep.subr.bf16.mxu0 0
        %1415 = vmatpush1.bf16.msra.mxu0 %v1395
        %1416 = vmatprep.subr.bf16.mxu0 0
        %1417 = vmatpush1.bf16.msra.mxu0 %v1396
        %1418 = vmatprep.subr.bf16.mxu0 0
        %1419 = vmatpush1.bf16.msra.mxu0 %v1397
        %1420 = vmatprep.subr.bf16.mxu0 0
        %1421 = vmatpush1.bf16.msra.mxu0 %v1398
        %1422 = vmatprep.subr.bf16.mxu0 0
        %1423 = vmatpush1.bf16.msra.mxu0 %v1399
        %1424 = vmatprep.subr.bf16.mxu0 0
        %1425 = vmatpush1.bf16.msra.mxu0 0
        %1426 = vmatprep.subr.bf16.mxu0 0
        %1427 = vmatpush1.bf16.msra.mxu0 0
        %1428 = vmatprep.subr.bf16.mxu0 0
        %1429 = vmatpush1.bf16.msra.mxu0 0
        %1430 = vmatprep.subr.bf16.mxu0 0
        %1431 = vmatpush1.bf16.msra.mxu0 0
        %1432 = vmatprep.subr.bf16.mxu0 0
        %1433 = vmatpush1.bf16.msra.mxu0 0
        %1434 = vmatprep.subr.bf16.mxu0 0
        %1435 = vmatpush1.bf16.msra.mxu0 0
        %1436 = vmatprep.subr.bf16.mxu0 0
        %1437 = vmatpush1.bf16.msra.mxu0 0
        %1438 = vmatprep.subr.bf16.mxu0 0
        %1439 = vmatpush1.bf16.msra.mxu0 0
        %1440 = vmatprep.mubr.bf16.mxu0 0
        %1441 = vmatmul.mubr.bf16.gmra.mrb[0].mxu0 %v1337
        %v1442 = vpop.f32.mrb[0].mxu0
        %v1443 = vadd.f32 %v1359, %v1442
        %v1444 = vpop.f32.mrb[0].mxu0
        %v1445 = vpop.f32.mrb[0].mxu0
        %v1446 = vadd.f32 %v1359, %v1445
        %v1447 = vpop.f32.mrb[0].mxu0
        %1448 = vmatprep.mubr.bf16.mxu0 0
        %1449 = vmatmul.mubr.bf16.gmra.mrb[0].mxu0 %v1338
        %v1450 = vpop.f32.mrb[0].mxu0
        %v1451 = vadd.f32 %v1359, %v1450
        %v1452 = vpop.f32.mrb[0].mxu0
        %v1453 = vpop.f32.mrb[0].mxu0
        %v1454 = vadd.f32 %v1359, %v1453
        %v1455 = vpop.f32.mrb[0].mxu0
        %1456 = vdwg.mxu0
        %1457 = vst [vmem:[%s402] sm:$0xff] %v1443
        %1458 = vst [vmem:[%s402 + $0x8] sm:$0xff] %v1446
        %1459 = vst [vmem:[%s402 + $0x10] sm:$0xff] %v1451
        %1460 = vst [vmem:[%s402 + $0x18] sm:$0xff] %v1454
        %v1461 = vld [vmem:[#allocation7 + $0x4] sm:$0xf]
        %v1462 = vld [vmem:[#allocation7 + $0x24] sm:$0xf]
        %v1463 = vld [vmem:[#allocation7 + $0x44] sm:$0xf]
        %v1464 = vld [vmem:[#allocation7 + $0x64] sm:$0xf]
        %v1465 = vld [vmem:[#allocation7 + $0x84] sm:$0xf]
        %v1466 = vld [vmem:[#allocation7 + $0xa4] sm:$0xf]
        %v1467 = vld [vmem:[#allocation7 + $0xc4] sm:$0xf]
        %v1468 = vld [vmem:[#allocation7 + $0xe4] sm:$0xf]
        %v1469 = vld [vmem:[#allocation7 + $0x104] sm:$0xf]
        %v1470 = vld [vmem:[#allocation7 + $0x124] sm:$0xf]
        %v1471 = vld [vmem:[#allocation7 + $0x144] sm:$0xf]
        %v1472 = vld [vmem:[#allocation7 + $0x164] sm:$0xf]
        %v1473 = vld [vmem:[#allocation7 + $0x184] sm:$0xf]
        %v1474 = vld [vmem:[#allocation7 + $0x1a4] sm:$0xf]
        %v1475 = vld [vmem:[#allocation7 + $0x1c4] sm:$0xf]
        %v1476 = vld [vmem:[#allocation7 + $0x1e4] sm:$0xf]
        %v1477 = vld [vmem:[#allocation7 + $0x204] sm:$0xf]
        %v1478 = vld [vmem:[#allocation7 + $0x224] sm:$0xf]
        %v1479 = vld [vmem:[#allocation7 + $0x244] sm:$0xf]
        %v1480 = vld [vmem:[#allocation7 + $0x264] sm:$0xf]
        %v1481 = vld [vmem:[#allocation7 + $0x284] sm:$0xf]
        %v1482 = vld [vmem:[#allocation7 + $0x2a4] sm:$0xf]
        %v1483 = vld [vmem:[#allocation7 + $0x2c4] sm:$0xf]
        %v1484 = vld [vmem:[#allocation7 + $0x2e4] sm:$0xf]
        %v1485 = vld [vmem:[#allocation7 + $0x304] sm:$0xf]
        %v1486 = vld [vmem:[#allocation7 + $0x324] sm:$0xf]
        %v1487 = vld [vmem:[#allocation7 + $0x344] sm:$0xf]
        %v1488 = vld [vmem:[#allocation7 + $0x364] sm:$0xf]
        %v1489 = vld [vmem:[#allocation7 + $0x384] sm:$0xf]
        %v1490 = vld [vmem:[#allocation7 + $0x3a4] sm:$0xf]
        %v1491 = vld [vmem:[#allocation7 + $0x3c4] sm:$0xf]
        %v1492 = vld [vmem:[#allocation7 + $0x3e4] sm:$0xf]
        %v1493 = vld [vmem:[#allocation9 + $0x4] sm:$0x1]
        %v1494 = vlaneseq
        %v1495 = vshrl.u32 %v1494, 7
        %v1496 = vsub.s32 0, %v1495
        %v1497 = vrot.slane %v1493, %v1496
        %v1530 = vunpack.c.l.b16 %v1461
        %v1531 = vunpack.c.l.b16 %v1462
        %v1532 = vunpack.c.l.b16 %v1463
        %v1533 = vunpack.c.l.b16 %v1464
        %v1534 = vunpack.c.l.b16 %v1465
        %v1535 = vunpack.c.l.b16 %v1466
        %v1536 = vunpack.c.l.b16 %v1467
        %v1537 = vunpack.c.l.b16 %v1468
        %v1538 = vunpack.c.l.b16 %v1469
        %v1539 = vunpack.c.l.b16 %v1470
        %v1540 = vunpack.c.l.b16 %v1471
        %v1541 = vunpack.c.l.b16 %v1472
        %v1542 = vunpack.c.l.b16 %v1473
        %v1543 = vunpack.c.l.b16 %v1474
        %v1544 = vunpack.c.l.b16 %v1475
        %v1545 = vunpack.c.l.b16 %v1476
        %v1546 = vunpack.c.l.b16 %v1477
        %v1547 = vunpack.c.l.b16 %v1478
        %v1548 = vunpack.c.l.b16 %v1479
        %v1549 = vunpack.c.l.b16 %v1480
        %v1550 = vunpack.c.l.b16 %v1481
        %v1551 = vunpack.c.l.b16 %v1482
        %v1552 = vunpack.c.l.b16 %v1483
        %v1553 = vunpack.c.l.b16 %v1484
        %v1554 = vunpack.c.l.b16 %v1485
        %v1555 = vunpack.c.l.b16 %v1486
        %v1556 = vunpack.c.l.b16 %v1487
        %v1557 = vunpack.c.l.b16 %v1488
        %v1558 = vunpack.c.l.b16 %v1489
        %v1559 = vunpack.c.l.b16 %v1490
        %v1560 = vunpack.c.l.b16 %v1491
        %v1561 = vunpack.c.l.b16 %v1492
        %v1562 = vpack.c.b16 %v1531, %v1530
        %v1563 = vpack.c.b16 %v1533, %v1532
        %v1564 = vpack.c.b16 %v1535, %v1534
        %v1565 = vpack.c.b16 %v1537, %v1536
        %v1566 = vpack.c.b16 %v1539, %v1538
        %v1567 = vpack.c.b16 %v1541, %v1540
        %v1568 = vpack.c.b16 %v1543, %v1542
        %v1569 = vpack.c.b16 %v1545, %v1544
        %v1570 = vpack.c.b16 %v1547, %v1546
        %v1571 = vpack.c.b16 %v1549, %v1548
        %v1572 = vpack.c.b16 %v1551, %v1550
        %v1573 = vpack.c.b16 %v1553, %v1552
        %v1574 = vpack.c.b16 %v1555, %v1554
        %v1575 = vpack.c.b16 %v1557, %v1556
        %v1576 = vpack.c.b16 %v1559, %v1558
        %v1577 = vpack.c.b16 %v1561, %v1560
        %1594 = vmatprep.subr.bf16.mxu0 0
        %1595 = vmatpush1.bf16.msra.mxu0 %v1562
        %1596 = vmatprep.subr.bf16.mxu0 0
        %1597 = vmatpush1.bf16.msra.mxu0 %v1563
        %1598 = vmatprep.subr.bf16.mxu0 0
        %1599 = vmatpush1.bf16.msra.mxu0 %v1564
        %1600 = vmatprep.subr.bf16.mxu0 0
        %1601 = vmatpush1.bf16.msra.mxu0 %v1565
        %1602 = vmatprep.subr.bf16.mxu0 0
        %1603 = vmatpush1.bf16.msra.mxu0 %v1566
        %1604 = vmatprep.subr.bf16.mxu0 0
        %1605 = vmatpush1.bf16.msra.mxu0 %v1567
        %1606 = vmatprep.subr.bf16.mxu0 0
        %1607 = vmatpush1.bf16.msra.mxu0 %v1568
        %1608 = vmatprep.subr.bf16.mxu0 0
        %1609 = vmatpush1.bf16.msra.mxu0 %v1569
        %1610 = vmatprep.subr.bf16.mxu0 0
        %1611 = vmatpush1.bf16.msra.mxu0 %v1570
        %1612 = vmatprep.subr.bf16.mxu0 0
        %1613 = vmatpush1.bf16.msra.mxu0 %v1571
        %1614 = vmatprep.subr.bf16.mxu0 0
        %1615 = vmatpush1.bf16.msra.mxu0 %v1572
        %1616 = vmatprep.subr.bf16.mxu0 0
        %1617 = vmatpush1.bf16.msra.mxu0 %v1573
        %1618 = vmatprep.subr.bf16.mxu0 0
        %1619 = vmatpush1.bf16.msra.mxu0 %v1574
        %1620 = vmatprep.subr.bf16.mxu0 0
        %1621 = vmatpush1.bf16.msra.mxu0 %v1575
        %1622 = vmatprep.subr.bf16.mxu0 0
        %1623 = vmatpush1.bf16.msra.mxu0 %v1576
        %1624 = vmatprep.subr.bf16.mxu0 0
        %1625 = vmatpush1.bf16.msra.mxu0 %v1577
        %1626 = vmatprep.mubr.bf16.mxu0 %v1081
        %1627 = vmatmul.mubr.bf16.gmra.mrb[0].mxu0 %v1080
        %v1628 = vpop.f32.mrb[0].mxu0
        %v1629 = vadd.f32 %v1497, %v1628
        %v1630 = vpop.f32.mrb[0].mxu0
        %v1631 = vpop.f32.mrb[0].mxu0
        %v1632 = vadd.f32 %v1497, %v1631
        %v1633 = vpop.f32.mrb[0].mxu0
        %1634 = vmatprep.mubr.bf16.mxu0 %v1083
        %1635 = vmatmul.mubr.bf16.gmra.mrb[0].mxu0 %v1082
        %v1636 = vpop.f32.mrb[0].mxu0
        %v1637 = vadd.f32 %v1497, %v1636
        %v1638 = vpop.f32.mrb[0].mxu0
        %v1639 = vpop.f32.mrb[0].mxu0
        %v1640 = vadd.f32 %v1497, %v1639
        %v1641 = vpop.f32.mrb[0].mxu0
        %1642 = vdwg.mxu0
        %v1643 = vld [vmem:[#allocation9 + $0x5] sm:$0x1]
        %v1644 = vld [vmem:[#allocation9 + $0x6] sm:$0x1]
        %1645 = vadd.xlane.f32.xlu0 %v1629
        %v1646 = vpop.xlane.xlu0 %1645
        %1647 = vadd.xlane.f32.xlu0 %v1632
        %v1648 = vpop.xlane.xlu0 %1647
        %1649 = vadd.xlane.f32.xlu0 %v1637
        %v1650 = vpop.xlane.xlu0 %1649
        %1651 = vadd.xlane.f32.xlu0 %v1640
        %v1652 = vpop.xlane.xlu0 %1651
        %v1653 = vmul.f32 %v1646, %v1276
        %v1654 = vmul.f32 %v1648, %v1276
        %v1655 = vmul.f32 %v1650, %v1276
        %v1656 = vmul.f32 %v1652, %v1276
        %v1657 = vsub.f32 %v1629, %v1653
        %v1658 = vsub.f32 %v1632, %v1654
        %v1659 = vsub.f32 %v1637, %v1655
        %v1660 = vsub.f32 %v1640, %v1656
        %v1661 = vmul.f32 %v1657, %v1657
        %v1662 = vmul.f32 %v1658, %v1658
        %v1663 = vmul.f32 %v1659, %v1659
        %v1664 = vmul.f32 %v1660, %v1660
        %1665 = vadd.xlane.f32.xlu0 %v1661
        %v1666 = vpop.xlane.xlu0 %1665
        %1667 = vadd.xlane.f32.xlu0 %v1662
        %v1668 = vpop.xlane.xlu0 %1667
        %1669 = vadd.xlane.f32.xlu0 %v1663
        %v1670 = vpop.xlane.xlu0 %1669
        %1671 = vadd.xlane.f32.xlu0 %v1664
        %v1672 = vpop.xlane.xlu0 %1671
        %v1673 = vmul.f32 %v1666, %v1276
        %v1674 = vmul.f32 %v1668, %v1276
        %v1675 = vmul.f32 %v1670, %v1276
        %v1676 = vmul.f32 %v1672, %v1276
        %v1677 = vadd.f32 %v1673, 1e-05
        %v1678 = vadd.f32 %v1674, 1e-05
        %v1679 = vadd.f32 %v1675, 1e-05
        %v1680 = vadd.f32 %v1676, 1e-05
        %v1681 = vrsqrt.pop %v1677
        %v1682 = vrsqrt.pop %v1678
        %v1683 = vrsqrt.pop %v1679
        %v1684 = vrsqrt.pop %v1680
        %v1685 = vmul.f32 %v1657, %v1681
        %v1686 = vmul.f32 %v1658, %v1682
        %v1687 = vmul.f32 %v1659, %v1683
        %v1688 = vmul.f32 %v1660, %v1684
        %v1689 = vlaneseq
        %v1690 = vshrl.u32 %v1689, 7
        %v1691 = vsub.s32 0, %v1690
        %v1692 = vrot.slane %v1643, %v1691
        %v1693 = vmul.f32 %v1685, %v1692
        %v1694 = vmul.f32 %v1686, %v1692
        %v1695 = vmul.f32 %v1687, %v1692
        %v1696 = vmul.f32 %v1688, %v1692
        %v1697 = vlaneseq
        %v1698 = vshrl.u32 %v1697, 7
        %v1699 = vsub.s32 0, %v1698
        %v1700 = vrot.slane %v1644, %v1699
        %v1701 = vadd.f32 %v1693, %v1700
        %v1702 = vadd.f32 %v1694, %v1700
        %v1703 = vadd.f32 %v1695, %v1700
        %v1704 = vadd.f32 %v1696, %v1700
        %v1705 = vmul.f32 %v1701, 0.2
        %v1706 = vmul.f32 %v1702, 0.2
        %v1707 = vmul.f32 %v1703, 0.2
        %v1708 = vmul.f32 %v1704, 0.2
        %v1709 = vmax.f32 %v1701, %v1705
        %v1710 = vmax.f32 %v1702, %v1706
        %v1711 = vmax.f32 %v1703, %v1707
        %v1712 = vmax.f32 %v1704, %v1708
        %v1713 = vpack.c.bf16 %v1710, %v1709
        %v1714 = vpack.c.bf16 %v1712, %v1711
        %s1715 = scalar_lea.vmem [#allocation10], 64
        %v1716 = vld [vmem:[%s1715] sm:$0xf]
        %v1717 = vld [vmem:[%s1715 + $0x4] sm:$0xf]
        %v1718 = vld [vmem:[%s1715 + $0x8] sm:$0xf]
        %v1719 = vld [vmem:[%s1715 + $0xc] sm:$0xf]
        %v1720 = vld [vmem:[%s1715 + $0x10] sm:$0xf]
        %v1721 = vld [vmem:[%s1715 + $0x14] sm:$0xf]
        %v1722 = vld [vmem:[%s1715 + $0x18] sm:$0xf]
        %v1723 = vld [vmem:[%s1715 + $0x1c] sm:$0xf]
        %v1724 = vld [vmem:[%s1715 + $0x20] sm:$0xf]
        %v1725 = vld [vmem:[%s1715 + $0x24] sm:$0xf]
        %v1726 = vld [vmem:[%s1715 + $0x28] sm:$0xf]
        %v1727 = vld [vmem:[%s1715 + $0x2c] sm:$0xf]
        %v1728 = vld [vmem:[%s1715 + $0x30] sm:$0xf]
        %v1729 = vld [vmem:[%s1715 + $0x34] sm:$0xf]
        %v1730 = vld [vmem:[%s1715 + $0x38] sm:$0xf]
        %v1731 = vld [vmem:[%s1715 + $0x3c] sm:$0xf]
        %v1732 = vld [vmem:[#allocation12 + $0x1] sm:$0x1]
        %v1733 = vlaneseq
        %v1734 = vshrl.u32 %v1733, 7
        %v1735 = vsub.s32 0, %v1734
        %v1736 = vrot.slane %v1732, %v1735
        %v1753 = vunpack.c.l.b16 %v1716
        %v1754 = vunpack.c.l.b16 %v1717
        %v1755 = vunpack.c.l.b16 %v1718
        %v1756 = vunpack.c.l.b16 %v1719
        %v1757 = vunpack.c.l.b16 %v1720
        %v1758 = vunpack.c.l.b16 %v1721
        %v1759 = vunpack.c.l.b16 %v1722
        %v1760 = vunpack.c.l.b16 %v1723
        %v1761 = vunpack.c.l.b16 %v1724
        %v1762 = vunpack.c.l.b16 %v1725
        %v1763 = vunpack.c.l.b16 %v1726
        %v1764 = vunpack.c.l.b16 %v1727
        %v1765 = vunpack.c.l.b16 %v1728
        %v1766 = vunpack.c.l.b16 %v1729
        %v1767 = vunpack.c.l.b16 %v1730
        %v1768 = vunpack.c.l.b16 %v1731
        %v1769 = vpack.c.b16 %v1754, %v1753
        %v1770 = vpack.c.b16 %v1756, %v1755
        %v1771 = vpack.c.b16 %v1758, %v1757
        %v1772 = vpack.c.b16 %v1760, %v1759
        %v1773 = vpack.c.b16 %v1762, %v1761
        %v1774 = vpack.c.b16 %v1764, %v1763
        %v1775 = vpack.c.b16 %v1766, %v1765
        %v1776 = vpack.c.b16 %v1768, %v1767
        %1785 = vmatprep.subr.bf16.mxu0 0
        %1786 = vmatpush1.bf16.msra.mxu0 %v1769
        %1787 = vmatprep.subr.bf16.mxu0 0
        %1788 = vmatpush1.bf16.msra.mxu0 %v1770
        %1789 = vmatprep.subr.bf16.mxu0 0
        %1790 = vmatpush1.bf16.msra.mxu0 %v1771
        %1791 = vmatprep.subr.bf16.mxu0 0
        %1792 = vmatpush1.bf16.msra.mxu0 %v1772
        %1793 = vmatprep.subr.bf16.mxu0 0
        %1794 = vmatpush1.bf16.msra.mxu0 %v1773
        %1795 = vmatprep.subr.bf16.mxu0 0
        %1796 = vmatpush1.bf16.msra.mxu0 %v1774
        %1797 = vmatprep.subr.bf16.mxu0 0
        %1798 = vmatpush1.bf16.msra.mxu0 %v1775
        %1799 = vmatprep.subr.bf16.mxu0 0
        %1800 = vmatpush1.bf16.msra.mxu0 %v1776
        %1801 = vmatprep.subr.bf16.mxu0 0
        %1802 = vmatpush1.bf16.msra.mxu0 0
        %1803 = vmatprep.subr.bf16.mxu0 0
        %1804 = vmatpush1.bf16.msra.mxu0 0
        %1805 = vmatprep.subr.bf16.mxu0 0
        %1806 = vmatpush1.bf16.msra.mxu0 0
        %1807 = vmatprep.subr.bf16.mxu0 0
        %1808 = vmatpush1.bf16.msra.mxu0 0
        %1809 = vmatprep.subr.bf16.mxu0 0
        %1810 = vmatpush1.bf16.msra.mxu0 0
        %1811 = vmatprep.subr.bf16.mxu0 0
        %1812 = vmatpush1.bf16.msra.mxu0 0
        %1813 = vmatprep.subr.bf16.mxu0 0
        %1814 = vmatpush1.bf16.msra.mxu0 0
        %1815 = vmatprep.subr.bf16.mxu0 0
        %1816 = vmatpush1.bf16.msra.mxu0 0
        %1817 = vmatprep.mubr.bf16.mxu0 0
        %1818 = vmatmul.mubr.bf16.gmra.mrb[0].mxu0 %v1713
        %v1819 = vpop.f32.mrb[0].mxu0
        %v1820 = vadd.f32 %v1736, %v1819
        %v1821 = vpop.f32.mrb[0].mxu0
        %v1822 = vpop.f32.mrb[0].mxu0
        %v1823 = vadd.f32 %v1736, %v1822
        %v1824 = vpop.f32.mrb[0].mxu0
        %1825 = vmatprep.mubr.bf16.mxu0 0
        %1826 = vmatmul.mubr.bf16.gmra.mrb[0].mxu0 %v1714
        %v1827 = vpop.f32.mrb[0].mxu0
        %v1828 = vadd.f32 %v1736, %v1827
        %v1829 = vpop.f32.mrb[0].mxu0
        %v1830 = vpop.f32.mrb[0].mxu0
        %v1831 = vadd.f32 %v1736, %v1830
        %v1832 = vpop.f32.mrb[0].mxu0
        %1833 = vdwg.mxu0
        %s1834 = scalar_lea.vmem %s402, 32 [#allocation13]
        %1835 = vst [vmem:[%s1834] sm:$0xff] %v1820
        %1836 = vst [vmem:[%s1834 + $0x8] sm:$0xff] %v1823
        %1837 = vst [vmem:[%s1834 + $0x10] sm:$0xff] %v1828
        %1838 = vst [vmem:[%s1834 + $0x18] sm:$0xff] %v1831
        %v1839 = vld [vmem:[#allocation7 + $0x8] sm:$0xf]
        %v1840 = vld [vmem:[#allocation7 + $0x28] sm:$0xf]
        %v1841 = vld [vmem:[#allocation7 + $0x48] sm:$0xf]
        %v1842 = vld [vmem:[#allocation7 + $0x68] sm:$0xf]
        %v1843 = vld [vmem:[#allocation7 + $0x88] sm:$0xf]
        %v1844 = vld [vmem:[#allocation7 + $0xa8] sm:$0xf]
        %v1845 = vld [vmem:[#allocation7 + $0xc8] sm:$0xf]
        %v1846 = vld [vmem:[#allocation7 + $0xe8] sm:$0xf]
        %v1847 = vld [vmem:[#allocation7 + $0x108] sm:$0xf]
        %v1848 = vld [vmem:[#allocation7 + $0x128] sm:$0xf]
        %v1849 = vld [vmem:[#allocation7 + $0x148] sm:$0xf]
        %v1850 = vld [vmem:[#allocation7 + $0x168] sm:$0xf]
        %v1851 = vld [vmem:[#allocation7 + $0x188] sm:$0xf]
        %v1852 = vld [vmem:[#allocation7 + $0x1a8] sm:$0xf]
        %v1853 = vld [vmem:[#allocation7 + $0x1c8] sm:$0xf]
        %v1854 = vld [vmem:[#allocation7 + $0x1e8] sm:$0xf]
        %v1855 = vld [vmem:[#allocation7 + $0x208] sm:$0xf]
        %v1856 = vld [vmem:[#allocation7 + $0x228] sm:$0xf]
        %v1857 = vld [vmem:[#allocation7 + $0x248] sm:$0xf]
        %v1858 = vld [vmem:[#allocation7 + $0x268] sm:$0xf]
        %v1859 = vld [vmem:[#allocation7 + $0x288] sm:$0xf]
        %v1860 = vld [vmem:[#allocation7 + $0x2a8] sm:$0xf]
        %v1861 = vld [vmem:[#allocation7 + $0x2c8] sm:$0xf]
        %v1862 = vld [vmem:[#allocation7 + $0x2e8] sm:$0xf]
        %v1863 = vld [vmem:[#allocation7 + $0x308] sm:$0xf]
        %v1864 = vld [vmem:[#allocation7 + $0x328] sm:$0xf]
        %v1865 = vld [vmem:[#allocation7 + $0x348] sm:$0xf]
        %v1866 = vld [vmem:[#allocation7 + $0x368] sm:$0xf]
        %v1867 = vld [vmem:[#allocation7 + $0x388] sm:$0xf]
        %v1868 = vld [vmem:[#allocation7 + $0x3a8] sm:$0xf]
        %v1869 = vld [vmem:[#allocation7 + $0x3c8] sm:$0xf]
        %v1870 = vld [vmem:[#allocation7 + $0x3e8] sm:$0xf]
        %v1871 = vld [vmem:[#allocation9 + $0x8] sm:$0x1]
        %v1872 = vlaneseq
        %v1873 = vshrl.u32 %v1872, 7
        %v1874 = vsub.s32 0, %v1873
        %v1875 = vrot.slane %v1871, %v1874
        %v1908 = vunpack.c.l.b16 %v1839
        %v1909 = vunpack.c.l.b16 %v1840
        %v1910 = vunpack.c.l.b16 %v1841
        %v1911 = vunpack.c.l.b16 %v1842
        %v1912 = vunpack.c.l.b16 %v1843
        %v1913 = vunpack.c.l.b16 %v1844
        %v1914 = vunpack.c.l.b16 %v1845
        %v1915 = vunpack.c.l.b16 %v1846
        %v1916 = vunpack.c.l.b16 %v1847
        %v1917 = vunpack.c.l.b16 %v1848
        %v1918 = vunpack.c.l.b16 %v1849
        %v1919 = vunpack.c.l.b16 %v1850
        %v1920 = vunpack.c.l.b16 %v1851
        %v1921 = vunpack.c.l.b16 %v1852
        %v1922 = vunpack.c.l.b16 %v1853
        %v1923 = vunpack.c.l.b16 %v1854
        %v1924 = vunpack.c.l.b16 %v1855
        %v1925 = vunpack.c.l.b16 %v1856
        %v1926 = vunpack.c.l.b16 %v1857
        %v1927 = vunpack.c.l.b16 %v1858
        %v1928 = vunpack.c.l.b16 %v1859
        %v1929 = vunpack.c.l.b16 %v1860
        %v1930 = vunpack.c.l.b16 %v1861
        %v1931 = vunpack.c.l.b16 %v1862
        %v1932 = vunpack.c.l.b16 %v1863
        %v1933 = vunpack.c.l.b16 %v1864
        %v1934 = vunpack.c.l.b16 %v1865
        %v1935 = vunpack.c.l.b16 %v1866
        %v1936 = vunpack.c.l.b16 %v1867
        %v1937 = vunpack.c.l.b16 %v1868
        %v1938 = vunpack.c.l.b16 %v1869
        %v1939 = vunpack.c.l.b16 %v1870
        %v1940 = vpack.c.b16 %v1909, %v1908
        %v1941 = vpack.c.b16 %v1911, %v1910
        %v1942 = vpack.c.b16 %v1913, %v1912
        %v1943 = vpack.c.b16 %v1915, %v1914
        %v1944 = vpack.c.b16 %v1917, %v1916
        %v1945 = vpack.c.b16 %v1919, %v1918
        %v1946 = vpack.c.b16 %v1921, %v1920
        %v1947 = vpack.c.b16 %v1923, %v1922
        %v1948 = vpack.c.b16 %v1925, %v1924
        %v1949 = vpack.c.b16 %v1927, %v1926
        %v1950 = vpack.c.b16 %v1929, %v1928
        %v1951 = vpack.c.b16 %v1931, %v1930
        %v1952 = vpack.c.b16 %v1933, %v1932
        %v1953 = vpack.c.b16 %v1935, %v1934
        %v1954 = vpack.c.b16 %v1937, %v1936
        %v1955 = vpack.c.b16 %v1939, %v1938
        %1972 = vmatprep.subr.bf16.mxu0 0
        %1973 = vmatpush1.bf16.msra.mxu0 %v1940
        %1974 = vmatprep.subr.bf16.mxu0 0
        %1975 = vmatpush1.bf16.msra.mxu0 %v1941
        %1976 = vmatprep.subr.bf16.mxu0 0
        %1977 = vmatpush1.bf16.msra.mxu0 %v1942
        %1978 = vmatprep.subr.bf16.mxu0 0
        %1979 = vmatpush1.bf16.msra.mxu0 %v1943
        %1980 = vmatprep.subr.bf16.mxu0 0
        %1981 = vmatpush1.bf16.msra.mxu0 %v1944
        %1982 = vmatprep.subr.bf16.mxu0 0
        %1983 = vmatpush1.bf16.msra.mxu0 %v1945
        %1984 = vmatprep.subr.bf16.mxu0 0
        %1985 = vmatpush1.bf16.msra.mxu0 %v1946
        %1986 = vmatprep.subr.bf16.mxu0 0
        %1987 = vmatpush1.bf16.msra.mxu0 %v1947
        %1988 = vmatprep.subr.bf16.mxu0 0
        %1989 = vmatpush1.bf16.msra.mxu0 %v1948
        %1990 = vmatprep.subr.bf16.mxu0 0
        %1991 = vmatpush1.bf16.msra.mxu0 %v1949
        %1992 = vmatprep.subr.bf16.mxu0 0
        %1993 = vmatpush1.bf16.msra.mxu0 %v1950
        %1994 = vmatprep.subr.bf16.mxu0 0
        %1995 = vmatpush1.bf16.msra.mxu0 %v1951
        %1996 = vmatprep.subr.bf16.mxu0 0
        %1997 = vmatpush1.bf16.msra.mxu0 %v1952
        %1998 = vmatprep.subr.bf16.mxu0 0
        %1999 = vmatpush1.bf16.msra.mxu0 %v1953
        %2000 = vmatprep.subr.bf16.mxu0 0
        %2001 = vmatpush1.bf16.msra.mxu0 %v1954
        %2002 = vmatprep.subr.bf16.mxu0 0
        %2003 = vmatpush1.bf16.msra.mxu0 %v1955
        %2004 = vmatprep.mubr.bf16.mxu0 %v1081
        %2005 = vmatmul.mubr.bf16.gmra.mrb[0].mxu0 %v1080
        %v2006 = vpop.f32.mrb[0].mxu0
        %v2007 = vadd.f32 %v1875, %v2006
        %v2008 = vpop.f32.mrb[0].mxu0
        %v2009 = vpop.f32.mrb[0].mxu0
        %v2010 = vadd.f32 %v1875, %v2009
        %v2011 = vpop.f32.mrb[0].mxu0
        %2012 = vmatprep.mubr.bf16.mxu0 %v1083
        %2013 = vmatmul.mubr.bf16.gmra.mrb[0].mxu0 %v1082
        %v2014 = vpop.f32.mrb[0].mxu0
        %v2015 = vadd.f32 %v1875, %v2014
        %v2016 = vpop.f32.mrb[0].mxu0
        %v2017 = vpop.f32.mrb[0].mxu0
        %v2018 = vadd.f32 %v1875, %v2017
        %v2019 = vpop.f32.mrb[0].mxu0
        %2020 = vdwg.mxu0
        %v2021 = vld [vmem:[#allocation9 + $0x9] sm:$0x1]
        %v2022 = vld [vmem:[#allocation9 + $0xa] sm:$0x1]
        %2023 = vadd.xlane.f32.xlu0 %v2007
        %v2024 = vpop.xlane.xlu0 %2023
        %2025 = vadd.xlane.f32.xlu0 %v2010
        %v2026 = vpop.xlane.xlu0 %2025
        %2027 = vadd.xlane.f32.xlu0 %v2015
        %v2028 = vpop.xlane.xlu0 %2027
        %2029 = vadd.xlane.f32.xlu0 %v2018
        %v2030 = vpop.xlane.xlu0 %2029
        %v2031 = vmul.f32 %v2024, %v1276
        %v2032 = vmul.f32 %v2026, %v1276
        %v2033 = vmul.f32 %v2028, %v1276
        %v2034 = vmul.f32 %v2030, %v1276
        %v2035 = vsub.f32 %v2007, %v2031
        %v2036 = vsub.f32 %v2010, %v2032
        %v2037 = vsub.f32 %v2015, %v2033
        %v2038 = vsub.f32 %v2018, %v2034
        %v2039 = vmul.f32 %v2035, %v2035
        %v2040 = vmul.f32 %v2036, %v2036
        %v2041 = vmul.f32 %v2037, %v2037
        %v2042 = vmul.f32 %v2038, %v2038
        %2043 = vadd.xlane.f32.xlu0 %v2039
        %v2044 = vpop.xlane.xlu0 %2043
        %2045 = vadd.xlane.f32.xlu0 %v2040
        %v2046 = vpop.xlane.xlu0 %2045
        %2047 = vadd.xlane.f32.xlu0 %v2041
        %v2048 = vpop.xlane.xlu0 %2047
        %2049 = vadd.xlane.f32.xlu0 %v2042
        %v2050 = vpop.xlane.xlu0 %2049
        %v2051 = vmul.f32 %v2044, %v1276
        %v2052 = vmul.f32 %v2046, %v1276
        %v2053 = vmul.f32 %v2048, %v1276
        %v2054 = vmul.f32 %v2050, %v1276
        %v2055 = vadd.f32 %v2051, 1e-05
        %v2056 = vadd.f32 %v2052, 1e-05
        %v2057 = vadd.f32 %v2053, 1e-05
        %v2058 = vadd.f32 %v2054, 1e-05
        %v2059 = vrsqrt.pop %v2055
        %v2060 = vrsqrt.pop %v2056
        %v2061 = vrsqrt.pop %v2057
        %v2062 = vrsqrt.pop %v2058
        %v2063 = vmul.f32 %v2035, %v2059
        %v2064 = vmul.f32 %v2036, %v2060
        %v2065 = vmul.f32 %v2037, %v2061
        %v2066 = vmul.f32 %v2038, %v2062
        %v2067 = vlaneseq
        %v2068 = vshrl.u32 %v2067, 7
        %v2069 = vsub.s32 0, %v2068
        %v2070 = vrot.slane %v2021, %v2069
        %v2071 = vmul.f32 %v2063, %v2070
        %v2072 = vmul.f32 %v2064, %v2070
        %v2073 = vmul.f32 %v2065, %v2070
        %v2074 = vmul.f32 %v2066, %v2070
        %v2075 = vlaneseq
        %v2076 = vshrl.u32 %v2075, 7
        %v2077 = vsub.s32 0, %v2076
        %v2078 = vrot.slane %v2022, %v2077
        %v2079 = vadd.f32 %v2071, %v2078
        %v2080 = vadd.f32 %v2072, %v2078
        %v2081 = vadd.f32 %v2073, %v2078
        %v2082 = vadd.f32 %v2074, %v2078
        %v2083 = vmul.f32 %v2079, 0.2
        %v2084 = vmul.f32 %v2080, 0.2
        %v2085 = vmul.f32 %v2081, 0.2
        %v2086 = vmul.f32 %v2082, 0.2
        %v2087 = vmax.f32 %v2079, %v2083
        %v2088 = vmax.f32 %v2080, %v2084
        %v2089 = vmax.f32 %v2081, %v2085
        %v2090 = vmax.f32 %v2082, %v2086
        %v2091 = vpack.c.bf16 %v2088, %v2087
        %v2092 = vpack.c.bf16 %v2090, %v2089
        %s2093 = scalar_lea.vmem [#allocation10], 128
        %v2094 = vld [vmem:[%s2093] sm:$0xf]
        %v2095 = vld [vmem:[%s2093 + $0x4] sm:$0xf]
        %v2096 = vld [vmem:[%s2093 + $0x8] sm:$0xf]
        %v2097 = vld [vmem:[%s2093 + $0xc] sm:$0xf]
        %v2098 = vld [vmem:[%s2093 + $0x10] sm:$0xf]
        %v2099 = vld [vmem:[%s2093 + $0x14] sm:$0xf]
        %v2100 = vld [vmem:[%s2093 + $0x18] sm:$0xf]
        %v2101 = vld [vmem:[%s2093 + $0x1c] sm:$0xf]
        %v2102 = vld [vmem:[%s2093 + $0x20] sm:$0xf]
        %v2103 = vld [vmem:[%s2093 + $0x24] sm:$0xf]
        %v2104 = vld [vmem:[%s2093 + $0x28] sm:$0xf]
        %v2105 = vld [vmem:[%s2093 + $0x2c] sm:$0xf]
        %v2106 = vld [vmem:[%s2093 + $0x30] sm:$0xf]
        %v2107 = vld [vmem:[%s2093 + $0x34] sm:$0xf]
        %v2108 = vld [vmem:[%s2093 + $0x38] sm:$0xf]
        %v2109 = vld [vmem:[%s2093 + $0x3c] sm:$0xf]
        %v2110 = vld [vmem:[#allocation12 + $0x2] sm:$0x1]
        %v2111 = vlaneseq
        %v2112 = vshrl.u32 %v2111, 7
        %v2113 = vsub.s32 0, %v2112
        %v2114 = vrot.slane %v2110, %v2113
        %v2131 = vunpack.c.l.b16 %v2094
        %v2132 = vunpack.c.l.b16 %v2095
        %v2133 = vunpack.c.l.b16 %v2096
        %v2134 = vunpack.c.l.b16 %v2097
        %v2135 = vunpack.c.l.b16 %v2098
        %v2136 = vunpack.c.l.b16 %v2099
        %v2137 = vunpack.c.l.b16 %v2100
        %v2138 = vunpack.c.l.b16 %v2101
        %v2139 = vunpack.c.l.b16 %v2102
        %v2140 = vunpack.c.l.b16 %v2103
        %v2141 = vunpack.c.l.b16 %v2104
        %v2142 = vunpack.c.l.b16 %v2105
        %v2143 = vunpack.c.l.b16 %v2106
        %v2144 = vunpack.c.l.b16 %v2107
        %v2145 = vunpack.c.l.b16 %v2108
        %v2146 = vunpack.c.l.b16 %v2109
        %v2147 = vpack.c.b16 %v2132, %v2131
        %v2148 = vpack.c.b16 %v2134, %v2133
        %v2149 = vpack.c.b16 %v2136, %v2135
        %v2150 = vpack.c.b16 %v2138, %v2137
        %v2151 = vpack.c.b16 %v2140, %v2139
        %v2152 = vpack.c.b16 %v2142, %v2141
        %v2153 = vpack.c.b16 %v2144, %v2143
        %v2154 = vpack.c.b16 %v2146, %v2145
        %2163 = vmatprep.subr.bf16.mxu0 0
        %2164 = vmatpush1.bf16.msra.mxu0 %v2147
        %2165 = vmatprep.subr.bf16.mxu0 0
        %2166 = vmatpush1.bf16.msra.mxu0 %v2148
        %2167 = vmatprep.subr.bf16.mxu0 0
        %2168 = vmatpush1.bf16.msra.mxu0 %v2149
        %2169 = vmatprep.subr.bf16.mxu0 0
        %2170 = vmatpush1.bf16.msra.mxu0 %v2150
        %2171 = vmatprep.subr.bf16.mxu0 0
        %2172 = vmatpush1.bf16.msra.mxu0 %v2151
        %2173 = vmatprep.subr.bf16.mxu0 0
        %2174 = vmatpush1.bf16.msra.mxu0 %v2152
        %2175 = vmatprep.subr.bf16.mxu0 0
        %2176 = vmatpush1.bf16.msra.mxu0 %v2153
        %2177 = vmatprep.subr.bf16.mxu0 0
        %2178 = vmatpush1.bf16.msra.mxu0 %v2154
        %2179 = vmatprep.subr.bf16.mxu0 0
        %2180 = vmatpush1.bf16.msra.mxu0 0
        %2181 = vmatprep.subr.bf16.mxu0 0
        %2182 = vmatpush1.bf16.msra.mxu0 0
        %2183 = vmatprep.subr.bf16.mxu0 0
        %2184 = vmatpush1.bf16.msra.mxu0 0
        %2185 = vmatprep.subr.bf16.mxu0 0
        %2186 = vmatpush1.bf16.msra.mxu0 0
        %2187 = vmatprep.subr.bf16.mxu0 0
        %2188 = vmatpush1.bf16.msra.mxu0 0
        %2189 = vmatprep.subr.bf16.mxu0 0
        %2190 = vmatpush1.bf16.msra.mxu0 0
        %2191 = vmatprep.subr.bf16.mxu0 0
        %2192 = vmatpush1.bf16.msra.mxu0 0
        %2193 = vmatprep.subr.bf16.mxu0 0
        %2194 = vmatpush1.bf16.msra.mxu0 0
        %2195 = vmatprep.mubr.bf16.mxu0 0
        %2196 = vmatmul.mubr.bf16.gmra.mrb[0].mxu0 %v2091
        %v2197 = vpop.f32.mrb[0].mxu0
        %v2198 = vadd.f32 %v2114, %v2197
        %v2199 = vpop.f32.mrb[0].mxu0
        %v2200 = vpop.f32.mrb[0].mxu0
        %v2201 = vadd.f32 %v2114, %v2200
        %v2202 = vpop.f32.mrb[0].mxu0
        %2203 = vmatprep.mubr.bf16.mxu0 0
        %2204 = vmatmul.mubr.bf16.gmra.mrb[0].mxu0 %v2092
        %v2205 = vpop.f32.mrb[0].mxu0
        %v2206 = vadd.f32 %v2114, %v2205
        %v2207 = vpop.f32.mrb[0].mxu0
        %v2208 = vpop.f32.mrb[0].mxu0
        %v2209 = vadd.f32 %v2114, %v2208
        %v2210 = vpop.f32.mrb[0].mxu0
        %2211 = vdwg.mxu0
        %s2212 = scalar_lea.vmem %s402, 64 [#allocation13]
        %2213 = vst [vmem:[%s2212] sm:$0xff] %v2198
        %2214 = vst [vmem:[%s2212 + $0x8] sm:$0xff] %v2201
        %2215 = vst [vmem:[%s2212 + $0x10] sm:$0xff] %v2206
        %2216 = vst [vmem:[%s2212 + $0x18] sm:$0xff] %v2209
        %v2217 = vld [vmem:[#allocation7 + $0xc] sm:$0xf]
        %v2218 = vld [vmem:[#allocation7 + $0x2c] sm:$0xf]
        %v2219 = vld [vmem:[#allocation7 + $0x4c] sm:$0xf]
        %v2220 = vld [vmem:[#allocation7 + $0x6c] sm:$0xf]
        %v2221 = vld [vmem:[#allocation7 + $0x8c] sm:$0xf]
        %v2222 = vld [vmem:[#allocation7 + $0xac] sm:$0xf]
        %v2223 = vld [vmem:[#allocation7 + $0xcc] sm:$0xf]
        %v2224 = vld [vmem:[#allocation7 + $0xec] sm:$0xf]
        %v2225 = vld [vmem:[#allocation7 + $0x10c] sm:$0xf]
        %v2226 = vld [vmem:[#allocation7 + $0x12c] sm:$0xf]
        %v2227 = vld [vmem:[#allocation7 + $0x14c] sm:$0xf]
        %v2228 = vld [vmem:[#allocation7 + $0x16c] sm:$0xf]
        %v2229 = vld [vmem:[#allocation7 + $0x18c] sm:$0xf]
        %v2230 = vld [vmem:[#allocation7 + $0x1ac] sm:$0xf]
        %v2231 = vld [vmem:[#allocation7 + $0x1cc] sm:$0xf]
        %v2232 = vld [vmem:[#allocation7 + $0x1ec] sm:$0xf]
        %v2233 = vld [vmem:[#allocation7 + $0x20c] sm:$0xf]
        %v2234 = vld [vmem:[#allocation7 + $0x22c] sm:$0xf]
        %v2235 = vld [vmem:[#allocation7 + $0x24c] sm:$0xf]
        %v2236 = vld [vmem:[#allocation7 + $0x26c] sm:$0xf]
        %v2237 = vld [vmem:[#allocation7 + $0x28c] sm:$0xf]
        %v2238 = vld [vmem:[#allocation7 + $0x2ac] sm:$0xf]
        %v2239 = vld [vmem:[#allocation7 + $0x2cc] sm:$0xf]
        %v2240 = vld [vmem:[#allocation7 + $0x2ec] sm:$0xf]
        %v2241 = vld [vmem:[#allocation7 + $0x30c] sm:$0xf]
        %v2242 = vld [vmem:[#allocation7 + $0x32c] sm:$0xf]
        %v2243 = vld [vmem:[#allocation7 + $0x34c] sm:$0xf]
        %v2244 = vld [vmem:[#allocation7 + $0x36c] sm:$0xf]
        %v2245 = vld [vmem:[#allocation7 + $0x38c] sm:$0xf]
        %v2246 = vld [vmem:[#allocation7 + $0x3ac] sm:$0xf]
        %v2247 = vld [vmem:[#allocation7 + $0x3cc] sm:$0xf]
        %v2248 = vld [vmem:[#allocation7 + $0x3ec] sm:$0xf]
        %v2249 = vld [vmem:[#allocation9 + $0xc] sm:$0x1]
        %v2250 = vlaneseq
        %v2251 = vshrl.u32 %v2250, 7
        %v2252 = vsub.s32 0, %v2251
        %v2253 = vrot.slane %v2249, %v2252
        %v2286 = vunpack.c.l.b16 %v2217
        %v2287 = vunpack.c.l.b16 %v2218
        %v2288 = vunpack.c.l.b16 %v2219
        %v2289 = vunpack.c.l.b16 %v2220
        %v2290 = vunpack.c.l.b16 %v2221
        %v2291 = vunpack.c.l.b16 %v2222
        %v2292 = vunpack.c.l.b16 %v2223
        %v2293 = vunpack.c.l.b16 %v2224
        %v2294 = vunpack.c.l.b16 %v2225
        %v2295 = vunpack.c.l.b16 %v2226
        %v2296 = vunpack.c.l.b16 %v2227
        %v2297 = vunpack.c.l.b16 %v2228
        %v2298 = vunpack.c.l.b16 %v2229
        %v2299 = vunpack.c.l.b16 %v2230
        %v2300 = vunpack.c.l.b16 %v2231
        %v2301 = vunpack.c.l.b16 %v2232
        %v2302 = vunpack.c.l.b16 %v2233
        %v2303 = vunpack.c.l.b16 %v2234
        %v2304 = vunpack.c.l.b16 %v2235
        %v2305 = vunpack.c.l.b16 %v2236
        %v2306 = vunpack.c.l.b16 %v2237
        %v2307 = vunpack.c.l.b16 %v2238
        %v2308 = vunpack.c.l.b16 %v2239
        %v2309 = vunpack.c.l.b16 %v2240
        %v2310 = vunpack.c.l.b16 %v2241
        %v2311 = vunpack.c.l.b16 %v2242
        %v2312 = vunpack.c.l.b16 %v2243
        %v2313 = vunpack.c.l.b16 %v2244
        %v2314 = vunpack.c.l.b16 %v2245
        %v2315 = vunpack.c.l.b16 %v2246
        %v2316 = vunpack.c.l.b16 %v2247
        %v2317 = vunpack.c.l.b16 %v2248
        %v2318 = vpack.c.b16 %v2287, %v2286
        %v2319 = vpack.c.b16 %v2289, %v2288
        %v2320 = vpack.c.b16 %v2291, %v2290
        %v2321 = vpack.c.b16 %v2293, %v2292
        %v2322 = vpack.c.b16 %v2295, %v2294
        %v2323 = vpack.c.b16 %v2297, %v2296
        %v2324 = vpack.c.b16 %v2299, %v2298
        %v2325 = vpack.c.b16 %v2301, %v2300
        %v2326 = vpack.c.b16 %v2303, %v2302
        %v2327 = vpack.c.b16 %v2305, %v2304
        %v2328 = vpack.c.b16 %v2307, %v2306
        %v2329 = vpack.c.b16 %v2309, %v2308
        %v2330 = vpack.c.b16 %v2311, %v2310
        %v2331 = vpack.c.b16 %v2313, %v2312
        %v2332 = vpack.c.b16 %v2315, %v2314
        %v2333 = vpack.c.b16 %v2317, %v2316
        %2350 = vmatprep.subr.bf16.mxu0 0
        %2351 = vmatpush1.bf16.msra.mxu0 %v2318
        %2352 = vmatprep.subr.bf16.mxu0 0
        %2353 = vmatpush1.bf16.msra.mxu0 %v2319
        %2354 = vmatprep.subr.bf16.mxu0 0
        %2355 = vmatpush1.bf16.msra.mxu0 %v2320
        %2356 = vmatprep.subr.bf16.mxu0 0
        %2357 = vmatpush1.bf16.msra.mxu0 %v2321
        %2358 = vmatprep.subr.bf16.mxu0 0
        %2359 = vmatpush1.bf16.msra.mxu0 %v2322
        %2360 = vmatprep.subr.bf16.mxu0 0
        %2361 = vmatpush1.bf16.msra.mxu0 %v2323
        %2362 = vmatprep.subr.bf16.mxu0 0
        %2363 = vmatpush1.bf16.msra.mxu0 %v2324
        %2364 = vmatprep.subr.bf16.mxu0 0
        %2365 = vmatpush1.bf16.msra.mxu0 %v2325
        %2366 = vmatprep.subr.bf16.mxu0 0
        %2367 = vmatpush1.bf16.msra.mxu0 %v2326
        %2368 = vmatprep.subr.bf16.mxu0 0
        %2369 = vmatpush1.bf16.msra.mxu0 %v2327
        %2370 = vmatprep.subr.bf16.mxu0 0
        %2371 = vmatpush1.bf16.msra.mxu0 %v2328
        %2372 = vmatprep.subr.bf16.mxu0 0
        %2373 = vmatpush1.bf16.msra.mxu0 %v2329
        %2374 = vmatprep.subr.bf16.mxu0 0
        %2375 = vmatpush1.bf16.msra.mxu0 %v2330
        %2376 = vmatprep.subr.bf16.mxu0 0
        %2377 = vmatpush1.bf16.msra.mxu0 %v2331
        %2378 = vmatprep.subr.bf16.mxu0 0
        %2379 = vmatpush1.bf16.msra.mxu0 %v2332
        %2380 = vmatprep.subr.bf16.mxu0 0
        %2381 = vmatpush1.bf16.msra.mxu0 %v2333
        %2382 = vmatprep.mubr.bf16.mxu0 %v1081
        %2383 = vmatmul.mubr.bf16.gmra.mrb[0].mxu0 %v1080
        %v2384 = vpop.f32.mrb[0].mxu0
        %v2385 = vadd.f32 %v2253, %v2384
        %v2386 = vpop.f32.mrb[0].mxu0
        %v2387 = vpop.f32.mrb[0].mxu0
        %v2388 = vadd.f32 %v2253, %v2387
        %v2389 = vpop.f32.mrb[0].mxu0
        %2390 = vmatprep.mubr.bf16.mxu0 %v1083
        %2391 = vmatmul.mubr.bf16.gmra.mrb[0].mxu0 %v1082
        %v2392 = vpop.f32.mrb[0].mxu0
        %v2393 = vadd.f32 %v2253, %v2392
        %v2394 = vpop.f32.mrb[0].mxu0
        %v2395 = vpop.f32.mrb[0].mxu0
        %v2396 = vadd.f32 %v2253, %v2395
        %v2397 = vpop.f32.mrb[0].mxu0
        %2398 = vdwg.mxu0
        %v2399 = vld [vmem:[#allocation9 + $0xd] sm:$0x1]
        %v2400 = vld [vmem:[#allocation9 + $0xe] sm:$0x1]
        %2401 = vadd.xlane.f32.xlu0 %v2385
        %v2402 = vpop.xlane.xlu0 %2401
        %2403 = vadd.xlane.f32.xlu0 %v2388
        %v2404 = vpop.xlane.xlu0 %2403
        %2405 = vadd.xlane.f32.xlu0 %v2393
        %v2406 = vpop.xlane.xlu0 %2405
        %2407 = vadd.xlane.f32.xlu0 %v2396
        %v2408 = vpop.xlane.xlu0 %2407
        %v2409 = vmul.f32 %v2402, %v1276
        %v2410 = vmul.f32 %v2404, %v1276
        %v2411 = vmul.f32 %v2406, %v1276
        %v2412 = vmul.f32 %v2408, %v1276
        %v2413 = vsub.f32 %v2385, %v2409
        %v2414 = vsub.f32 %v2388, %v2410
        %v2415 = vsub.f32 %v2393, %v2411
        %v2416 = vsub.f32 %v2396, %v2412
        %v2417 = vmul.f32 %v2413, %v2413
        %v2418 = vmul.f32 %v2414, %v2414
        %v2419 = vmul.f32 %v2415, %v2415
        %v2420 = vmul.f32 %v2416, %v2416
        %2421 = vadd.xlane.f32.xlu0 %v2417
        %v2422 = vpop.xlane.xlu0 %2421
        %2423 = vadd.xlane.f32.xlu0 %v2418
        %v2424 = vpop.xlane.xlu0 %2423
        %2425 = vadd.xlane.f32.xlu0 %v2419
        %v2426 = vpop.xlane.xlu0 %2425
        %2427 = vadd.xlane.f32.xlu0 %v2420
        %v2428 = vpop.xlane.xlu0 %2427
        %v2429 = vmul.f32 %v2422, %v1276
        %v2430 = vmul.f32 %v2424, %v1276
        %v2431 = vmul.f32 %v2426, %v1276
        %v2432 = vmul.f32 %v2428, %v1276
        %v2433 = vadd.f32 %v2429, 1e-05
        %v2434 = vadd.f32 %v2430, 1e-05
        %v2435 = vadd.f32 %v2431, 1e-05
        %v2436 = vadd.f32 %v2432, 1e-05
        %v2437 = vrsqrt.pop %v2433
        %v2438 = vrsqrt.pop %v2434
        %v2439 = vrsqrt.pop %v2435
        %v2440 = vrsqrt.pop %v2436
        %v2441 = vmul.f32 %v2413, %v2437
        %v2442 = vmul.f32 %v2414, %v2438
        %v2443 = vmul.f32 %v2415, %v2439
        %v2444 = vmul.f32 %v2416, %v2440
        %v2445 = vlaneseq
        %v2446 = vshrl.u32 %v2445, 7
        %v2447 = vsub.s32 0, %v2446
        %v2448 = vrot.slane %v2399, %v2447
        %v2449 = vmul.f32 %v2441, %v2448
        %v2450 = vmul.f32 %v2442, %v2448
        %v2451 = vmul.f32 %v2443, %v2448
        %v2452 = vmul.f32 %v2444, %v2448
        %v2453 = vlaneseq
        %v2454 = vshrl.u32 %v2453, 7
        %v2455 = vsub.s32 0, %v2454
        %v2456 = vrot.slane %v2400, %v2455
        %v2457 = vadd.f32 %v2449, %v2456
        %v2458 = vadd.f32 %v2450, %v2456
        %v2459 = vadd.f32 %v2451, %v2456
        %v2460 = vadd.f32 %v2452, %v2456
        %v2461 = vmul.f32 %v2457, 0.2
        %v2462 = vmul.f32 %v2458, 0.2
        %v2463 = vmul.f32 %v2459, 0.2
        %v2464 = vmul.f32 %v2460, 0.2
        %v2465 = vmax.f32 %v2457, %v2461
        %v2466 = vmax.f32 %v2458, %v2462
        %v2467 = vmax.f32 %v2459, %v2463
        %v2468 = vmax.f32 %v2460, %v2464
        %v2469 = vpack.c.bf16 %v2466, %v2465
        %v2470 = vpack.c.bf16 %v2468, %v2467
        %s2471 = scalar_lea.vmem [#allocation10], 192
        %v2472 = vld [vmem:[%s2471] sm:$0xf]
        %v2473 = vld [vmem:[%s2471 + $0x4] sm:$0xf]
        %v2474 = vld [vmem:[%s2471 + $0x8] sm:$0xf]
        %v2475 = vld [vmem:[%s2471 + $0xc] sm:$0xf]
        %v2476 = vld [vmem:[%s2471 + $0x10] sm:$0xf]
        %v2477 = vld [vmem:[%s2471 + $0x14] sm:$0xf]
        %v2478 = vld [vmem:[%s2471 + $0x18] sm:$0xf]
        %v2479 = vld [vmem:[%s2471 + $0x1c] sm:$0xf]
        %v2480 = vld [vmem:[%s2471 + $0x20] sm:$0xf]
        %v2481 = vld [vmem:[%s2471 + $0x24] sm:$0xf]
        %v2482 = vld [vmem:[%s2471 + $0x28] sm:$0xf]
        %v2483 = vld [vmem:[%s2471 + $0x2c] sm:$0xf]
        %v2484 = vld [vmem:[%s2471 + $0x30] sm:$0xf]
        %v2485 = vld [vmem:[%s2471 + $0x34] sm:$0xf]
        %v2486 = vld [vmem:[%s2471 + $0x38] sm:$0xf]
        %v2487 = vld [vmem:[%s2471 + $0x3c] sm:$0xf]
        %v2488 = vld [vmem:[#allocation12 + $0x3] sm:$0x1]
        %v2489 = vlaneseq
        %v2490 = vshrl.u32 %v2489, 7
        %v2491 = vsub.s32 0, %v2490
        %v2492 = vrot.slane %v2488, %v2491
        %v2509 = vunpack.c.l.b16 %v2472
        %v2510 = vunpack.c.l.b16 %v2473
        %v2511 = vunpack.c.l.b16 %v2474
        %v2512 = vunpack.c.l.b16 %v2475
        %v2513 = vunpack.c.l.b16 %v2476
        %v2514 = vunpack.c.l.b16 %v2477
        %v2515 = vunpack.c.l.b16 %v2478
        %v2516 = vunpack.c.l.b16 %v2479
        %v2517 = vunpack.c.l.b16 %v2480
        %v2518 = vunpack.c.l.b16 %v2481
        %v2519 = vunpack.c.l.b16 %v2482
        %v2520 = vunpack.c.l.b16 %v2483
        %v2521 = vunpack.c.l.b16 %v2484
        %v2522 = vunpack.c.l.b16 %v2485
        %v2523 = vunpack.c.l.b16 %v2486
        %v2524 = vunpack.c.l.b16 %v2487
        %v2525 = vpack.c.b16 %v2510, %v2509
        %v2526 = vpack.c.b16 %v2512, %v2511
        %v2527 = vpack.c.b16 %v2514, %v2513
        %v2528 = vpack.c.b16 %v2516, %v2515
        %v2529 = vpack.c.b16 %v2518, %v2517
        %v2530 = vpack.c.b16 %v2520, %v2519
        %v2531 = vpack.c.b16 %v2522, %v2521
        %v2532 = vpack.c.b16 %v2524, %v2523
        %2541 = vmatprep.subr.bf16.mxu0 0
        %2542 = vmatpush1.bf16.msra.mxu0 %v2525
        %2543 = vmatprep.subr.bf16.mxu0 0
        %2544 = vmatpush1.bf16.msra.mxu0 %v2526
        %2545 = vmatprep.subr.bf16.mxu0 0
        %2546 = vmatpush1.bf16.msra.mxu0 %v2527
        %2547 = vmatprep.subr.bf16.mxu0 0
        %2548 = vmatpush1.bf16.msra.mxu0 %v2528
        %2549 = vmatprep.subr.bf16.mxu0 0
        %2550 = vmatpush1.bf16.msra.mxu0 %v2529
        %2551 = vmatprep.subr.bf16.mxu0 0
        %2552 = vmatpush1.bf16.msra.mxu0 %v2530
        %2553 = vmatprep.subr.bf16.mxu0 0
        %2554 = vmatpush1.bf16.msra.mxu0 %v2531
        %2555 = vmatprep.subr.bf16.mxu0 0
        %2556 = vmatpush1.bf16.msra.mxu0 %v2532
        %2557 = vmatprep.subr.bf16.mxu0 0
        %2558 = vmatpush1.bf16.msra.mxu0 0
        %2559 = vmatprep.subr.bf16.mxu0 0
        %2560 = vmatpush1.bf16.msra.mxu0 0
        %2561 = vmatprep.subr.bf16.mxu0 0
        %2562 = vmatpush1.bf16.msra.mxu0 0
        %2563 = vmatprep.subr.bf16.mxu0 0
        %2564 = vmatpush1.bf16.msra.mxu0 0
        %2565 = vmatprep.subr.bf16.mxu0 0
        %2566 = vmatpush1.bf16.msra.mxu0 0
        %2567 = vmatprep.subr.bf16.mxu0 0
        %2568 = vmatpush1.bf16.msra.mxu0 0
        %2569 = vmatprep.subr.bf16.mxu0 0
        %2570 = vmatpush1.bf16.msra.mxu0 0
        %2571 = vmatprep.subr.bf16.mxu0 0
        %2572 = vmatpush1.bf16.msra.mxu0 0
        %2573 = vmatprep.mubr.bf16.mxu0 0
        %2574 = vmatmul.mubr.bf16.gmra.mrb[0].mxu0 %v2469
        %v2575 = vpop.f32.mrb[0].mxu0
        %v2576 = vadd.f32 %v2492, %v2575
        %v2577 = vpop.f32.mrb[0].mxu0
        %v2578 = vpop.f32.mrb[0].mxu0
        %v2579 = vadd.f32 %v2492, %v2578
        %v2580 = vpop.f32.mrb[0].mxu0
        %2581 = vmatprep.mubr.bf16.mxu0 0
        %2582 = vmatmul.mubr.bf16.gmra.mrb[0].mxu0 %v2470
        %v2583 = vpop.f32.mrb[0].mxu0
        %v2584 = vadd.f32 %v2492, %v2583
        %v2585 = vpop.f32.mrb[0].mxu0
        %v2586 = vpop.f32.mrb[0].mxu0
        %v2587 = vadd.f32 %v2492, %v2586
        %v2588 = vpop.f32.mrb[0].mxu0
        %2589 = vdwg.mxu0
        %s2590 = scalar_lea.vmem %s402, 96 [#allocation13]
        %2591 = vst [vmem:[%s2590] sm:$0xff] %v2576
        %2592 = vst [vmem:[%s2590 + $0x8] sm:$0xff] %v2579
        %2593 = vst [vmem:[%s2590 + $0x10] sm:$0xff] %v2584
        %2594 = vst [vmem:[%s2590 + $0x18] sm:$0xff] %v2587
        %v2595 = vld [vmem:[#allocation7 + $0x10] sm:$0xf]
        %v2596 = vld [vmem:[#allocation7 + $0x30] sm:$0xf]
        %v2597 = vld [vmem:[#allocation7 + $0x50] sm:$0xf]
        %v2598 = vld [vmem:[#allocation7 + $0x70] sm:$0xf]
        %v2599 = vld [vmem:[#allocation7 + $0x90] sm:$0xf]
        %v2600 = vld [vmem:[#allocation7 + $0xb0] sm:$0xf]
        %v2601 = vld [vmem:[#allocation7 + $0xd0] sm:$0xf]
        %v2602 = vld [vmem:[#allocation7 + $0xf0] sm:$0xf]
        %v2603 = vld [vmem:[#allocation7 + $0x110] sm:$0xf]
        %v2604 = vld [vmem:[#allocation7 + $0x130] sm:$0xf]
        %v2605 = vld [vmem:[#allocation7 + $0x150] sm:$0xf]
        %v2606 = vld [vmem:[#allocation7 + $0x170] sm:$0xf]
        %v2607 = vld [vmem:[#allocation7 + $0x190] sm:$0xf]
        %v2608 = vld [vmem:[#allocation7 + $0x1b0] sm:$0xf]
        %v2609 = vld [vmem:[#allocation7 + $0x1d0] sm:$0xf]
        %v2610 = vld [vmem:[#allocation7 + $0x1f0] sm:$0xf]
        %v2611 = vld [vmem:[#allocation7 + $0x210] sm:$0xf]
        %v2612 = vld [vmem:[#allocation7 + $0x230] sm:$0xf]
        %v2613 = vld [vmem:[#allocation7 + $0x250] sm:$0xf]
        %v2614 = vld [vmem:[#allocation7 + $0x270] sm:$0xf]
        %v2615 = vld [vmem:[#allocation7 + $0x290] sm:$0xf]
        %v2616 = vld [vmem:[#allocation7 + $0x2b0] sm:$0xf]
        %v2617 = vld [vmem:[#allocation7 + $0x2d0] sm:$0xf]
        %v2618 = vld [vmem:[#allocation7 + $0x2f0] sm:$0xf]
        %v2619 = vld [vmem:[#allocation7 + $0x310] sm:$0xf]
        %v2620 = vld [vmem:[#allocation7 + $0x330] sm:$0xf]
        %v2621 = vld [vmem:[#allocation7 + $0x350] sm:$0xf]
        %v2622 = vld [vmem:[#allocation7 + $0x370] sm:$0xf]
        %v2623 = vld [vmem:[#allocation7 + $0x390] sm:$0xf]
        %v2624 = vld [vmem:[#allocation7 + $0x3b0] sm:$0xf]
        %v2625 = vld [vmem:[#allocation7 + $0x3d0] sm:$0xf]
        %v2626 = vld [vmem:[#allocation7 + $0x3f0] sm:$0xf]
        %v2627 = vld [vmem:[#allocation9 + $0x10] sm:$0x1]
        %v2628 = vlaneseq
        %v2629 = vshrl.u32 %v2628, 7
        %v2630 = vsub.s32 0, %v2629
        %v2631 = vrot.slane %v2627, %v2630
        %v2664 = vunpack.c.l.b16 %v2595
        %v2665 = vunpack.c.l.b16 %v2596
        %v2666 = vunpack.c.l.b16 %v2597
        %v2667 = vunpack.c.l.b16 %v2598
        %v2668 = vunpack.c.l.b16 %v2599
        %v2669 = vunpack.c.l.b16 %v2600
        %v2670 = vunpack.c.l.b16 %v2601
        %v2671 = vunpack.c.l.b16 %v2602
        %v2672 = vunpack.c.l.b16 %v2603
        %v2673 = vunpack.c.l.b16 %v2604
        %v2674 = vunpack.c.l.b16 %v2605
        %v2675 = vunpack.c.l.b16 %v2606
        %v2676 = vunpack.c.l.b16 %v2607
        %v2677 = vunpack.c.l.b16 %v2608
        %v2678 = vunpack.c.l.b16 %v2609
        %v2679 = vunpack.c.l.b16 %v2610
        %v2680 = vunpack.c.l.b16 %v2611
        %v2681 = vunpack.c.l.b16 %v2612
        %v2682 = vunpack.c.l.b16 %v2613
        %v2683 = vunpack.c.l.b16 %v2614
        %v2684 = vunpack.c.l.b16 %v2615
        %v2685 = vunpack.c.l.b16 %v2616
        %v2686 = vunpack.c.l.b16 %v2617
        %v2687 = vunpack.c.l.b16 %v2618
        %v2688 = vunpack.c.l.b16 %v2619
        %v2689 = vunpack.c.l.b16 %v2620
        %v2690 = vunpack.c.l.b16 %v2621
        %v2691 = vunpack.c.l.b16 %v2622
        %v2692 = vunpack.c.l.b16 %v2623
        %v2693 = vunpack.c.l.b16 %v2624
        %v2694 = vunpack.c.l.b16 %v2625
        %v2695 = vunpack.c.l.b16 %v2626
        %v2696 = vpack.c.b16 %v2665, %v2664
        %v2697 = vpack.c.b16 %v2667, %v2666
        %v2698 = vpack.c.b16 %v2669, %v2668
        %v2699 = vpack.c.b16 %v2671, %v2670
        %v2700 = vpack.c.b16 %v2673, %v2672
        %v2701 = vpack.c.b16 %v2675, %v2674
        %v2702 = vpack.c.b16 %v2677, %v2676
        %v2703 = vpack.c.b16 %v2679, %v2678
        %v2704 = vpack.c.b16 %v2681, %v2680
        %v2705 = vpack.c.b16 %v2683, %v2682
        %v2706 = vpack.c.b16 %v2685, %v2684
        %v2707 = vpack.c.b16 %v2687, %v2686
        %v2708 = vpack.c.b16 %v2689, %v2688
        %v2709 = vpack.c.b16 %v2691, %v2690
        %v2710 = vpack.c.b16 %v2693, %v2692
        %v2711 = vpack.c.b16 %v2695, %v2694
        %2728 = vmatprep.subr.bf16.mxu0 0
        %2729 = vmatpush1.bf16.msra.mxu0 %v2696
        %2730 = vmatprep.subr.bf16.mxu0 0
        %2731 = vmatpush1.bf16.msra.mxu0 %v2697
        %2732 = vmatprep.subr.bf16.mxu0 0
        %2733 = vmatpush1.bf16.msra.mxu0 %v2698
        %2734 = vmatprep.subr.bf16.mxu0 0
        %2735 = vmatpush1.bf16.msra.mxu0 %v2699
        %2736 = vmatprep.subr.bf16.mxu0 0
        %2737 = vmatpush1.bf16.msra.mxu0 %v2700
        %2738 = vmatprep.subr.bf16.mxu0 0
        %2739 = vmatpush1.bf16.msra.mxu0 %v2701
        %2740 = vmatprep.subr.bf16.mxu0 0
        %2741 = vmatpush1.bf16.msra.mxu0 %v2702
        %2742 = vmatprep.subr.bf16.mxu0 0
        %2743 = vmatpush1.bf16.msra.mxu0 %v2703
        %2744 = vmatprep.subr.bf16.mxu0 0
        %2745 = vmatpush1.bf16.msra.mxu0 %v2704
        %2746 = vmatprep.subr.bf16.mxu0 0
        %2747 = vmatpush1.bf16.msra.mxu0 %v2705
        %2748 = vmatprep.subr.bf16.mxu0 0
        %2749 = vmatpush1.bf16.msra.mxu0 %v2706
        %2750 = vmatprep.subr.bf16.mxu0 0
        %2751 = vmatpush1.bf16.msra.mxu0 %v2707
        %2752 = vmatprep.subr.bf16.mxu0 0
        %2753 = vmatpush1.bf16.msra.mxu0 %v2708
        %2754 = vmatprep.subr.bf16.mxu0 0
        %2755 = vmatpush1.bf16.msra.mxu0 %v2709
        %2756 = vmatprep.subr.bf16.mxu0 0
        %2757 = vmatpush1.bf16.msra.mxu0 %v2710
        %2758 = vmatprep.subr.bf16.mxu0 0
        %2759 = vmatpush1.bf16.msra.mxu0 %v2711
        %2760 = vmatprep.mubr.bf16.mxu0 %v1081
        %2761 = vmatmul.mubr.bf16.gmra.mrb[0].mxu0 %v1080
        %v2762 = vpop.f32.mrb[0].mxu0
        %v2763 = vadd.f32 %v2631, %v2762
        %v2764 = vpop.f32.mrb[0].mxu0
        %v2765 = vpop.f32.mrb[0].mxu0
        %v2766 = vadd.f32 %v2631, %v2765
        %v2767 = vpop.f32.mrb[0].mxu0
        %2768 = vmatprep.mubr.bf16.mxu0 %v1083
        %2769 = vmatmul.mubr.bf16.gmra.mrb[0].mxu0 %v1082
        %v2770 = vpop.f32.mrb[0].mxu0
        %v2771 = vadd.f32 %v2631, %v2770
        %v2772 = vpop.f32.mrb[0].mxu0
        %v2773 = vpop.f32.mrb[0].mxu0
        %v2774 = vadd.f32 %v2631, %v2773
        %v2775 = vpop.f32.mrb[0].mxu0
        %2776 = vdwg.mxu0
        %v2777 = vld [vmem:[#allocation9 + $0x11] sm:$0x1]
        %v2778 = vld [vmem:[#allocation9 + $0x12] sm:$0x1]
        %2779 = vadd.xlane.f32.xlu0 %v2763
        %v2780 = vpop.xlane.xlu0 %2779
        %2781 = vadd.xlane.f32.xlu0 %v2766
        %v2782 = vpop.xlane.xlu0 %2781
        %2783 = vadd.xlane.f32.xlu0 %v2771
        %v2784 = vpop.xlane.xlu0 %2783
        %2785 = vadd.xlane.f32.xlu0 %v2774
        %v2786 = vpop.xlane.xlu0 %2785
        %v2787 = vmul.f32 %v2780, %v1276
        %v2788 = vmul.f32 %v2782, %v1276
        %v2789 = vmul.f32 %v2784, %v1276
        %v2790 = vmul.f32 %v2786, %v1276
        %v2791 = vsub.f32 %v2763, %v2787
        %v2792 = vsub.f32 %v2766, %v2788
        %v2793 = vsub.f32 %v2771, %v2789
        %v2794 = vsub.f32 %v2774, %v2790
        %v2795 = vmul.f32 %v2791, %v2791
        %v2796 = vmul.f32 %v2792, %v2792
        %v2797 = vmul.f32 %v2793, %v2793
        %v2798 = vmul.f32 %v2794, %v2794
        %2799 = vadd.xlane.f32.xlu0 %v2795
        %v2800 = vpop.xlane.xlu0 %2799
        %2801 = vadd.xlane.f32.xlu0 %v2796
        %v2802 = vpop.xlane.xlu0 %2801
        %2803 = vadd.xlane.f32.xlu0 %v2797
        %v2804 = vpop.xlane.xlu0 %2803
        %2805 = vadd.xlane.f32.xlu0 %v2798
        %v2806 = vpop.xlane.xlu0 %2805
        %v2807 = vmul.f32 %v2800, %v1276
        %v2808 = vmul.f32 %v2802, %v1276
        %v2809 = vmul.f32 %v2804, %v1276
        %v2810 = vmul.f32 %v2806, %v1276
        %v2811 = vadd.f32 %v2807, 1e-05
        %v2812 = vadd.f32 %v2808, 1e-05
        %v2813 = vadd.f32 %v2809, 1e-05
        %v2814 = vadd.f32 %v2810, 1e-05
        %v2815 = vrsqrt.pop %v2811
        %v2816 = vrsqrt.pop %v2812
        %v2817 = vrsqrt.pop %v2813
        %v2818 = vrsqrt.pop %v2814
        %v2819 = vmul.f32 %v2791, %v2815
        %v2820 = vmul.f32 %v2792, %v2816
        %v2821 = vmul.f32 %v2793, %v2817
        %v2822 = vmul.f32 %v2794, %v2818
        %v2823 = vlaneseq
        %v2824 = vshrl.u32 %v2823, 7
        %v2825 = vsub.s32 0, %v2824
        %v2826 = vrot.slane %v2777, %v2825
        %v2827 = vmul.f32 %v2819, %v2826
        %v2828 = vmul.f32 %v2820, %v2826
        %v2829 = vmul.f32 %v2821, %v2826
        %v2830 = vmul.f32 %v2822, %v2826
        %v2831 = vlaneseq
        %v2832 = vshrl.u32 %v2831, 7
        %v2833 = vsub.s32 0, %v2832
        %v2834 = vrot.slane %v2778, %v2833
        %v2835 = vadd.f32 %v2827, %v2834
        %v2836 = vadd.f32 %v2828, %v2834
        %v2837 = vadd.f32 %v2829, %v2834
        %v2838 = vadd.f32 %v2830, %v2834
        %v2839 = vmul.f32 %v2835, 0.2
        %v2840 = vmul.f32 %v2836, 0.2
        %v2841 = vmul.f32 %v2837, 0.2
        %v2842 = vmul.f32 %v2838, 0.2
        %v2843 = vmax.f32 %v2835, %v2839
        %v2844 = vmax.f32 %v2836, %v2840
        %v2845 = vmax.f32 %v2837, %v2841
        %v2846 = vmax.f32 %v2838, %v2842
        %v2847 = vpack.c.bf16 %v2844, %v2843
        %v2848 = vpack.c.bf16 %v2846, %v2845
        %s2849 = scalar_lea.vmem [#allocation10], 256
        %v2850 = vld [vmem:[%s2849] sm:$0xf]
        %v2851 = vld [vmem:[%s2849 + $0x4] sm:$0xf]
        %v2852 = vld [vmem:[%s2849 + $0x8] sm:$0xf]
        %v2853 = vld [vmem:[%s2849 + $0xc] sm:$0xf]
        %v2854 = vld [vmem:[%s2849 + $0x10] sm:$0xf]
        %v2855 = vld [vmem:[%s2849 + $0x14] sm:$0xf]
        %v2856 = vld [vmem:[%s2849 + $0x18] sm:$0xf]
        %v2857 = vld [vmem:[%s2849 + $0x1c] sm:$0xf]
        %v2858 = vld [vmem:[%s2849 + $0x20] sm:$0xf]
        %v2859 = vld [vmem:[%s2849 + $0x24] sm:$0xf]
        %v2860 = vld [vmem:[%s2849 + $0x28] sm:$0xf]
        %v2861 = vld [vmem:[%s2849 + $0x2c] sm:$0xf]
        %v2862 = vld [vmem:[%s2849 + $0x30] sm:$0xf]
        %v2863 = vld [vmem:[%s2849 + $0x34] sm:$0xf]
        %v2864 = vld [vmem:[%s2849 + $0x38] sm:$0xf]
        %v2865 = vld [vmem:[%s2849 + $0x3c] sm:$0xf]
        %v2866 = vld [vmem:[#allocation12 + $0x4] sm:$0x1]
        %v2867 = vlaneseq
        %v2868 = vshrl.u32 %v2867, 7
        %v2869 = vsub.s32 0, %v2868
        %v2870 = vrot.slane %v2866, %v2869
        %v2887 = vunpack.c.l.b16 %v2850
        %v2888 = vunpack.c.l.b16 %v2851
        %v2889 = vunpack.c.l.b16 %v2852
        %v2890 = vunpack.c.l.b16 %v2853
        %v2891 = vunpack.c.l.b16 %v2854
        %v2892 = vunpack.c.l.b16 %v2855
        %v2893 = vunpack.c.l.b16 %v2856
        %v2894 = vunpack.c.l.b16 %v2857
        %v2895 = vunpack.c.l.b16 %v2858
        %v2896 = vunpack.c.l.b16 %v2859
        %v2897 = vunpack.c.l.b16 %v2860
        %v2898 = vunpack.c.l.b16 %v2861
        %v2899 = vunpack.c.l.b16 %v2862
        %v2900 = vunpack.c.l.b16 %v2863
        %v2901 = vunpack.c.l.b16 %v2864
        %v2902 = vunpack.c.l.b16 %v2865
        %v2903 = vpack.c.b16 %v2888, %v2887
        %v2904 = vpack.c.b16 %v2890, %v2889
        %v2905 = vpack.c.b16 %v2892, %v2891
        %v2906 = vpack.c.b16 %v2894, %v2893
        %v2907 = vpack.c.b16 %v2896, %v2895
        %v2908 = vpack.c.b16 %v2898, %v2897
        %v2909 = vpack.c.b16 %v2900, %v2899
        %v2910 = vpack.c.b16 %v2902, %v2901
        %2919 = vmatprep.subr.bf16.mxu0 0
        %2920 = vmatpush1.bf16.msra.mxu0 %v2903
        %2921 = vmatprep.subr.bf16.mxu0 0
        %2922 = vmatpush1.bf16.msra.mxu0 %v2904
        %2923 = vmatprep.subr.bf16.mxu0 0
        %2924 = vmatpush1.bf16.msra.mxu0 %v2905
        %2925 = vmatprep.subr.bf16.mxu0 0
        %2926 = vmatpush1.bf16.msra.mxu0 %v2906
        %2927 = vmatprep.subr.bf16.mxu0 0
        %2928 = vmatpush1.bf16.msra.mxu0 %v2907
        %2929 = vmatprep.subr.bf16.mxu0 0
        %2930 = vmatpush1.bf16.msra.mxu0 %v2908
        %2931 = vmatprep.subr.bf16.mxu0 0
        %2932 = vmatpush1.bf16.msra.mxu0 %v2909
        %2933 = vmatprep.subr.bf16.mxu0 0
        %2934 = vmatpush1.bf16.msra.mxu0 %v2910
        %2935 = vmatprep.subr.bf16.mxu0 0
        %2936 = vmatpush1.bf16.msra.mxu0 0
        %2937 = vmatprep.subr.bf16.mxu0 0
        %2938 = vmatpush1.bf16.msra.mxu0 0
        %2939 = vmatprep.subr.bf16.mxu0 0
        %2940 = vmatpush1.bf16.msra.mxu0 0
        %2941 = vmatprep.subr.bf16.mxu0 0
        %2942 = vmatpush1.bf16.msra.mxu0 0
        %2943 = vmatprep.subr.bf16.mxu0 0
        %2944 = vmatpush1.bf16.msra.mxu0 0
        %2945 = vmatprep.subr.bf16.mxu0 0
        %2946 = vmatpush1.bf16.msra.mxu0 0
        %2947 = vmatprep.subr.bf16.mxu0 0
        %2948 = vmatpush1.bf16.msra.mxu0 0
        %2949 = vmatprep.subr.bf16.mxu0 0
        %2950 = vmatpush1.bf16.msra.mxu0 0
        %2951 = vmatprep.mubr.bf16.mxu0 0
        %2952 = vmatmul.mubr.bf16.gmra.mrb[0].mxu0 %v2847
        %v2953 = vpop.f32.mrb[0].mxu0
        %v2954 = vadd.f32 %v2870, %v2953
        %v2955 = vpop.f32.mrb[0].mxu0
        %v2956 = vpop.f32.mrb[0].mxu0
        %v2957 = vadd.f32 %v2870, %v2956
        %v2958 = vpop.f32.mrb[0].mxu0
        %2959 = vmatprep.mubr.bf16.mxu0 0
        %2960 = vmatmul.mubr.bf16.gmra.mrb[0].mxu0 %v2848
        %v2961 = vpop.f32.mrb[0].mxu0
        %v2962 = vadd.f32 %v2870, %v2961
        %v2963 = vpop.f32.mrb[0].mxu0
        %v2964 = vpop.f32.mrb[0].mxu0
        %v2965 = vadd.f32 %v2870, %v2964
        %v2966 = vpop.f32.mrb[0].mxu0
        %2967 = vdwg.mxu0
        %s2968 = scalar_lea.vmem %s402, 128 [#allocation13]
        %2969 = vst [vmem:[%s2968] sm:$0xff] %v2954
        %2970 = vst [vmem:[%s2968 + $0x8] sm:$0xff] %v2957
        %2971 = vst [vmem:[%s2968 + $0x10] sm:$0xff] %v2962
        %2972 = vst [vmem:[%s2968 + $0x18] sm:$0xff] %v2965
        %v2973 = vld [vmem:[#allocation7 + $0x14] sm:$0xf]
        %v2974 = vld [vmem:[#allocation7 + $0x34] sm:$0xf]
        %v2975 = vld [vmem:[#allocation7 + $0x54] sm:$0xf]
        %v2976 = vld [vmem:[#allocation7 + $0x74] sm:$0xf]
        %v2977 = vld [vmem:[#allocation7 + $0x94] sm:$0xf]
        %v2978 = vld [vmem:[#allocation7 + $0xb4] sm:$0xf]
        %v2979 = vld [vmem:[#allocation7 + $0xd4] sm:$0xf]
        %v2980 = vld [vmem:[#allocation7 + $0xf4] sm:$0xf]
        %v2981 = vld [vmem:[#allocation7 + $0x114] sm:$0xf]
        %v2982 = vld [vmem:[#allocation7 + $0x134] sm:$0xf]
        %v2983 = vld [vmem:[#allocation7 + $0x154] sm:$0xf]
        %v2984 = vld [vmem:[#allocation7 + $0x174] sm:$0xf]
        %v2985 = vld [vmem:[#allocation7 + $0x194] sm:$0xf]
        %v2986 = vld [vmem:[#allocation7 + $0x1b4] sm:$0xf]
        %v2987 = vld [vmem:[#allocation7 + $0x1d4] sm:$0xf]
        %v2988 = vld [vmem:[#allocation7 + $0x1f4] sm:$0xf]
        %v2989 = vld [vmem:[#allocation7 + $0x214] sm:$0xf]
        %v2990 = vld [vmem:[#allocation7 + $0x234] sm:$0xf]
        %v2991 = vld [vmem:[#allocation7 + $0x254] sm:$0xf]
        %v2992 = vld [vmem:[#allocation7 + $0x274] sm:$0xf]
        %v2993 = vld [vmem:[#allocation7 + $0x294] sm:$0xf]
        %v2994 = vld [vmem:[#allocation7 + $0x2b4] sm:$0xf]
        %v2995 = vld [vmem:[#allocation7 + $0x2d4] sm:$0xf]
        %v2996 = vld [vmem:[#allocation7 + $0x2f4] sm:$0xf]
        %v2997 = vld [vmem:[#allocation7 + $0x314] sm:$0xf]
        %v2998 = vld [vmem:[#allocation7 + $0x334] sm:$0xf]
        %v2999 = vld [vmem:[#allocation7 + $0x354] sm:$0xf]
        %v3000 = vld [vmem:[#allocation7 + $0x374] sm:$0xf]
        %v3001 = vld [vmem:[#allocation7 + $0x394] sm:$0xf]
        %v3002 = vld [vmem:[#allocation7 + $0x3b4] sm:$0xf]
        %v3003 = vld [vmem:[#allocation7 + $0x3d4] sm:$0xf]
        %v3004 = vld [vmem:[#allocation7 + $0x3f4] sm:$0xf]
        %v3005 = vld [vmem:[#allocation9 + $0x14] sm:$0x1]
        %v3006 = vlaneseq
        %v3007 = vshrl.u32 %v3006, 7
        %v3008 = vsub.s32 0, %v3007
        %v3009 = vrot.slane %v3005, %v3008
        %v3042 = vunpack.c.l.b16 %v2973
        %v3043 = vunpack.c.l.b16 %v2974
        %v3044 = vunpack.c.l.b16 %v2975
        %v3045 = vunpack.c.l.b16 %v2976
        %v3046 = vunpack.c.l.b16 %v2977
        %v3047 = vunpack.c.l.b16 %v2978
        %v3048 = vunpack.c.l.b16 %v2979
        %v3049 = vunpack.c.l.b16 %v2980
        %v3050 = vunpack.c.l.b16 %v2981
        %v3051 = vunpack.c.l.b16 %v2982
        %v3052 = vunpack.c.l.b16 %v2983
        %v3053 = vunpack.c.l.b16 %v2984
        %v3054 = vunpack.c.l.b16 %v2985
        %v3055 = vunpack.c.l.b16 %v2986
        %v3056 = vunpack.c.l.b16 %v2987
        %v3057 = vunpack.c.l.b16 %v2988
        %v3058 = vunpack.c.l.b16 %v2989
        %v3059 = vunpack.c.l.b16 %v2990
        %v3060 = vunpack.c.l.b16 %v2991
        %v3061 = vunpack.c.l.b16 %v2992
        %v3062 = vunpack.c.l.b16 %v2993
        %v3063 = vunpack.c.l.b16 %v2994
        %v3064 = vunpack.c.l.b16 %v2995
        %v3065 = vunpack.c.l.b16 %v2996
        %v3066 = vunpack.c.l.b16 %v2997
        %v3067 = vunpack.c.l.b16 %v2998
        %v3068 = vunpack.c.l.b16 %v2999
        %v3069 = vunpack.c.l.b16 %v3000
        %v3070 = vunpack.c.l.b16 %v3001
        %v3071 = vunpack.c.l.b16 %v3002
        %v3072 = vunpack.c.l.b16 %v3003
        %v3073 = vunpack.c.l.b16 %v3004
        %v3074 = vpack.c.b16 %v3043, %v3042
        %v3075 = vpack.c.b16 %v3045, %v3044
        %v3076 = vpack.c.b16 %v3047, %v3046
        %v3077 = vpack.c.b16 %v3049, %v3048
        %v3078 = vpack.c.b16 %v3051, %v3050
        %v3079 = vpack.c.b16 %v3053, %v3052
        %v3080 = vpack.c.b16 %v3055, %v3054
        %v3081 = vpack.c.b16 %v3057, %v3056
        %v3082 = vpack.c.b16 %v3059, %v3058
        %v3083 = vpack.c.b16 %v3061, %v3060
        %v3084 = vpack.c.b16 %v3063, %v3062
        %v3085 = vpack.c.b16 %v3065, %v3064
        %v3086 = vpack.c.b16 %v3067, %v3066
        %v3087 = vpack.c.b16 %v3069, %v3068
        %v3088 = vpack.c.b16 %v3071, %v3070
        %v3089 = vpack.c.b16 %v3073, %v3072
        %3106 = vmatprep.subr.bf16.mxu0 0
        %3107 = vmatpush1.bf16.msra.mxu0 %v3074
        %3108 = vmatprep.subr.bf16.mxu0 0
        %3109 = vmatpush1.bf16.msra.mxu0 %v3075
        %3110 = vmatprep.subr.bf16.mxu0 0
        %3111 = vmatpush1.bf16.msra.mxu0 %v3076
        %3112 = vmatprep.subr.bf16.mxu0 0
        %3113 = vmatpush1.bf16.msra.mxu0 %v3077
        %3114 = vmatprep.subr.bf16.mxu0 0
        %3115 = vmatpush1.bf16.msra.mxu0 %v3078
        %3116 = vmatprep.subr.bf16.mxu0 0
        %3117 = vmatpush1.bf16.msra.mxu0 %v3079
        %3118 = vmatprep.subr.bf16.mxu0 0
        %3119 = vmatpush1.bf16.msra.mxu0 %v3080
        %3120 = vmatprep.subr.bf16.mxu0 0
        %3121 = vmatpush1.bf16.msra.mxu0 %v3081
        %3122 = vmatprep.subr.bf16.mxu0 0
        %3123 = vmatpush1.bf16.msra.mxu0 %v3082
        %3124 = vmatprep.subr.bf16.mxu0 0
        %3125 = vmatpush1.bf16.msra.mxu0 %v3083
        %3126 = vmatprep.subr.bf16.mxu0 0
        %3127 = vmatpush1.bf16.msra.mxu0 %v3084
        %3128 = vmatprep.subr.bf16.mxu0 0
        %3129 = vmatpush1.bf16.msra.mxu0 %v3085
        %3130 = vmatprep.subr.bf16.mxu0 0
        %3131 = vmatpush1.bf16.msra.mxu0 %v3086
        %3132 = vmatprep.subr.bf16.mxu0 0
        %3133 = vmatpush1.bf16.msra.mxu0 %v3087
        %3134 = vmatprep.subr.bf16.mxu0 0
        %3135 = vmatpush1.bf16.msra.mxu0 %v3088
        %3136 = vmatprep.subr.bf16.mxu0 0
        %3137 = vmatpush1.bf16.msra.mxu0 %v3089
        %3138 = vmatprep.mubr.bf16.mxu0 %v1081
        %3139 = vmatmul.mubr.bf16.gmra.mrb[0].mxu0 %v1080
        %v3140 = vpop.f32.mrb[0].mxu0
        %v3141 = vadd.f32 %v3009, %v3140
        %v3142 = vpop.f32.mrb[0].mxu0
        %v3143 = vpop.f32.mrb[0].mxu0
        %v3144 = vadd.f32 %v3009, %v3143
        %v3145 = vpop.f32.mrb[0].mxu0
        %3146 = vmatprep.mubr.bf16.mxu0 %v1083
        %3147 = vmatmul.mubr.bf16.gmra.mrb[0].mxu0 %v1082
        %v3148 = vpop.f32.mrb[0].mxu0
        %v3149 = vadd.f32 %v3009, %v3148
        %v3150 = vpop.f32.mrb[0].mxu0
        %v3151 = vpop.f32.mrb[0].mxu0
        %v3152 = vadd.f32 %v3009, %v3151
        %v3153 = vpop.f32.mrb[0].mxu0
        %3154 = vdwg.mxu0
        %v3155 = vld [vmem:[#allocation9 + $0x15] sm:$0x1]
        %v3156 = vld [vmem:[#allocation9 + $0x16] sm:$0x1]
        %3157 = vadd.xlane.f32.xlu0 %v3141
        %v3158 = vpop.xlane.xlu0 %3157
        %3159 = vadd.xlane.f32.xlu0 %v3144
        %v3160 = vpop.xlane.xlu0 %3159
        %3161 = vadd.xlane.f32.xlu0 %v3149
        %v3162 = vpop.xlane.xlu0 %3161
        %3163 = vadd.xlane.f32.xlu0 %v3152
        %v3164 = vpop.xlane.xlu0 %3163
        %v3165 = vmul.f32 %v3158, %v1276
        %v3166 = vmul.f32 %v3160, %v1276
        %v3167 = vmul.f32 %v3162, %v1276
        %v3168 = vmul.f32 %v3164, %v1276
        %v3169 = vsub.f32 %v3141, %v3165
        %v3170 = vsub.f32 %v3144, %v3166
        %v3171 = vsub.f32 %v3149, %v3167
        %v3172 = vsub.f32 %v3152, %v3168
        %v3173 = vmul.f32 %v3169, %v3169
        %v3174 = vmul.f32 %v3170, %v3170
        %v3175 = vmul.f32 %v3171, %v3171
        %v3176 = vmul.f32 %v3172, %v3172
        %3177 = vadd.xlane.f32.xlu0 %v3173
        %v3178 = vpop.xlane.xlu0 %3177
        %3179 = vadd.xlane.f32.xlu0 %v3174
        %v3180 = vpop.xlane.xlu0 %3179
        %3181 = vadd.xlane.f32.xlu0 %v3175
        %v3182 = vpop.xlane.xlu0 %3181
        %3183 = vadd.xlane.f32.xlu0 %v3176
        %v3184 = vpop.xlane.xlu0 %3183
        %v3185 = vmul.f32 %v3178, %v1276
        %v3186 = vmul.f32 %v3180, %v1276
        %v3187 = vmul.f32 %v3182, %v1276
        %v3188 = vmul.f32 %v3184, %v1276
        %v3189 = vadd.f32 %v3185, 1e-05
        %v3190 = vadd.f32 %v3186, 1e-05
        %v3191 = vadd.f32 %v3187, 1e-05
        %v3192 = vadd.f32 %v3188, 1e-05
        %v3193 = vrsqrt.pop %v3189
        %v3194 = vrsqrt.pop %v3190
        %v3195 = vrsqrt.pop %v3191
        %v3196 = vrsqrt.pop %v3192
        %v3197 = vmul.f32 %v3169, %v3193
        %v3198 = vmul.f32 %v3170, %v3194
        %v3199 = vmul.f32 %v3171, %v3195
        %v3200 = vmul.f32 %v3172, %v3196
        %v3201 = vlaneseq
        %v3202 = vshrl.u32 %v3201, 7
        %v3203 = vsub.s32 0, %v3202
        %v3204 = vrot.slane %v3155, %v3203
        %v3205 = vmul.f32 %v3197, %v3204
        %v3206 = vmul.f32 %v3198, %v3204
        %v3207 = vmul.f32 %v3199, %v3204
        %v3208 = vmul.f32 %v3200, %v3204
        %v3209 = vlaneseq
        %v3210 = vshrl.u32 %v3209, 7
        %v3211 = vsub.s32 0, %v3210
        %v3212 = vrot.slane %v3156, %v3211
        %v3213 = vadd.f32 %v3205, %v3212
        %v3214 = vadd.f32 %v3206, %v3212
        %v3215 = vadd.f32 %v3207, %v3212
        %v3216 = vadd.f32 %v3208, %v3212
        %v3217 = vmul.f32 %v3213, 0.2
        %v3218 = vmul.f32 %v3214, 0.2
        %v3219 = vmul.f32 %v3215, 0.2
        %v3220 = vmul.f32 %v3216, 0.2
        %v3221 = vmax.f32 %v3213, %v3217
        %v3222 = vmax.f32 %v3214, %v3218
        %v3223 = vmax.f32 %v3215, %v3219
        %v3224 = vmax.f32 %v3216, %v3220
        %v3225 = vpack.c.bf16 %v3222, %v3221
        %v3226 = vpack.c.bf16 %v3224, %v3223
        %s3227 = scalar_lea.vmem [#allocation10], 320
        %v3228 = vld [vmem:[%s3227] sm:$0xf]
        %v3229 = vld [vmem:[%s3227 + $0x4] sm:$0xf]
        %v3230 = vld [vmem:[%s3227 + $0x8] sm:$0xf]
        %v3231 = vld [vmem:[%s3227 + $0xc] sm:$0xf]
        %v3232 = vld [vmem:[%s3227 + $0x10] sm:$0xf]
        %v3233 = vld [vmem:[%s3227 + $0x14] sm:$0xf]
        %v3234 = vld [vmem:[%s3227 + $0x18] sm:$0xf]
        %v3235 = vld [vmem:[%s3227 + $0x1c] sm:$0xf]
        %v3236 = vld [vmem:[%s3227 + $0x20] sm:$0xf]
        %v3237 = vld [vmem:[%s3227 + $0x24] sm:$0xf]
        %v3238 = vld [vmem:[%s3227 + $0x28] sm:$0xf]
        %v3239 = vld [vmem:[%s3227 + $0x2c] sm:$0xf]
        %v3240 = vld [vmem:[%s3227 + $0x30] sm:$0xf]
        %v3241 = vld [vmem:[%s3227 + $0x34] sm:$0xf]
        %v3242 = vld [vmem:[%s3227 + $0x38] sm:$0xf]
        %v3243 = vld [vmem:[%s3227 + $0x3c] sm:$0xf]
        %v3244 = vld [vmem:[#allocation12 + $0x5] sm:$0x1]
        %v3245 = vlaneseq
        %v3246 = vshrl.u32 %v3245, 7
        %v3247 = vsub.s32 0, %v3246
        %v3248 = vrot.slane %v3244, %v3247
        %v3265 = vunpack.c.l.b16 %v3228
        %v3266 = vunpack.c.l.b16 %v3229
        %v3267 = vunpack.c.l.b16 %v3230
        %v3268 = vunpack.c.l.b16 %v3231
        %v3269 = vunpack.c.l.b16 %v3232
        %v3270 = vunpack.c.l.b16 %v3233
        %v3271 = vunpack.c.l.b16 %v3234
        %v3272 = vunpack.c.l.b16 %v3235
        %v3273 = vunpack.c.l.b16 %v3236
        %v3274 = vunpack.c.l.b16 %v3237
        %v3275 = vunpack.c.l.b16 %v3238
        %v3276 = vunpack.c.l.b16 %v3239
        %v3277 = vunpack.c.l.b16 %v3240
        %v3278 = vunpack.c.l.b16 %v3241
        %v3279 = vunpack.c.l.b16 %v3242
        %v3280 = vunpack.c.l.b16 %v3243
        %v3281 = vpack.c.b16 %v3266, %v3265
        %v3282 = vpack.c.b16 %v3268, %v3267
        %v3283 = vpack.c.b16 %v3270, %v3269
        %v3284 = vpack.c.b16 %v3272, %v3271
        %v3285 = vpack.c.b16 %v3274, %v3273
        %v3286 = vpack.c.b16 %v3276, %v3275
        %v3287 = vpack.c.b16 %v3278, %v3277
        %v3288 = vpack.c.b16 %v3280, %v3279
        %3297 = vmatprep.subr.bf16.mxu0 0
        %3298 = vmatpush1.bf16.msra.mxu0 %v3281
        %3299 = vmatprep.subr.bf16.mxu0 0
        %3300 = vmatpush1.bf16.msra.mxu0 %v3282
        %3301 = vmatprep.subr.bf16.mxu0 0
        %3302 = vmatpush1.bf16.msra.mxu0 %v3283
        %3303 = vmatprep.subr.bf16.mxu0 0
        %3304 = vmatpush1.bf16.msra.mxu0 %v3284
        %3305 = vmatprep.subr.bf16.mxu0 0
        %3306 = vmatpush1.bf16.msra.mxu0 %v3285
        %3307 = vmatprep.subr.bf16.mxu0 0
        %3308 = vmatpush1.bf16.msra.mxu0 %v3286
        %3309 = vmatprep.subr.bf16.mxu0 0
        %3310 = vmatpush1.bf16.msra.mxu0 %v3287
        %3311 = vmatprep.subr.bf16.mxu0 0
        %3312 = vmatpush1.bf16.msra.mxu0 %v3288
        %3313 = vmatprep.subr.bf16.mxu0 0
        %3314 = vmatpush1.bf16.msra.mxu0 0
        %3315 = vmatprep.subr.bf16.mxu0 0
        %3316 = vmatpush1.bf16.msra.mxu0 0
        %3317 = vmatprep.subr.bf16.mxu0 0
        %3318 = vmatpush1.bf16.msra.mxu0 0
        %3319 = vmatprep.subr.bf16.mxu0 0
        %3320 = vmatpush1.bf16.msra.mxu0 0
        %3321 = vmatprep.subr.bf16.mxu0 0
        %3322 = vmatpush1.bf16.msra.mxu0 0
        %3323 = vmatprep.subr.bf16.mxu0 0
        %3324 = vmatpush1.bf16.msra.mxu0 0
        %3325 = vmatprep.subr.bf16.mxu0 0
        %3326 = vmatpush1.bf16.msra.mxu0 0
        %3327 = vmatprep.subr.bf16.mxu0 0
        %3328 = vmatpush1.bf16.msra.mxu0 0
        %3329 = vmatprep.mubr.bf16.mxu0 0
        %3330 = vmatmul.mubr.bf16.gmra.mrb[0].mxu0 %v3225
        %v3331 = vpop.f32.mrb[0].mxu0
        %v3332 = vadd.f32 %v3248, %v3331
        %v3333 = vpop.f32.mrb[0].mxu0
        %v3334 = vpop.f32.mrb[0].mxu0
        %v3335 = vadd.f32 %v3248, %v3334
        %v3336 = vpop.f32.mrb[0].mxu0
        %3337 = vmatprep.mubr.bf16.mxu0 0
        %3338 = vmatmul.mubr.bf16.gmra.mrb[0].mxu0 %v3226
        %v3339 = vpop.f32.mrb[0].mxu0
        %v3340 = vadd.f32 %v3248, %v3339
        %v3341 = vpop.f32.mrb[0].mxu0
        %v3342 = vpop.f32.mrb[0].mxu0
        %v3343 = vadd.f32 %v3248, %v3342
        %v3344 = vpop.f32.mrb[0].mxu0
        %3345 = vdwg.mxu0
        %s3346 = scalar_lea.vmem %s402, 160 [#allocation13]
        %3347 = vst [vmem:[%s3346] sm:$0xff] %v3332
        %3348 = vst [vmem:[%s3346 + $0x8] sm:$0xff] %v3335
        %3349 = vst [vmem:[%s3346 + $0x10] sm:$0xff] %v3340
        %3350 = vst [vmem:[%s3346 + $0x18] sm:$0xff] %v3343
        %v3351 = vld [vmem:[#allocation7 + $0x18] sm:$0xf]
        %v3352 = vld [vmem:[#allocation7 + $0x38] sm:$0xf]
        %v3353 = vld [vmem:[#allocation7 + $0x58] sm:$0xf]
        %v3354 = vld [vmem:[#allocation7 + $0x78] sm:$0xf]
        %v3355 = vld [vmem:[#allocation7 + $0x98] sm:$0xf]
        %v3356 = vld [vmem:[#allocation7 + $0xb8] sm:$0xf]
        %v3357 = vld [vmem:[#allocation7 + $0xd8] sm:$0xf]
        %v3358 = vld [vmem:[#allocation7 + $0xf8] sm:$0xf]
        %v3359 = vld [vmem:[#allocation7 + $0x118] sm:$0xf]
        %v3360 = vld [vmem:[#allocation7 + $0x138] sm:$0xf]
        %v3361 = vld [vmem:[#allocation7 + $0x158] sm:$0xf]
        %v3362 = vld [vmem:[#allocation7 + $0x178] sm:$0xf]
        %v3363 = vld [vmem:[#allocation7 + $0x198] sm:$0xf]
        %v3364 = vld [vmem:[#allocation7 + $0x1b8] sm:$0xf]
        %v3365 = vld [vmem:[#allocation7 + $0x1d8] sm:$0xf]
        %v3366 = vld [vmem:[#allocation7 + $0x1f8] sm:$0xf]
        %v3367 = vld [vmem:[#allocation7 + $0x218] sm:$0xf]
        %v3368 = vld [vmem:[#allocation7 + $0x238] sm:$0xf]
        %v3369 = vld [vmem:[#allocation7 + $0x258] sm:$0xf]
        %v3370 = vld [vmem:[#allocation7 + $0x278] sm:$0xf]
        %v3371 = vld [vmem:[#allocation7 + $0x298] sm:$0xf]
        %v3372 = vld [vmem:[#allocation7 + $0x2b8] sm:$0xf]
        %v3373 = vld [vmem:[#allocation7 + $0x2d8] sm:$0xf]
        %v3374 = vld [vmem:[#allocation7 + $0x2f8] sm:$0xf]
        %v3375 = vld [vmem:[#allocation7 + $0x318] sm:$0xf]
        %v3376 = vld [vmem:[#allocation7 + $0x338] sm:$0xf]
        %v3377 = vld [vmem:[#allocation7 + $0x358] sm:$0xf]
        %v3378 = vld [vmem:[#allocation7 + $0x378] sm:$0xf]
        %v3379 = vld [vmem:[#allocation7 + $0x398] sm:$0xf]
        %v3380 = vld [vmem:[#allocation7 + $0x3b8] sm:$0xf]
        %v3381 = vld [vmem:[#allocation7 + $0x3d8] sm:$0xf]
        %v3382 = vld [vmem:[#allocation7 + $0x3f8] sm:$0xf]
        %v3383 = vld [vmem:[#allocation9 + $0x18] sm:$0x1]
        %v3384 = vlaneseq
        %v3385 = vshrl.u32 %v3384, 7
        %v3386 = vsub.s32 0, %v3385
        %v3387 = vrot.slane %v3383, %v3386
        %v3420 = vunpack.c.l.b16 %v3351
        %v3421 = vunpack.c.l.b16 %v3352
        %v3422 = vunpack.c.l.b16 %v3353
        %v3423 = vunpack.c.l.b16 %v3354
        %v3424 = vunpack.c.l.b16 %v3355
        %v3425 = vunpack.c.l.b16 %v3356
        %v3426 = vunpack.c.l.b16 %v3357
        %v3427 = vunpack.c.l.b16 %v3358
        %v3428 = vunpack.c.l.b16 %v3359
        %v3429 = vunpack.c.l.b16 %v3360
        %v3430 = vunpack.c.l.b16 %v3361
        %v3431 = vunpack.c.l.b16 %v3362
        %v3432 = vunpack.c.l.b16 %v3363
        %v3433 = vunpack.c.l.b16 %v3364
        %v3434 = vunpack.c.l.b16 %v3365
        %v3435 = vunpack.c.l.b16 %v3366
        %v3436 = vunpack.c.l.b16 %v3367
        %v3437 = vunpack.c.l.b16 %v3368
        %v3438 = vunpack.c.l.b16 %v3369
        %v3439 = vunpack.c.l.b16 %v3370
        %v3440 = vunpack.c.l.b16 %v3371
        %v3441 = vunpack.c.l.b16 %v3372
        %v3442 = vunpack.c.l.b16 %v3373
        %v3443 = vunpack.c.l.b16 %v3374
        %v3444 = vunpack.c.l.b16 %v3375
        %v3445 = vunpack.c.l.b16 %v3376
        %v3446 = vunpack.c.l.b16 %v3377
        %v3447 = vunpack.c.l.b16 %v3378
        %v3448 = vunpack.c.l.b16 %v3379
        %v3449 = vunpack.c.l.b16 %v3380
        %v3450 = vunpack.c.l.b16 %v3381
        %v3451 = vunpack.c.l.b16 %v3382
        %v3452 = vpack.c.b16 %v3421, %v3420
        %v3453 = vpack.c.b16 %v3423, %v3422
        %v3454 = vpack.c.b16 %v3425, %v3424
        %v3455 = vpack.c.b16 %v3427, %v3426
        %v3456 = vpack.c.b16 %v3429, %v3428
        %v3457 = vpack.c.b16 %v3431, %v3430
        %v3458 = vpack.c.b16 %v3433, %v3432
        %v3459 = vpack.c.b16 %v3435, %v3434
        %v3460 = vpack.c.b16 %v3437, %v3436
        %v3461 = vpack.c.b16 %v3439, %v3438
        %v3462 = vpack.c.b16 %v3441, %v3440
        %v3463 = vpack.c.b16 %v3443, %v3442
        %v3464 = vpack.c.b16 %v3445, %v3444
        %v3465 = vpack.c.b16 %v3447, %v3446
        %v3466 = vpack.c.b16 %v3449, %v3448
        %v3467 = vpack.c.b16 %v3451, %v3450
        %3484 = vmatprep.subr.bf16.mxu0 0
        %3485 = vmatpush1.bf16.msra.mxu0 %v3452
        %3486 = vmatprep.subr.bf16.mxu0 0
        %3487 = vmatpush1.bf16.msra.mxu0 %v3453
        %3488 = vmatprep.subr.bf16.mxu0 0
        %3489 = vmatpush1.bf16.msra.mxu0 %v3454
        %3490 = vmatprep.subr.bf16.mxu0 0
        %3491 = vmatpush1.bf16.msra.mxu0 %v3455
        %3492 = vmatprep.subr.bf16.mxu0 0
        %3493 = vmatpush1.bf16.msra.mxu0 %v3456
        %3494 = vmatprep.subr.bf16.mxu0 0
        %3495 = vmatpush1.bf16.msra.mxu0 %v3457
        %3496 = vmatprep.subr.bf16.mxu0 0
        %3497 = vmatpush1.bf16.msra.mxu0 %v3458
        %3498 = vmatprep.subr.bf16.mxu0 0
        %3499 = vmatpush1.bf16.msra.mxu0 %v3459
        %3500 = vmatprep.subr.bf16.mxu0 0
        %3501 = vmatpush1.bf16.msra.mxu0 %v3460
        %3502 = vmatprep.subr.bf16.mxu0 0
        %3503 = vmatpush1.bf16.msra.mxu0 %v3461
        %3504 = vmatprep.subr.bf16.mxu0 0
        %3505 = vmatpush1.bf16.msra.mxu0 %v3462
        %3506 = vmatprep.subr.bf16.mxu0 0
        %3507 = vmatpush1.bf16.msra.mxu0 %v3463
        %3508 = vmatprep.subr.bf16.mxu0 0
        %3509 = vmatpush1.bf16.msra.mxu0 %v3464
        %3510 = vmatprep.subr.bf16.mxu0 0
        %3511 = vmatpush1.bf16.msra.mxu0 %v3465
        %3512 = vmatprep.subr.bf16.mxu0 0
        %3513 = vmatpush1.bf16.msra.mxu0 %v3466
        %3514 = vmatprep.subr.bf16.mxu0 0
        %3515 = vmatpush1.bf16.msra.mxu0 %v3467
        %3516 = vmatprep.mubr.bf16.mxu0 %v1081
        %3517 = vmatmul.mubr.bf16.gmra.mrb[0].mxu0 %v1080
        %v3518 = vpop.f32.mrb[0].mxu0
        %v3519 = vadd.f32 %v3387, %v3518
        %v3520 = vpop.f32.mrb[0].mxu0
        %v3521 = vpop.f32.mrb[0].mxu0
        %v3522 = vadd.f32 %v3387, %v3521
        %v3523 = vpop.f32.mrb[0].mxu0
        %3524 = vmatprep.mubr.bf16.mxu0 %v1083
        %3525 = vmatmul.mubr.bf16.gmra.mrb[0].mxu0 %v1082
        %v3526 = vpop.f32.mrb[0].mxu0
        %v3527 = vadd.f32 %v3387, %v3526
        %v3528 = vpop.f32.mrb[0].mxu0
        %v3529 = vpop.f32.mrb[0].mxu0
        %v3530 = vadd.f32 %v3387, %v3529
        %v3531 = vpop.f32.mrb[0].mxu0
        %3532 = vdwg.mxu0
        %v3533 = vld [vmem:[#allocation9 + $0x19] sm:$0x1]
        %v3534 = vld [vmem:[#allocation9 + $0x1a] sm:$0x1]
        %3535 = vadd.xlane.f32.xlu0 %v3519
        %v3536 = vpop.xlane.xlu0 %3535
        %3537 = vadd.xlane.f32.xlu0 %v3522
        %v3538 = vpop.xlane.xlu0 %3537
        %3539 = vadd.xlane.f32.xlu0 %v3527
        %v3540 = vpop.xlane.xlu0 %3539
        %3541 = vadd.xlane.f32.xlu0 %v3530
        %v3542 = vpop.xlane.xlu0 %3541
        %v3543 = vmul.f32 %v3536, %v1276
        %v3544 = vmul.f32 %v3538, %v1276
        %v3545 = vmul.f32 %v3540, %v1276
        %v3546 = vmul.f32 %v3542, %v1276
        %v3547 = vsub.f32 %v3519, %v3543
        %v3548 = vsub.f32 %v3522, %v3544
        %v3549 = vsub.f32 %v3527, %v3545
        %v3550 = vsub.f32 %v3530, %v3546
        %v3551 = vmul.f32 %v3547, %v3547
        %v3552 = vmul.f32 %v3548, %v3548
        %v3553 = vmul.f32 %v3549, %v3549
        %v3554 = vmul.f32 %v3550, %v3550
        %3555 = vadd.xlane.f32.xlu0 %v3551
        %v3556 = vpop.xlane.xlu0 %3555
        %3557 = vadd.xlane.f32.xlu0 %v3552
        %v3558 = vpop.xlane.xlu0 %3557
        %3559 = vadd.xlane.f32.xlu0 %v3553
        %v3560 = vpop.xlane.xlu0 %3559
        %3561 = vadd.xlane.f32.xlu0 %v3554
        %v3562 = vpop.xlane.xlu0 %3561
        %v3563 = vmul.f32 %v3556, %v1276
        %v3564 = vmul.f32 %v3558, %v1276
        %v3565 = vmul.f32 %v3560, %v1276
        %v3566 = vmul.f32 %v3562, %v1276
        %v3567 = vadd.f32 %v3563, 1e-05
        %v3568 = vadd.f32 %v3564, 1e-05
        %v3569 = vadd.f32 %v3565, 1e-05
        %v3570 = vadd.f32 %v3566, 1e-05
        %v3571 = vrsqrt.pop %v3567
        %v3572 = vrsqrt.pop %v3568
        %v3573 = vrsqrt.pop %v3569
        %v3574 = vrsqrt.pop %v3570
        %v3575 = vmul.f32 %v3547, %v3571
        %v3576 = vmul.f32 %v3548, %v3572
        %v3577 = vmul.f32 %v3549, %v3573
        %v3578 = vmul.f32 %v3550, %v3574
        %v3579 = vlaneseq
        %v3580 = vshrl.u32 %v3579, 7
        %v3581 = vsub.s32 0, %v3580
        %v3582 = vrot.slane %v3533, %v3581
        %v3583 = vmul.f32 %v3575, %v3582
        %v3584 = vmul.f32 %v3576, %v3582
        %v3585 = vmul.f32 %v3577, %v3582
        %v3586 = vmul.f32 %v3578, %v3582
        %v3587 = vlaneseq
        %v3588 = vshrl.u32 %v3587, 7
        %v3589 = vsub.s32 0, %v3588
        %v3590 = vrot.slane %v3534, %v3589
        %v3591 = vadd.f32 %v3583, %v3590
        %v3592 = vadd.f32 %v3584, %v3590
        %v3593 = vadd.f32 %v3585, %v3590
        %v3594 = vadd.f32 %v3586, %v3590
        %v3595 = vmul.f32 %v3591, 0.2
        %v3596 = vmul.f32 %v3592, 0.2
        %v3597 = vmul.f32 %v3593, 0.2
        %v3598 = vmul.f32 %v3594, 0.2
        %v3599 = vmax.f32 %v3591, %v3595
        %v3600 = vmax.f32 %v3592, %v3596
        %v3601 = vmax.f32 %v3593, %v3597
        %v3602 = vmax.f32 %v3594, %v3598
        %v3603 = vpack.c.bf16 %v3600, %v3599
        %v3604 = vpack.c.bf16 %v3602, %v3601
        %s3605 = scalar_lea.vmem [#allocation10], 384
        %v3606 = vld [vmem:[%s3605] sm:$0xf]
        %v3607 = vld [vmem:[%s3605 + $0x4] sm:$0xf]
        %v3608 = vld [vmem:[%s3605 + $0x8] sm:$0xf]
        %v3609 = vld [vmem:[%s3605 + $0xc] sm:$0xf]
        %v3610 = vld [vmem:[%s3605 + $0x10] sm:$0xf]
        %v3611 = vld [vmem:[%s3605 + $0x14] sm:$0xf]
        %v3612 = vld [vmem:[%s3605 + $0x18] sm:$0xf]
        %v3613 = vld [vmem:[%s3605 + $0x1c] sm:$0xf]
        %v3614 = vld [vmem:[%s3605 + $0x20] sm:$0xf]
        %v3615 = vld [vmem:[%s3605 + $0x24] sm:$0xf]
        %v3616 = vld [vmem:[%s3605 + $0x28] sm:$0xf]
        %v3617 = vld [vmem:[%s3605 + $0x2c] sm:$0xf]
        %v3618 = vld [vmem:[%s3605 + $0x30] sm:$0xf]
        %v3619 = vld [vmem:[%s3605 + $0x34] sm:$0xf]
        %v3620 = vld [vmem:[%s3605 + $0x38] sm:$0xf]
        %v3621 = vld [vmem:[%s3605 + $0x3c] sm:$0xf]
        %v3622 = vld [vmem:[#allocation12 + $0x6] sm:$0x1]
        %v3623 = vlaneseq
        %v3624 = vshrl.u32 %v3623, 7
        %v3625 = vsub.s32 0, %v3624
        %v3626 = vrot.slane %v3622, %v3625
        %v3643 = vunpack.c.l.b16 %v3606
        %v3644 = vunpack.c.l.b16 %v3607
        %v3645 = vunpack.c.l.b16 %v3608
        %v3646 = vunpack.c.l.b16 %v3609
        %v3647 = vunpack.c.l.b16 %v3610
        %v3648 = vunpack.c.l.b16 %v3611
        %v3649 = vunpack.c.l.b16 %v3612
        %v3650 = vunpack.c.l.b16 %v3613
        %v3651 = vunpack.c.l.b16 %v3614
        %v3652 = vunpack.c.l.b16 %v3615
        %v3653 = vunpack.c.l.b16 %v3616
        %v3654 = vunpack.c.l.b16 %v3617
        %v3655 = vunpack.c.l.b16 %v3618
        %v3656 = vunpack.c.l.b16 %v3619
        %v3657 = vunpack.c.l.b16 %v3620
        %v3658 = vunpack.c.l.b16 %v3621
        %v3659 = vpack.c.b16 %v3644, %v3643
        %v3660 = vpack.c.b16 %v3646, %v3645
        %v3661 = vpack.c.b16 %v3648, %v3647
        %v3662 = vpack.c.b16 %v3650, %v3649
        %v3663 = vpack.c.b16 %v3652, %v3651
        %v3664 = vpack.c.b16 %v3654, %v3653
        %v3665 = vpack.c.b16 %v3656, %v3655
        %v3666 = vpack.c.b16 %v3658, %v3657
        %3675 = vmatprep.subr.bf16.mxu0 0
        %3676 = vmatpush1.bf16.msra.mxu0 %v3659
        %3677 = vmatprep.subr.bf16.mxu0 0
        %3678 = vmatpush1.bf16.msra.mxu0 %v3660
        %3679 = vmatprep.subr.bf16.mxu0 0
        %3680 = vmatpush1.bf16.msra.mxu0 %v3661
        %3681 = vmatprep.subr.bf16.mxu0 0
        %3682 = vmatpush1.bf16.msra.mxu0 %v3662
        %3683 = vmatprep.subr.bf16.mxu0 0
        %3684 = vmatpush1.bf16.msra.mxu0 %v3663
        %3685 = vmatprep.subr.bf16.mxu0 0
        %3686 = vmatpush1.bf16.msra.mxu0 %v3664
        %3687 = vmatprep.subr.bf16.mxu0 0
        %3688 = vmatpush1.bf16.msra.mxu0 %v3665
        %3689 = vmatprep.subr.bf16.mxu0 0
        %3690 = vmatpush1.bf16.msra.mxu0 %v3666
        %3691 = vmatprep.subr.bf16.mxu0 0
        %3692 = vmatpush1.bf16.msra.mxu0 0
        %3693 = vmatprep.subr.bf16.mxu0 0
        %3694 = vmatpush1.bf16.msra.mxu0 0
        %3695 = vmatprep.subr.bf16.mxu0 0
        %3696 = vmatpush1.bf16.msra.mxu0 0
        %3697 = vmatprep.subr.bf16.mxu0 0
        %3698 = vmatpush1.bf16.msra.mxu0 0
        %3699 = vmatprep.subr.bf16.mxu0 0
        %3700 = vmatpush1.bf16.msra.mxu0 0
        %3701 = vmatprep.subr.bf16.mxu0 0
        %3702 = vmatpush1.bf16.msra.mxu0 0
        %3703 = vmatprep.subr.bf16.mxu0 0
        %3704 = vmatpush1.bf16.msra.mxu0 0
        %3705 = vmatprep.subr.bf16.mxu0 0
        %3706 = vmatpush1.bf16.msra.mxu0 0
        %3707 = vmatprep.mubr.bf16.mxu0 0
        %3708 = vmatmul.mubr.bf16.gmra.mrb[0].mxu0 %v3603
        %v3709 = vpop.f32.mrb[0].mxu0
        %v3710 = vadd.f32 %v3626, %v3709
        %v3711 = vpop.f32.mrb[0].mxu0
        %v3712 = vpop.f32.mrb[0].mxu0
        %v3713 = vadd.f32 %v3626, %v3712
        %v3714 = vpop.f32.mrb[0].mxu0
        %3715 = vmatprep.mubr.bf16.mxu0 0
        %3716 = vmatmul.mubr.bf16.gmra.mrb[0].mxu0 %v3604
        %v3717 = vpop.f32.mrb[0].mxu0
        %v3718 = vadd.f32 %v3626, %v3717
        %v3719 = vpop.f32.mrb[0].mxu0
        %v3720 = vpop.f32.mrb[0].mxu0
        %v3721 = vadd.f32 %v3626, %v3720
        %v3722 = vpop.f32.mrb[0].mxu0
        %3723 = vdwg.mxu0
        %s3724 = scalar_lea.vmem %s402, 192 [#allocation13]
        %3725 = vst [vmem:[%s3724] sm:$0xff] %v3710
        %3726 = vst [vmem:[%s3724 + $0x8] sm:$0xff] %v3713
        %3727 = vst [vmem:[%s3724 + $0x10] sm:$0xff] %v3718
        %3728 = vst [vmem:[%s3724 + $0x18] sm:$0xff] %v3721
        %v3729 = vld [vmem:[#allocation7 + $0x1c] sm:$0xf]
        %v3730 = vld [vmem:[#allocation7 + $0x3c] sm:$0xf]
        %v3731 = vld [vmem:[#allocation7 + $0x5c] sm:$0xf]
        %v3732 = vld [vmem:[#allocation7 + $0x7c] sm:$0xf]
        %v3733 = vld [vmem:[#allocation7 + $0x9c] sm:$0xf]
        %v3734 = vld [vmem:[#allocation7 + $0xbc] sm:$0xf]
        %v3735 = vld [vmem:[#allocation7 + $0xdc] sm:$0xf]
        %v3736 = vld [vmem:[#allocation7 + $0xfc] sm:$0xf]
        %v3737 = vld [vmem:[#allocation7 + $0x11c] sm:$0xf]
        %v3738 = vld [vmem:[#allocation7 + $0x13c] sm:$0xf]
        %v3739 = vld [vmem:[#allocation7 + $0x15c] sm:$0xf]
        %v3740 = vld [vmem:[#allocation7 + $0x17c] sm:$0xf]
        %v3741 = vld [vmem:[#allocation7 + $0x19c] sm:$0xf]
        %v3742 = vld [vmem:[#allocation7 + $0x1bc] sm:$0xf]
        %v3743 = vld [vmem:[#allocation7 + $0x1dc] sm:$0xf]
        %v3744 = vld [vmem:[#allocation7 + $0x1fc] sm:$0xf]
        %v3745 = vld [vmem:[#allocation7 + $0x21c] sm:$0xf]
        %v3746 = vld [vmem:[#allocation7 + $0x23c] sm:$0xf]
        %v3747 = vld [vmem:[#allocation7 + $0x25c] sm:$0xf]
        %v3748 = vld [vmem:[#allocation7 + $0x27c] sm:$0xf]
        %v3749 = vld [vmem:[#allocation7 + $0x29c] sm:$0xf]
        %v3750 = vld [vmem:[#allocation7 + $0x2bc] sm:$0xf]
        %v3751 = vld [vmem:[#allocation7 + $0x2dc] sm:$0xf]
        %v3752 = vld [vmem:[#allocation7 + $0x2fc] sm:$0xf]
        %v3753 = vld [vmem:[#allocation7 + $0x31c] sm:$0xf]
        %v3754 = vld [vmem:[#allocation7 + $0x33c] sm:$0xf]
        %v3755 = vld [vmem:[#allocation7 + $0x35c] sm:$0xf]
        %v3756 = vld [vmem:[#allocation7 + $0x37c] sm:$0xf]
        %v3757 = vld [vmem:[#allocation7 + $0x39c] sm:$0xf]
        %v3758 = vld [vmem:[#allocation7 + $0x3bc] sm:$0xf]
        %v3759 = vld [vmem:[#allocation7 + $0x3dc] sm:$0xf]
        %v3760 = vld [vmem:[#allocation7 + $0x3fc] sm:$0xf]
        %v3761 = vld [vmem:[#allocation9 + $0x1c] sm:$0x1]
        %v3762 = vlaneseq
        %v3763 = vshrl.u32 %v3762, 7
        %v3764 = vsub.s32 0, %v3763
        %v3765 = vrot.slane %v3761, %v3764
        %v3798 = vunpack.c.l.b16 %v3729
        %v3799 = vunpack.c.l.b16 %v3730
        %v3800 = vunpack.c.l.b16 %v3731
        %v3801 = vunpack.c.l.b16 %v3732
        %v3802 = vunpack.c.l.b16 %v3733
        %v3803 = vunpack.c.l.b16 %v3734
        %v3804 = vunpack.c.l.b16 %v3735
        %v3805 = vunpack.c.l.b16 %v3736
        %v3806 = vunpack.c.l.b16 %v3737
        %v3807 = vunpack.c.l.b16 %v3738
        %v3808 = vunpack.c.l.b16 %v3739
        %v3809 = vunpack.c.l.b16 %v3740
        %v3810 = vunpack.c.l.b16 %v3741
        %v3811 = vunpack.c.l.b16 %v3742
        %v3812 = vunpack.c.l.b16 %v3743
        %v3813 = vunpack.c.l.b16 %v3744
        %v3814 = vunpack.c.l.b16 %v3745
        %v3815 = vunpack.c.l.b16 %v3746
        %v3816 = vunpack.c.l.b16 %v3747
        %v3817 = vunpack.c.l.b16 %v3748
        %v3818 = vunpack.c.l.b16 %v3749
        %v3819 = vunpack.c.l.b16 %v3750
        %v3820 = vunpack.c.l.b16 %v3751
        %v3821 = vunpack.c.l.b16 %v3752
        %v3822 = vunpack.c.l.b16 %v3753
        %v3823 = vunpack.c.l.b16 %v3754
        %v3824 = vunpack.c.l.b16 %v3755
        %v3825 = vunpack.c.l.b16 %v3756
        %v3826 = vunpack.c.l.b16 %v3757
        %v3827 = vunpack.c.l.b16 %v3758
        %v3828 = vunpack.c.l.b16 %v3759
        %v3829 = vunpack.c.l.b16 %v3760
        %v3830 = vpack.c.b16 %v3799, %v3798
        %v3831 = vpack.c.b16 %v3801, %v3800
        %v3832 = vpack.c.b16 %v3803, %v3802
        %v3833 = vpack.c.b16 %v3805, %v3804
        %v3834 = vpack.c.b16 %v3807, %v3806
        %v3835 = vpack.c.b16 %v3809, %v3808
        %v3836 = vpack.c.b16 %v3811, %v3810
        %v3837 = vpack.c.b16 %v3813, %v3812
        %v3838 = vpack.c.b16 %v3815, %v3814
        %v3839 = vpack.c.b16 %v3817, %v3816
        %v3840 = vpack.c.b16 %v3819, %v3818
        %v3841 = vpack.c.b16 %v3821, %v3820
        %v3842 = vpack.c.b16 %v3823, %v3822
        %v3843 = vpack.c.b16 %v3825, %v3824
        %v3844 = vpack.c.b16 %v3827, %v3826
        %v3845 = vpack.c.b16 %v3829, %v3828
        %3862 = vmatprep.subr.bf16.mxu0 0
        %3863 = vmatpush1.bf16.msra.mxu0 %v3830
        %3864 = vmatprep.subr.bf16.mxu0 0
        %3865 = vmatpush1.bf16.msra.mxu0 %v3831
        %3866 = vmatprep.subr.bf16.mxu0 0
        %3867 = vmatpush1.bf16.msra.mxu0 %v3832
        %3868 = vmatprep.subr.bf16.mxu0 0
        %3869 = vmatpush1.bf16.msra.mxu0 %v3833
        %3870 = vmatprep.subr.bf16.mxu0 0
        %3871 = vmatpush1.bf16.msra.mxu0 %v3834
        %3872 = vmatprep.subr.bf16.mxu0 0
        %3873 = vmatpush1.bf16.msra.mxu0 %v3835
        %3874 = vmatprep.subr.bf16.mxu0 0
        %3875 = vmatpush1.bf16.msra.mxu0 %v3836
        %3876 = vmatprep.subr.bf16.mxu0 0
        %3877 = vmatpush1.bf16.msra.mxu0 %v3837
        %3878 = vmatprep.subr.bf16.mxu0 0
        %3879 = vmatpush1.bf16.msra.mxu0 %v3838
        %3880 = vmatprep.subr.bf16.mxu0 0
        %3881 = vmatpush1.bf16.msra.mxu0 %v3839
        %3882 = vmatprep.subr.bf16.mxu0 0
        %3883 = vmatpush1.bf16.msra.mxu0 %v3840
        %3884 = vmatprep.subr.bf16.mxu0 0
        %3885 = vmatpush1.bf16.msra.mxu0 %v3841
        %3886 = vmatprep.subr.bf16.mxu0 0
        %3887 = vmatpush1.bf16.msra.mxu0 %v3842
        %3888 = vmatprep.subr.bf16.mxu0 0
        %3889 = vmatpush1.bf16.msra.mxu0 %v3843
        %3890 = vmatprep.subr.bf16.mxu0 0
        %3891 = vmatpush1.bf16.msra.mxu0 %v3844
        %3892 = vmatprep.subr.bf16.mxu0 0
        %3893 = vmatpush1.bf16.msra.mxu0 %v3845
        %3894 = vmatprep.mubr.bf16.mxu0 %v1081
        %3895 = vmatmul.mubr.bf16.gmra.mrb[0].mxu0 %v1080
        %v3896 = vpop.f32.mrb[0].mxu0
        %v3897 = vadd.f32 %v3765, %v3896
        %v3898 = vpop.f32.mrb[0].mxu0
        %v3899 = vpop.f32.mrb[0].mxu0
        %v3900 = vadd.f32 %v3765, %v3899
        %v3901 = vpop.f32.mrb[0].mxu0
        %3902 = vmatprep.mubr.bf16.mxu0 %v1083
        %3903 = vmatmul.mubr.bf16.gmra.mrb[0].mxu0 %v1082
        %v3904 = vpop.f32.mrb[0].mxu0
        %v3905 = vadd.f32 %v3765, %v3904
        %v3906 = vpop.f32.mrb[0].mxu0
        %v3907 = vpop.f32.mrb[0].mxu0
        %v3908 = vadd.f32 %v3765, %v3907
        %v3909 = vpop.f32.mrb[0].mxu0
        %3910 = vdwg.mxu0
        %v3911 = vld [vmem:[#allocation9 + $0x1d] sm:$0x1]
        %v3912 = vld [vmem:[#allocation9 + $0x1e] sm:$0x1]
        %3913 = vadd.xlane.f32.xlu0 %v3897
        %v3914 = vpop.xlane.xlu0 %3913
        %3915 = vadd.xlane.f32.xlu0 %v3900
        %v3916 = vpop.xlane.xlu0 %3915
        %3917 = vadd.xlane.f32.xlu0 %v3905
        %v3918 = vpop.xlane.xlu0 %3917
        %3919 = vadd.xlane.f32.xlu0 %v3908
        %v3920 = vpop.xlane.xlu0 %3919
        %v3921 = vmul.f32 %v3914, %v1276
        %v3922 = vmul.f32 %v3916, %v1276
        %v3923 = vmul.f32 %v3918, %v1276
        %v3924 = vmul.f32 %v3920, %v1276
        %v3925 = vsub.f32 %v3897, %v3921
        %v3926 = vsub.f32 %v3900, %v3922
        %v3927 = vsub.f32 %v3905, %v3923
        %v3928 = vsub.f32 %v3908, %v3924
        %v3929 = vmul.f32 %v3925, %v3925
        %v3930 = vmul.f32 %v3926, %v3926
        %v3931 = vmul.f32 %v3927, %v3927
        %v3932 = vmul.f32 %v3928, %v3928
        %3933 = vadd.xlane.f32.xlu0 %v3929
        %v3934 = vpop.xlane.xlu0 %3933
        %3935 = vadd.xlane.f32.xlu0 %v3930
        %v3936 = vpop.xlane.xlu0 %3935
        %3937 = vadd.xlane.f32.xlu0 %v3931
        %v3938 = vpop.xlane.xlu0 %3937
        %3939 = vadd.xlane.f32.xlu0 %v3932
        %v3940 = vpop.xlane.xlu0 %3939
        %v3941 = vmul.f32 %v3934, %v1276
        %v3942 = vmul.f32 %v3936, %v1276
        %v3943 = vmul.f32 %v3938, %v1276
        %v3944 = vmul.f32 %v3940, %v1276
        %v3945 = vadd.f32 %v3941, 1e-05
        %v3946 = vadd.f32 %v3942, 1e-05
        %v3947 = vadd.f32 %v3943, 1e-05
        %v3948 = vadd.f32 %v3944, 1e-05
        %v3949 = vrsqrt.pop %v3945
        %v3950 = vrsqrt.pop %v3946
        %v3951 = vrsqrt.pop %v3947
        %v3952 = vrsqrt.pop %v3948
        %v3953 = vmul.f32 %v3925, %v3949
        %v3954 = vmul.f32 %v3926, %v3950
        %v3955 = vmul.f32 %v3927, %v3951
        %v3956 = vmul.f32 %v3928, %v3952
        %v3957 = vlaneseq
        %v3958 = vshrl.u32 %v3957, 7
        %v3959 = vsub.s32 0, %v3958
        %v3960 = vrot.slane %v3911, %v3959
        %v3961 = vmul.f32 %v3953, %v3960
        %v3962 = vmul.f32 %v3954, %v3960
        %v3963 = vmul.f32 %v3955, %v3960
        %v3964 = vmul.f32 %v3956, %v3960
        %v3965 = vlaneseq
        %v3966 = vshrl.u32 %v3965, 7
        %v3967 = vsub.s32 0, %v3966
        %v3968 = vrot.slane %v3912, %v3967
        %v3969 = vadd.f32 %v3961, %v3968
        %v3970 = vadd.f32 %v3962, %v3968
        %v3971 = vadd.f32 %v3963, %v3968
        %v3972 = vadd.f32 %v3964, %v3968
        %v3973 = vmul.f32 %v3969, 0.2
        %v3974 = vmul.f32 %v3970, 0.2
        %v3975 = vmul.f32 %v3971, 0.2
        %v3976 = vmul.f32 %v3972, 0.2
        %v3977 = vmax.f32 %v3969, %v3973
        %v3978 = vmax.f32 %v3970, %v3974
        %v3979 = vmax.f32 %v3971, %v3975
        %v3980 = vmax.f32 %v3972, %v3976
        %v3981 = vpack.c.bf16 %v3978, %v3977
        %v3982 = vpack.c.bf16 %v3980, %v3979
        %s3983 = scalar_lea.vmem [#allocation10], 448
        %v3984 = vld [vmem:[%s3983] sm:$0xf]
        %v3985 = vld [vmem:[%s3983 + $0x4] sm:$0xf]
        %v3986 = vld [vmem:[%s3983 + $0x8] sm:$0xf]
        %v3987 = vld [vmem:[%s3983 + $0xc] sm:$0xf]
        %v3988 = vld [vmem:[%s3983 + $0x10] sm:$0xf]
        %v3989 = vld [vmem:[%s3983 + $0x14] sm:$0xf]
        %v3990 = vld [vmem:[%s3983 + $0x18] sm:$0xf]
        %v3991 = vld [vmem:[%s3983 + $0x1c] sm:$0xf]
        %v3992 = vld [vmem:[%s3983 + $0x20] sm:$0xf]
        %v3993 = vld [vmem:[%s3983 + $0x24] sm:$0xf]
        %v3994 = vld [vmem:[%s3983 + $0x28] sm:$0xf]
        %v3995 = vld [vmem:[%s3983 + $0x2c] sm:$0xf]
        %v3996 = vld [vmem:[%s3983 + $0x30] sm:$0xf]
        %v3997 = vld [vmem:[%s3983 + $0x34] sm:$0xf]
        %v3998 = vld [vmem:[%s3983 + $0x38] sm:$0xf]
        %v3999 = vld [vmem:[%s3983 + $0x3c] sm:$0xf]
        %v4000 = vld [vmem:[#allocation12 + $0x7] sm:$0x1]
        %v4001 = vlaneseq
        %v4002 = vshrl.u32 %v4001, 7
        %v4003 = vsub.s32 0, %v4002
        %v4004 = vrot.slane %v4000, %v4003
        %v4021 = vunpack.c.l.b16 %v3984
        %v4022 = vunpack.c.l.b16 %v3985
        %v4023 = vunpack.c.l.b16 %v3986
        %v4024 = vunpack.c.l.b16 %v3987
        %v4025 = vunpack.c.l.b16 %v3988
        %v4026 = vunpack.c.l.b16 %v3989
        %v4027 = vunpack.c.l.b16 %v3990
        %v4028 = vunpack.c.l.b16 %v3991
        %v4029 = vunpack.c.l.b16 %v3992
        %v4030 = vunpack.c.l.b16 %v3993
        %v4031 = vunpack.c.l.b16 %v3994
        %v4032 = vunpack.c.l.b16 %v3995
        %v4033 = vunpack.c.l.b16 %v3996
        %v4034 = vunpack.c.l.b16 %v3997
        %v4035 = vunpack.c.l.b16 %v3998
        %v4036 = vunpack.c.l.b16 %v3999
        %v4037 = vpack.c.b16 %v4022, %v4021
        %v4038 = vpack.c.b16 %v4024, %v4023
        %v4039 = vpack.c.b16 %v4026, %v4025
        %v4040 = vpack.c.b16 %v4028, %v4027
        %v4041 = vpack.c.b16 %v4030, %v4029
        %v4042 = vpack.c.b16 %v4032, %v4031
        %v4043 = vpack.c.b16 %v4034, %v4033
        %v4044 = vpack.c.b16 %v4036, %v4035
        %4053 = vmatprep.subr.bf16.mxu0 0
        %4054 = vmatpush1.bf16.msra.mxu0 %v4037
        %4055 = vmatprep.subr.bf16.mxu0 0
        %4056 = vmatpush1.bf16.msra.mxu0 %v4038
        %4057 = vmatprep.subr.bf16.mxu0 0
        %4058 = vmatpush1.bf16.msra.mxu0 %v4039
        %4059 = vmatprep.subr.bf16.mxu0 0
        %4060 = vmatpush1.bf16.msra.mxu0 %v4040
        %4061 = vmatprep.subr.bf16.mxu0 0
        %4062 = vmatpush1.bf16.msra.mxu0 %v4041
        %4063 = vmatprep.subr.bf16.mxu0 0
        %4064 = vmatpush1.bf16.msra.mxu0 %v4042
        %4065 = vmatprep.subr.bf16.mxu0 0
        %4066 = vmatpush1.bf16.msra.mxu0 %v4043
        %4067 = vmatprep.subr.bf16.mxu0 0
        %4068 = vmatpush1.bf16.msra.mxu0 %v4044
        %4069 = vmatprep.subr.bf16.mxu0 0
        %4070 = vmatpush1.bf16.msra.mxu0 0
        %4071 = vmatprep.subr.bf16.mxu0 0
        %4072 = vmatpush1.bf16.msra.mxu0 0
        %4073 = vmatprep.subr.bf16.mxu0 0
        %4074 = vmatpush1.bf16.msra.mxu0 0
        %4075 = vmatprep.subr.bf16.mxu0 0
        %4076 = vmatpush1.bf16.msra.mxu0 0
        %4077 = vmatprep.subr.bf16.mxu0 0
        %4078 = vmatpush1.bf16.msra.mxu0 0
        %4079 = vmatprep.subr.bf16.mxu0 0
        %4080 = vmatpush1.bf16.msra.mxu0 0
        %4081 = vmatprep.subr.bf16.mxu0 0
        %4082 = vmatpush1.bf16.msra.mxu0 0
        %4083 = vmatprep.subr.bf16.mxu0 0
        %4084 = vmatpush1.bf16.msra.mxu0 0
        %4085 = vmatprep.mubr.bf16.mxu0 0
        %4086 = vmatmul.mubr.bf16.gmra.mrb[0].mxu0 %v3981
        %v4087 = vpop.f32.mrb[0].mxu0
        %v4088 = vadd.f32 %v4004, %v4087
        %v4089 = vpop.f32.mrb[0].mxu0
        %v4090 = vpop.f32.mrb[0].mxu0
        %v4091 = vadd.f32 %v4004, %v4090
        %v4092 = vpop.f32.mrb[0].mxu0
        %4093 = vmatprep.mubr.bf16.mxu0 0
        %4094 = vmatmul.mubr.bf16.gmra.mrb[0].mxu0 %v3982
        %v4095 = vpop.f32.mrb[0].mxu0
        %v4096 = vadd.f32 %v4004, %v4095
        %v4097 = vpop.f32.mrb[0].mxu0
        %v4098 = vpop.f32.mrb[0].mxu0
        %v4099 = vadd.f32 %v4004, %v4098
        %v4100 = vpop.f32.mrb[0].mxu0
        %4101 = vdwg.mxu0
        %s4102 = scalar_lea.vmem %s402, 224 [#allocation13]
        %4103 = vst [vmem:[%s4102] sm:$0xff] %v4088
        %4104 = vst [vmem:[%s4102 + $0x8] sm:$0xff] %v4091
        %4105 = vst [vmem:[%s4102 + $0x10] sm:$0xff] %v4096
        %4106 = vst [vmem:[%s4102 + $0x18] sm:$0xff] %v4099
        %s4107 = sand.u32 %s206, 1
        %s4108 = sand.u32 %s206, 1
        %s4109 = smul.addr %s4108, 256
        %s4110 = scalar_lea.vmem [#allocation13], %s4109
        // Predicated region
        $region81: #{_lambda_.1} parent=51 // pred_check
          %p4111 = pneg %p216
        $region82: #{_lambda_.1} parent=51 // pred_check_branch
          %4113 = sbr.rel (%p4111) target = $region84
        $region83: #{_lambda_.1} parent=51 // pred_region
          %s4114 = smul.u32 4, %s25
          %s4115 = smul.addr %s4114, 8
          %s4116 = scalar_lea.vmem %s8, %s4115
          // Predicated region
          $region85: #{_lambda_.1} parent=83 // pred_check
            _
          $region86: #{_lambda_.1} parent=83 // pred_check_branch
            %4118 = sbr.rel (0) target = $region88
          $region87: #{_lambda_.1} parent=83 // pred_region
            // Predicated region
            $region89: #{_lambda_.1} parent=87 // pred_check
              _
            $region90: #{_lambda_.1} parent=87 // pred_check_branch
              %4120 = sbr.rel (0) target = $region92
            $region91: #{_lambda_.1} parent=87 // pred_region
              // Predicated region
              $region104: #{_lambda_.1} parent=91 // pred_check
                _
              $region105: #{_lambda_.1} parent=91 // pred_check_branch
                %4197 = sbr.rel (0) target = $region107
              $region106: #{_lambda_.1} parent=91 // pred_region
                loop: start=0, step=1, limit=1
                $region108: #{_lambda_.1} parent=106 // loop_pre_header
                  _
                $region109: #{_lambda_.1} parent=106 // loop_header
                  %s4199 = sphi 0, %s4203
                  %p4200 = scmp.ge.s32.totalorder %s4199, 1
                  %s4204 = sphi %s4110, %s4110
                  %s4205 = sphi %s4116, %s4116
                $region110: #{_lambda_.1} parent=106 // loop_header_branch
                  %4202 = sbr.rel (%p4200) target = $region114
                $region111: #{_lambda_.1} parent=106 // loop_body
                  %v4206 = vld [vmem:[%s4204] sm:$0xff]
                  %4207 = vst [vmem:[%s4205] sm:$0xff] %v4206
                  %v4208 = vld [vmem:[%s4204 + $0x8] sm:$0xff]
                  %4209 = vst [vmem:[%s4205 + $0x8] sm:$0xff] %v4208
                  %v4210 = vld [vmem:[%s4204 + $0x10] sm:$0xff]
                  %4211 = vst [vmem:[%s4205 + $0x10] sm:$0xff] %v4210
                  %v4212 = vld [vmem:[%s4204 + $0x18] sm:$0xff]
                  %4213 = vst [vmem:[%s4205 + $0x18] sm:$0xff] %v4212
                  %v4214 = vld [vmem:[%s4204 + $0x20] sm:$0xff]
                  %4215 = vst [vmem:[%s4205 + $0x40] sm:$0xff] %v4214
                  %v4216 = vld [vmem:[%s4204 + $0x28] sm:$0xff]
                  %4217 = vst [vmem:[%s4205 + $0x48] sm:$0xff] %v4216
                  %v4218 = vld [vmem:[%s4204 + $0x30] sm:$0xff]
                  %4219 = vst [vmem:[%s4205 + $0x50] sm:$0xff] %v4218
                  %v4220 = vld [vmem:[%s4204 + $0x38] sm:$0xff]
                  %4221 = vst [vmem:[%s4205 + $0x58] sm:$0xff] %v4220
                  %v4222 = vld [vmem:[%s4204 + $0x40] sm:$0xff]
                  %4223 = vst [vmem:[%s4205 + $0x80] sm:$0xff] %v4222
                  %v4224 = vld [vmem:[%s4204 + $0x48] sm:$0xff]
                  %4225 = vst [vmem:[%s4205 + $0x88] sm:$0xff] %v4224
                  %v4226 = vld [vmem:[%s4204 + $0x50] sm:$0xff]
                  %4227 = vst [vmem:[%s4205 + $0x90] sm:$0xff] %v4226
                  %v4228 = vld [vmem:[%s4204 + $0x58] sm:$0xff]
                  %4229 = vst [vmem:[%s4205 + $0x98] sm:$0xff] %v4228
                  %v4230 = vld [vmem:[%s4204 + $0x60] sm:$0xff]
                  %4231 = vst [vmem:[%s4205 + $0xc0] sm:$0xff] %v4230
                  %v4232 = vld [vmem:[%s4204 + $0x68] sm:$0xff]
                  %4233 = vst [vmem:[%s4205 + $0xc8] sm:$0xff] %v4232
                  %v4234 = vld [vmem:[%s4204 + $0x70] sm:$0xff]
                  %4235 = vst [vmem:[%s4205 + $0xd0] sm:$0xff] %v4234
                  %v4236 = vld [vmem:[%s4204 + $0x78] sm:$0xff]
                  %4237 = vst [vmem:[%s4205 + $0xd8] sm:$0xff] %v4236
                  %v4238 = vld [vmem:[%s4204 + $0x80] sm:$0xff]
                  %4239 = vst [vmem:[%s4205 + $0x100] sm:$0xff] %v4238
                  %v4240 = vld [vmem:[%s4204 + $0x88] sm:$0xff]
                  %4241 = vst [vmem:[%s4205 + $0x108] sm:$0xff] %v4240
                  %v4242 = vld [vmem:[%s4204 + $0x90] sm:$0xff]
                  %4243 = vst [vmem:[%s4205 + $0x110] sm:$0xff] %v4242
                  %v4244 = vld [vmem:[%s4204 + $0x98] sm:$0xff]
                  %4245 = vst [vmem:[%s4205 + $0x118] sm:$0xff] %v4244
                  %v4246 = vld [vmem:[%s4204 + $0xa0] sm:$0xff]
                  %4247 = vst [vmem:[%s4205 + $0x140] sm:$0xff] %v4246
                  %v4248 = vld [vmem:[%s4204 + $0xa8] sm:$0xff]
                  %4249 = vst [vmem:[%s4205 + $0x148] sm:$0xff] %v4248
                  %v4250 = vld [vmem:[%s4204 + $0xb0] sm:$0xff]
                  %4251 = vst [vmem:[%s4205 + $0x150] sm:$0xff] %v4250
                  %v4252 = vld [vmem:[%s4204 + $0xb8] sm:$0xff]
                  %4253 = vst [vmem:[%s4205 + $0x158] sm:$0xff] %v4252
                  %v4254 = vld [vmem:[%s4204 + $0xc0] sm:$0xff]
                  %4255 = vst [vmem:[%s4205 + $0x180] sm:$0xff] %v4254
                  %v4256 = vld [vmem:[%s4204 + $0xc8] sm:$0xff]
                  %4257 = vst [vmem:[%s4205 + $0x188] sm:$0xff] %v4256
                  %v4258 = vld [vmem:[%s4204 + $0xd0] sm:$0xff]
                  %4259 = vst [vmem:[%s4205 + $0x190] sm:$0xff] %v4258
                  %v4260 = vld [vmem:[%s4204 + $0xd8] sm:$0xff]
                  %4261 = vst [vmem:[%s4205 + $0x198] sm:$0xff] %v4260
                  %v4262 = vld [vmem:[%s4204 + $0xe0] sm:$0xff]
                  %4263 = vst [vmem:[%s4205 + $0x1c0] sm:$0xff] %v4262
                  %v4264 = vld [vmem:[%s4204 + $0xe8] sm:$0xff]
                  %4265 = vst [vmem:[%s4205 + $0x1c8] sm:$0xff] %v4264
                  %v4266 = vld [vmem:[%s4204 + $0xf0] sm:$0xff]
                  %4267 = vst [vmem:[%s4205 + $0x1d0] sm:$0xff] %v4266
                  %v4268 = vld [vmem:[%s4204 + $0xf8] sm:$0xff]
                  %4269 = vst [vmem:[%s4205 + $0x1d8] sm:$0xff] %v4268
                $region112: #{_lambda_.1} parent=106 // loop_footer
                  %s4203 = sadd.s32 1, %s4199
                $region113: #{_lambda_.1} parent=106 // loop_footer_branch
                  %4198 = sbr.rel target = $region109
                $region114: #{_lambda_.1} parent=106 // loop_exit
                  _
              $region107: #{_lambda_.1} parent=91 // pred_fallthru
                _
              // Predicated region
              $region115: #{_lambda_.1} parent=91 // pred_check
                _
              $region116: #{_lambda_.1} parent=91 // pred_check_branch
                %4271 = sbr.rel target = $region118
              $region117: #{_lambda_.1} parent=91 // pred_region
                _
              $region118: #{_lambda_.1} parent=91 // pred_fallthru
                _
            $region92: #{_lambda_.1} parent=87 // pred_fallthru
              _
            // Predicated region
            $region93: #{_lambda_.1} parent=87 // pred_check
              _
            $region94: #{_lambda_.1} parent=87 // pred_check_branch
              %4122 = sbr.rel target = $region96
            $region95: #{_lambda_.1} parent=87 // pred_region
              loop: start=0, step=1, limit=1
              $region97: #{_lambda_.1} parent=95 // loop_pre_header
                _
              $region98: #{_lambda_.1} parent=95 // loop_header
                %s4125 = sphi 0, %s4129
                %p4126 = scmp.ge.s32.totalorder %s4125, 1
                %s4130 = sphi %s4110, %s4110
                %s4131 = sphi %s4116, %s4116
              $region99: #{_lambda_.1} parent=95 // loop_header_branch
                %4128 = sbr.rel (%p4126) target = $region103
              $region100: #{_lambda_.1} parent=95 // loop_body
                %v4132 = vld [vmem:[%s4130] sm:$0xff]
                %4133 = vst [vmem:[%s4131] sm:$0xff] %v4132
                %v4134 = vld [vmem:[%s4130 + $0x8] sm:$0xff]
                %4135 = vst [vmem:[%s4131 + $0x8] sm:$0xff] %v4134
                %v4136 = vld [vmem:[%s4130 + $0x10] sm:$0xff]
                %4137 = vst [vmem:[%s4131 + $0x10] sm:$0xff] %v4136
                %v4138 = vld [vmem:[%s4130 + $0x18] sm:$0xff]
                %4139 = vst [vmem:[%s4131 + $0x18] sm:$0xff] %v4138
                %v4140 = vld [vmem:[%s4130 + $0x20] sm:$0xff]
                %4141 = vst [vmem:[%s4131 + $0x40] sm:$0xff] %v4140
                %v4142 = vld [vmem:[%s4130 + $0x28] sm:$0xff]
                %4143 = vst [vmem:[%s4131 + $0x48] sm:$0xff] %v4142
                %v4144 = vld [vmem:[%s4130 + $0x30] sm:$0xff]
                %4145 = vst [vmem:[%s4131 + $0x50] sm:$0xff] %v4144
                %v4146 = vld [vmem:[%s4130 + $0x38] sm:$0xff]
                %4147 = vst [vmem:[%s4131 + $0x58] sm:$0xff] %v4146
                %v4148 = vld [vmem:[%s4130 + $0x40] sm:$0xff]
                %4149 = vst [vmem:[%s4131 + $0x80] sm:$0xff] %v4148
                %v4150 = vld [vmem:[%s4130 + $0x48] sm:$0xff]
                %4151 = vst [vmem:[%s4131 + $0x88] sm:$0xff] %v4150
                %v4152 = vld [vmem:[%s4130 + $0x50] sm:$0xff]
                %4153 = vst [vmem:[%s4131 + $0x90] sm:$0xff] %v4152
                %v4154 = vld [vmem:[%s4130 + $0x58] sm:$0xff]
                %4155 = vst [vmem:[%s4131 + $0x98] sm:$0xff] %v4154
                %v4156 = vld [vmem:[%s4130 + $0x60] sm:$0xff]
                %4157 = vst [vmem:[%s4131 + $0xc0] sm:$0xff] %v4156
                %v4158 = vld [vmem:[%s4130 + $0x68] sm:$0xff]
                %4159 = vst [vmem:[%s4131 + $0xc8] sm:$0xff] %v4158
                %v4160 = vld [vmem:[%s4130 + $0x70] sm:$0xff]
                %4161 = vst [vmem:[%s4131 + $0xd0] sm:$0xff] %v4160
                %v4162 = vld [vmem:[%s4130 + $0x78] sm:$0xff]
                %4163 = vst [vmem:[%s4131 + $0xd8] sm:$0xff] %v4162
                %v4164 = vld [vmem:[%s4130 + $0x80] sm:$0xff]
                %4165 = vst [vmem:[%s4131 + $0x100] sm:$0xff] %v4164
                %v4166 = vld [vmem:[%s4130 + $0x88] sm:$0xff]
                %4167 = vst [vmem:[%s4131 + $0x108] sm:$0xff] %v4166
                %v4168 = vld [vmem:[%s4130 + $0x90] sm:$0xff]
                %4169 = vst [vmem:[%s4131 + $0x110] sm:$0xff] %v4168
                %v4170 = vld [vmem:[%s4130 + $0x98] sm:$0xff]
                %4171 = vst [vmem:[%s4131 + $0x118] sm:$0xff] %v4170
                %v4172 = vld [vmem:[%s4130 + $0xa0] sm:$0xff]
                %4173 = vst [vmem:[%s4131 + $0x140] sm:$0xff] %v4172
                %v4174 = vld [vmem:[%s4130 + $0xa8] sm:$0xff]
                %4175 = vst [vmem:[%s4131 + $0x148] sm:$0xff] %v4174
                %v4176 = vld [vmem:[%s4130 + $0xb0] sm:$0xff]
                %4177 = vst [vmem:[%s4131 + $0x150] sm:$0xff] %v4176
                %v4178 = vld [vmem:[%s4130 + $0xb8] sm:$0xff]
                %4179 = vst [vmem:[%s4131 + $0x158] sm:$0xff] %v4178
                %v4180 = vld [vmem:[%s4130 + $0xc0] sm:$0xff]
                %4181 = vst [vmem:[%s4131 + $0x180] sm:$0xff] %v4180
                %v4182 = vld [vmem:[%s4130 + $0xc8] sm:$0xff]
                %4183 = vst [vmem:[%s4131 + $0x188] sm:$0xff] %v4182
                %v4184 = vld [vmem:[%s4130 + $0xd0] sm:$0xff]
                %4185 = vst [vmem:[%s4131 + $0x190] sm:$0xff] %v4184
                %v4186 = vld [vmem:[%s4130 + $0xd8] sm:$0xff]
                %4187 = vst [vmem:[%s4131 + $0x198] sm:$0xff] %v4186
                %v4188 = vld [vmem:[%s4130 + $0xe0] sm:$0xff]
                %4189 = vst [vmem:[%s4131 + $0x1c0] sm:$0xff] %v4188
                %v4190 = vld [vmem:[%s4130 + $0xe8] sm:$0xff]
                %4191 = vst [vmem:[%s4131 + $0x1c8] sm:$0xff] %v4190
                %v4192 = vld [vmem:[%s4130 + $0xf0] sm:$0xff]
                %4193 = vst [vmem:[%s4131 + $0x1d0] sm:$0xff] %v4192
                %v4194 = vld [vmem:[%s4130 + $0xf8] sm:$0xff]
                %4195 = vst [vmem:[%s4131 + $0x1d8] sm:$0xff] %v4194
              $region101: #{_lambda_.1} parent=95 // loop_footer
                %s4129 = sadd.s32 1, %s4125
              $region102: #{_lambda_.1} parent=95 // loop_footer_branch
                %4124 = sbr.rel target = $region98
              $region103: #{_lambda_.1} parent=95 // loop_exit
                _
            $region96: #{_lambda_.1} parent=87 // pred_fallthru
              _
          $region88: #{_lambda_.1} parent=83 // pred_fallthru
            _
          %4272 = vnop
        $region84: #{_lambda_.1} parent=51 // pred_fallthru
          _
      $region52: #{_lambda_.1} parent=5 // pred_fallthru
        _
      %p4273 = scmp.le.s32.totalorder 2, %s20
      // Predicated region
      $region119: #{_lambda_.1} parent=5 // pred_check
        %p4274 = pneg %p4273
      $region120: #{_lambda_.1} parent=5 // pred_check_branch
        %4276 = sbr.rel (%p4274) target = $region122
      $region121: #{_lambda_.1} parent=5 // pred_region
        %s4277 = ssub.s32 %s20, 2
        // Predicated region
        $region123: #{_lambda_.1} parent=121 // pred_check
          %p4278 = pneg %p222
        $region124: #{_lambda_.1} parent=121 // pred_check_branch
          %4280 = sbr.rel (%p4278) target = $region126
        $region125: #{_lambda_.1} parent=121 // pred_region
          %s4281 = sand.u32 %s207, 1
          %s4282 = sand.u32 %s207, 1
          %s4283 = smul.addr %s4282, 256
          %s4284 = scalar_lea.vmem [#allocation13], %s4283
        $region126: #{_lambda_.1} parent=121 // pred_fallthru
          _
      $region122: #{_lambda_.1} parent=5 // pred_fallthru
        _
    $region6: #{_lambda_.1} parent=1 // loop_footer
      %s24 = sadd.s32 1, %s20
    $region7: #{_lambda_.1} parent=1 // loop_footer_branch
      %19 = sbr.rel target = $region3
    $region8: #{_lambda_.1} parent=1 // loop_exit
      _
    %4285 = vsyncpa [#allocation3], 1
    %s4286 = scalar_lea.sflag [#allocation3], 1
    %4287 = vsyncpa %s4286, 1
    %4288 = vsyncpa [#allocation5], 1
    %4289 = vsyncpa [#allocation8], 1
    %4290 = vsyncpa [#allocation11], 1

</llo_original>
